<compile_context>
chip_gen: v5e
topology: v5e:2x2
jax: 0.10.0
libtpu: 0.0.40
codegen_flags: <defaults>
</compile_context>

<pallas_src>
import functools

import jax
import jax.numpy as jnp
from jax import lax
from jax.experimental import pallas as pl
from jax.experimental.pallas import tpu as pltpu

LEAKY_SLOPE = 0.2
IN_EPS = 1e-5
LANE = 128

# Fixed architecture of the Discriminator's conv stack:
#   (kernel, stride, padding, InstanceNorm?, LeakyReLU?)
_LAYER_DEFS = (
    dict(k=(3, 4), s=(1, 2), p=(1, 1), use_in=False, leaky=True),   # Conv + b + LReLU
    dict(k=(3, 4), s=(1, 2), p=(1, 1), use_in=True,  leaky=True),   # _block
    dict(k=(3, 4), s=(1, 2), p=(1, 1), use_in=True,  leaky=True),   # _block
    dict(k=(4, 3), s=(2, 1), p=(1, 1), use_in=True,  leaky=True),   # _block
    dict(k=(4, 3), s=(2, 2), p=(0, 0), use_in=False, leaky=False),  # final Conv + b
)


def _round_up(v, m):
    return ((v + m - 1) // m) * m


def _leaky(y):
    return jnp.where(y > 0, y, LEAKY_SLOPE * y)


# ----------------------------------------------------------------------------
# Fused whole-network kernel: one sample (batch element) per grid step
# ----------------------------------------------------------------------------
def _disc_kernel(*args, cfg, n_in):
    """Forward pass of the full conv stack for ONE sample.

    args = (input refs ..., output ref, scratch refs ...)
      input refs : x1, then per layer: W_banded (+ bias_row | gamma/beta rows,
                   S, S^T for InstanceNorm layers)
      output ref : (1, Ho_last, WL_last) f32
      scratch    : per layer >= 2, its (zero-padded) input activation buffer,
                   bf16, W x C flattened into lanes; H-parity split if the
                   layer has H-stride 2.
    """
    in_refs = args[:n_in]
    o_ref = args[n_in]
    bufs = args[n_in + 1:]

    # Zero the activation buffers (their zero borders ARE the conv padding).
    for b in bufs:
        b[...] = jnp.zeros(b.shape, b.dtype)

    it = iter(in_refs)
    x_ref = next(it)
    src_kind, src_ref = "first", x_ref

    n_layers = len(cfg)
    for li, c in enumerate(cfg):
        w_ref = next(it)
        kh, Ho = c["kh"], c["Ho"]

        # --- convolution: one banded matmul per kernel row, all output rows
        #     batched into the LHS, all column taps packed in the contraction.
        acc = None
        for i in range(kh):
            if src_kind == "first":
                lhs = src_ref[0, i:i + Ho, :]
            elif src_kind == "split":
                lhs = src_ref[i % 2, i // 2:i // 2 + Ho, :]
            else:
                lhs = src_ref[i:i + Ho, :]
            part = jnp.dot(lhs, w_ref[i], preferred_element_type=jnp.float32)
            acc = part if acc is None else acc + part

        # --- fused epilogue (f32)
        if c["use_in"]:
            gb_ref, s_ref, st_ref = next(it), next(it), next(it)
            S = s_ref[...]                      # (WL_out, CP): lane -> channel
            ST = st_ref[...]                    # (CP, WL_out): channel -> lane
            inv_cnt = c["inv_cnt"]
            col = jnp.sum(acc, axis=0, keepdims=True)                # (1, WL_out)
            mean_vec = jnp.dot(col, S, preferred_element_type=jnp.float32) * inv_cnt
            mean_row = jnp.dot(mean_vec, ST, preferred_element_type=jnp.float32)
            d = acc - mean_row
            col2 = jnp.sum(d * d, axis=0, keepdims=True)
            var_vec = jnp.dot(col2, S, preferred_element_type=jnp.float32) * inv_cnt
            rstd_row = jnp.dot(lax.rsqrt(var_vec + IN_EPS), ST,
                               preferred_element_type=jnp.float32)
            y = d * rstd_row * gb_ref[0:1, :] + gb_ref[1:2, :]
        else:
            brow_ref = next(it)
            y = acc + brow_ref[...]
        if c["leaky"]:
            y = _leaky(y)

        # --- write to the next layer's VMEM input buffer / the kernel output
        if li == n_layers - 1:
            o_ref[0] = y.astype(o_ref.dtype)
        else:
            dst = bufs[li]
            ph_next = c["ph_next"]
            if c["split_next"]:
                # Next layer has H-stride 2: scatter rows by parity (static).
                for ho in range(Ho):
                    hp = ho + ph_next
                    dst[hp % 2, hp // 2:hp // 2 + 1, :] = (
                        y[ho:ho + 1, :].astype(dst.dtype))
                src_kind, src_ref = "split", dst
            else:
                dst[ph_next:ph_next + Ho, :] = y.astype(dst.dtype)
                src_kind, src_ref = "plain", dst


# ----------------------------------------------------------------------------
# Wrapper-side constant construction (weights folded to banded matrices, etc.)
# ----------------------------------------------------------------------------
def _banded_weight(w_oihw, g):
    """Fold conv weights into per-kernel-row banded (WL_in, WL_out) matrices."""
    cout, cin, kh, kw = w_oihw.shape
    wp, wo, sw = g["wp"], g["wo"], g["sw"]
    # T[j, p, wo] = 1  iff  p == sw*wo + j   (p = padded input column index)
    p_idx = jnp.arange(wp)[None, :, None]
    wo_idx = jnp.arange(wo)[None, None, :]
    j_idx = jnp.arange(kw)[:, None, None]
    T = (p_idx == sw * wo_idx + j_idx).astype(jnp.float32)            # (kw, wp, wo)
    wm = jnp.transpose(w_oihw, (3, 2, 1, 0)).astype(jnp.float32)      # (kw, kh, ci, co)
    big = jnp.einsum("jpw,jicd->ipcwd", T, wm)                        # (kh, wp, ci, wo, co)
    big = big.reshape(kh, wp * cin, wo * cout)
    big = jnp.pad(big, ((0, 0),
                        (0, g["wl_in"] - wp * cin),
                        (g["pw_next"] * cout,
                         g["wl_out"] - g["pw_next"] * cout - wo * cout)))
    return big.astype(jnp.bfloat16)


def _chan_row(vec, g):
    """Broadcast a per-channel vector to the layer-output lane layout."""
    wl_out, cout, wo, pwn = g["wl_out"], g["cout"], g["wo"], g["pw_next"]
    lane = jnp.arange(wl_out)
    wblk = lane // cout
    valid = (wblk >= pwn) & (wblk < pwn + wo)
    return jnp.where(valid, vec.astype(jnp.float32)[lane % cout], 0.0)


def _stat_matrix(g):
    """0/1 matrix mapping output lanes -> channels (for InstanceNorm stats)."""
    wl_out, cout, wo, pwn, cp = (g["wl_out"], g["cout"], g["wo"],
                                 g["pw_next"], g["cp"])
    lane = jnp.arange(wl_out)
    wblk = lane // cout
    valid = (wblk >= pwn) & (wblk < pwn + wo)
    co = jnp.arange(cp)
    S = valid[:, None] & ((lane % cout)[:, None] == co[None, :])
    return S.astype(jnp.float32)


# ----------------------------------------------------------------------------
# Forward pass
# ----------------------------------------------------------------------------
def discriminator_forward(params, x_nchw, labels, image_size1, image_size2):
    N = x_nchw.shape[0]
    x = jnp.transpose(x_nchw, (0, 2, 3, 1)).astype(jnp.float32)        # NCHW -> NHWC
    emb = params["embed"][labels].reshape(N, image_size1, image_size2, 1)
    x = jnp.concatenate([x, emb], axis=-1)                             # (N, H, W, Cin1)

    w_list = [params["c1_w"], params["b1_w"], params["b2_w"], params["b3_w"],
              params["c5_w"]]
    ep_list = [("c1_b", None, None), (None, "b1_g", "b1_b"),
               (None, "b2_g", "b2_b"), (None, "b3_g", "b3_b"),
               ("c5_b", None, None)]
    L = len(_LAYER_DEFS)

    # ---- static per-layer geometry ------------------------------------------
    geo = []
    h, w, cin = image_size1, image_size2, x.shape[-1]
    for l in range(L):
        d = _LAYER_DEFS[l]
        kh, kw = d["k"]
        sh, sw = d["s"]
        ph, pw = d["p"]
        cout = w_list[l].shape[0]
        hp, wp = h + 2 * ph, w + 2 * pw
        ho = (hp - kh) // sh + 1
        wo = (wp - kw) // sw + 1
        geo.append(dict(kh=kh, kw=kw, sh=sh, sw=sw, ph=ph, pw=pw, cin=cin,
                        cout=cout, hp=hp, wp=wp, ho=ho, wo=wo,
                        wl_in=_round_up(wp * cin, LANE),
                        cp=_round_up(cout, LANE)))
        h, w, cin = ho, wo, cout
    for l in range(L):
        g = geo[l]
        if l + 1 < L:
            nxt = geo[l + 1]
            g["pw_next"], g["ph_next"], g["sh_next"] = nxt["pw"], nxt["ph"], nxt["sh"]
            g["wl_out"] = nxt["wl_in"]
        else:
            g["pw_next"], g["ph_next"], g["sh_next"] = 0, 0, 1
            g["wl_out"] = _round_up(g["wo"] * g["cout"], LANE)
    assert geo[0]["sh"] == 1, "layer 1 of this architecture has H-stride 1"

    # ---- layer-1 input: zero-padded, (W, C) flattened into lanes -------------
    g0 = geo[0]
    xp = jnp.pad(x, ((0, 0), (0, 0), (g0["pw"], g0["pw"]), (0, 0)))
    xp = xp.reshape(N, image_size1, g0["wp"] * g0["cin"])
    xp = jnp.pad(xp, ((0, 0), (g0["ph"], g0["ph"]),
                      (0, g0["wl_in"] - g0["wp"] * g0["cin"])))
    x1 = xp.astype(jnp.bfloat16)                                        # (N, Hp1, WL1)

    # ---- per-layer constants (banded weights, epilogue rows, stat matrices) --
    inputs = [x1]
    in_specs = [pl.BlockSpec((1, x1.shape[1], x1.shape[2]), lambda n: (n, 0, 0))]
    cfg = []
    for l in range(L):
        g = geo[l]
        wb = _banded_weight(w_list[l], g)
        inputs.append(wb)
        in_specs.append(pl.BlockSpec(wb.shape, lambda n: (0, 0, 0)))
        if _LAYER_DEFS[l]["use_in"]:
            _, gname, btname = ep_list[l]
            gbrow = jnp.stack([_chan_row(params[gname], g),
                               _chan_row(params[btname], g)])           # (2, WL_out)
            S = _stat_matrix(g)                                         # (WL_out, CP)
            ST = jnp.transpose(S)                                       # (CP, WL_out)
            inputs += [gbrow, S, ST]
            in_specs += [pl.BlockSpec(gbrow.shape, lambda n: (0, 0)),
                         pl.BlockSpec(S.shape, lambda n: (0, 0)),
                         pl.BlockSpec(ST.shape, lambda n: (0, 0))]
        else:
            bias_name = ep_list[l][0]
            brow = _chan_row(params[bias_name], g)[None, :]             # (1, WL_out)
            inputs.append(brow)
            in_specs.append(pl.BlockSpec(brow.shape, lambda n: (0, 0)))
        cfg.append(dict(kh=g["kh"], Ho=g["ho"],
                        use_in=_LAYER_DEFS[l]["use_in"],
                        leaky=_LAYER_DEFS[l]["leaky"],
                        inv_cnt=1.0 / float(g["ho"] * g["wo"]),
                        ph_next=g["ph_next"],
                        split_next=(g["sh_next"] == 2)))

    # ---- VMEM scratch: input activation buffer of layers 2..L ----------------
    scratch = []
    for l in range(1, L):
        g = geo[l]
        if g["sh"] == 2:
            scratch.append(pltpu.VMEM((2, (g["hp"] + 1) // 2, g["wl_in"]),
                                      jnp.bfloat16))
        else:
            scratch.append(pltpu.VMEM((g["hp"], g["wl_in"]), jnp.bfloat16))

    g_last = geo[-1]
    out = pl.pallas_call(
        functools.partial(_disc_kernel, cfg=cfg, n_in=len(inputs)),
        out_shape=jax.ShapeDtypeStruct((N, g_last["ho"], g_last["wl_out"]),
                                       jnp.float32),
        grid=(N,),
        in_specs=in_specs,
        out_specs=pl.BlockSpec((1, g_last["ho"], g_last["wl_out"]),
                               lambda n: (n, 0, 0)),
        scratch_shapes=scratch,
        compiler_params=pltpu.CompilerParams(
            dimension_semantics=("parallel",),
            vmem_limit_bytes=32 * 1024 * 1024),
    )(*inputs)

    y = out[:, :, : g_last["wo"] * g_last["cout"]]
    y = y.reshape(N, g_last["ho"], g_last["wo"], g_last["cout"])
    return jnp.transpose(y, (0, 3, 1, 2))                               # NHWC -> NCHW


# ----------------------------------------------------------------------------
# Parameters (deterministic synthetic init)
# ----------------------------------------------------------------------------
def init_params(key, channels_img, features_d, image_size1, image_size2, num_classes):
    ks = jax.random.split(key, 16)
    F = features_d

    def w(k, shape, scale=0.05):
        return (scale * jax.random.normal(k, shape)).astype(jnp.float32)

    params = {
        "embed": w(ks[0], (num_classes, image_size1 * image_size2), 0.1),
        # Conv2d(channels_img+1, F, (3,4), (1,2), padding=1, dilation=1, bias=True)
        "c1_w": w(ks[1], (F, channels_img + 1, 3, 4)),
        "c1_b": w(ks[2], (F,), 0.02),
        # _block(F, 2F, (3,4), (1,2), (1,1)) -- conv (no bias) + InstanceNorm affine
        "b1_w": w(ks[3], (2 * F, F, 3, 4)),
        "b1_g": (1.0 + 0.1 * jax.random.normal(ks[4], (2 * F,))).astype(jnp.float32),
        "b1_b": w(ks[5], (2 * F,), 0.1),
        # _block(2F, 4F, (3,4), (1,2), (1,1))
        "b2_w": w(ks[6], (4 * F, 2 * F, 3, 4)),
        "b2_g": (1.0 + 0.1 * jax.random.normal(ks[7], (4 * F,))).astype(jnp.float32),
        "b2_b": w(ks[8], (4 * F,), 0.1),
        # _block(4F, 8F, (4,3), (2,1), (1,1))
        "b3_w": w(ks[9], (8 * F, 4 * F, 4, 3)),
        "b3_g": (1.0 + 0.1 * jax.random.normal(ks[10], (8 * F,))).astype(jnp.float32),
        "b3_b": w(ks[11], (8 * F,), 0.1),
        # Conv2d(8F, 1, (4,3), (2,2), padding=0, bias=True)
        "c5_w": w(ks[12], (1, 8 * F, 4, 3)),
        "c5_b": w(ks[13], (1,), 0.02),
    }
    return params


# ----------------------------------------------------------------------------
# Pure-JAX reference (lax.conv, same bf16-operand / f32-accumulate precision)
# ----------------------------------------------------------------------------
def _ref_conv(x_nhwc, w_oihw, stride, padding):
    return lax.conv_general_dilated(
        x_nhwc.astype(jnp.bfloat16),
        jnp.transpose(w_oihw, (2, 3, 1, 0)).astype(jnp.bfloat16),
        window_strides=stride,
        padding=[(padding[0], padding[0]), (padding[1], padding[1])],
        dimension_numbers=("NHWC", "HWIO", "NHWC"),
        preferred_element_type=jnp.float32,
    )


def _ref_lrelu(x):
    return jnp.where(x > 0, x, LEAKY_SLOPE * x)


def _ref_in_lrelu(x_nhwc, gamma, beta):
    mean = jnp.mean(x_nhwc, axis=(1, 2), keepdims=True)
    var = jnp.mean(jnp.square(x_nhwc - mean), axis=(1, 2), keepdims=True)
    y = (x_nhwc - mean) * lax.rsqrt(var + IN_EPS) * gamma + beta
    return _ref_lrelu(y)


def reference_forward(params, x_nchw, labels, image_size1, image_size2):
    N = x_nchw.shape[0]
    x = jnp.transpose(x_nchw, (0, 2, 3, 1)).astype(jnp.float32)
    emb = params["embed"][labels].reshape(N, image_size1, image_size2, 1)
    x = jnp.concatenate([x, emb], axis=-1)
    x = _ref_lrelu(_ref_conv(x, params["c1_w"], (1, 2), (1, 1)) + params["c1_b"])
    x = _ref_in_lrelu(_ref_conv(x, params["b1_w"], (1, 2), (1, 1)),
                      params["b1_g"], params["b1_b"])
    x = _ref_in_lrelu(_ref_conv(x, params["b2_w"], (1, 2), (1, 1)),
                      params["b2_g"], params["b2_b"])
    x = _ref_in_lrelu(_ref_conv(x, params["b3_w"], (2, 1), (1, 1)),
                      params["b3_g"], params["b3_b"])
    x = _ref_conv(x, params["c5_w"], (2, 2), (0, 0)) + params["c5_b"]
    return jnp.transpose(x, (0, 3, 1, 2))


# ----------------------------------------------------------------------------
if __name__ == "__main__":
    # Discriminator(channels_img=3, features_d=8, image_size1=16,
    #               image_size2=32, num_classes=4), batch=2
    channels_img, features_d = 3, 8
    image_size1, image_size2 = 16, 32
    num_classes, batch = 4, 2

    key = jax.random.PRNGKey(0)
    k_x, k_lab, k_par = jax.random.split(key, 3)

    x = jax.random.normal(k_x, (batch, channels_img, image_size1, image_size2),
                          dtype=jnp.float32)
    labels = jax.random.randint(k_lab, (batch,), 0, num_classes, dtype=jnp.int32)
    params = init_params(k_par, channels_img, features_d,
                         image_size1, image_size2, num_classes)

    fwd = jax.jit(functools.partial(discriminator_forward,
                                    image_size1=image_size1,
                                    image_size2=image_size2))
    out = jax.block_until_ready(fwd(params, x, labels))

    ref = jax.block_until_ready(
        reference_forward(params, x, labels, image_size1, image_size2))

    assert out.shape == ref.shape, (out.shape, ref.shape)
    assert bool(jnp.all(jnp.isfinite(out)))
    max_err = float(jnp.max(jnp.abs(out - ref)))
    assert bool(jnp.allclose(out, ref, rtol=2e-2, atol=2e-2)), max_err

    print("KERNEL_OK")
</pallas_src>

<mosaic_0001>
module attributes {stable_mosaic.version = 11 : i64} {
  func.func @_disc_kernel(%arg0: i32, %arg1: memref<1x18x256xbf16, #tpu.memory_space<vmem>>, %arg2: memref<3x256x256xbf16, #tpu.memory_space<vmem>>, %arg3: memref<1x256xf32, #tpu.memory_space<vmem>>, %arg4: memref<3x256x256xbf16, #tpu.memory_space<vmem>>, %arg5: memref<2x256xf32, #tpu.memory_space<vmem>>, %arg6: memref<256x128xf32, #tpu.memory_space<vmem>>, %arg7: memref<128x256xf32, #tpu.memory_space<vmem>>, %arg8: memref<3x256x256xbf16, #tpu.memory_space<vmem>>, %arg9: memref<2x256xf32, #tpu.memory_space<vmem>>, %arg10: memref<256x128xf32, #tpu.memory_space<vmem>>, %arg11: memref<128x256xf32, #tpu.memory_space<vmem>>, %arg12: memref<4x256x256xbf16, #tpu.memory_space<vmem>>, %arg13: memref<2x256xf32, #tpu.memory_space<vmem>>, %arg14: memref<256x128xf32, #tpu.memory_space<vmem>>, %arg15: memref<128x256xf32, #tpu.memory_space<vmem>>, %arg16: memref<4x256x128xbf16, #tpu.memory_space<vmem>>, %arg17: memref<1x128xf32, #tpu.memory_space<vmem>>, %arg18: memref<1x3x128xf32, #tpu.memory_space<vmem>>, %arg19: memref<18x256xbf16, #tpu.memory_space<vmem>>, %arg20: memref<18x256xbf16, #tpu.memory_space<vmem>>, %arg21: memref<2x9x256xbf16, #tpu.memory_space<vmem>>, %arg22: memref<2x4x256xbf16, #tpu.memory_space<vmem>>) attributes {dimension_semantics = [#tpu.dimension_semantics<parallel>], iteration_bounds = array<i64: 2>, scalar_prefetch = 0 : i64, scratch_operands = 4 : i64, tpu.core_type = #tpu.core_type<tc>, window_params = [{transform_indices = @transform_0, window_bounds = array<i64: 1, 18, 256>}, {pipeline_mode = #tpu.pipeline_mode<synchronous>, transform_indices = @transform_1, window_bounds = array<i64: 3, 256, 256>}, {pipeline_mode = #tpu.pipeline_mode<synchronous>, transform_indices = @transform_2, window_bounds = array<i64: 1, 256>}, {pipeline_mode = #tpu.pipeline_mode<synchronous>, transform_indices = @transform_3, window_bounds = array<i64: 3, 256, 256>}, {pipeline_mode = #tpu.pipeline_mode<synchronous>, transform_indices = @transform_4, window_bounds = array<i64: 2, 256>}, {pipeline_mode = #tpu.pipeline_mode<synchronous>, transform_indices = @transform_5, window_bounds = array<i64: 256, 128>}, {pipeline_mode = #tpu.pipeline_mode<synchronous>, transform_indices = @transform_6, window_bounds = array<i64: 128, 256>}, {pipeline_mode = #tpu.pipeline_mode<synchronous>, transform_indices = @transform_7, window_bounds = array<i64: 3, 256, 256>}, {pipeline_mode = #tpu.pipeline_mode<synchronous>, transform_indices = @transform_8, window_bounds = array<i64: 2, 256>}, {pipeline_mode = #tpu.pipeline_mode<synchronous>, transform_indices = @transform_9, window_bounds = array<i64: 256, 128>}, {pipeline_mode = #tpu.pipeline_mode<synchronous>, transform_indices = @transform_10, window_bounds = array<i64: 128, 256>}, {pipeline_mode = #tpu.pipeline_mode<synchronous>, transform_indices = @transform_11, window_bounds = array<i64: 4, 256, 256>}, {pipeline_mode = #tpu.pipeline_mode<synchronous>, transform_indices = @transform_12, window_bounds = array<i64: 2, 256>}, {pipeline_mode = #tpu.pipeline_mode<synchronous>, transform_indices = @transform_13, window_bounds = array<i64: 256, 128>}, {pipeline_mode = #tpu.pipeline_mode<synchronous>, transform_indices = @transform_14, window_bounds = array<i64: 128, 256>}, {pipeline_mode = #tpu.pipeline_mode<synchronous>, transform_indices = @transform_15, window_bounds = array<i64: 4, 256, 128>}, {pipeline_mode = #tpu.pipeline_mode<synchronous>, transform_indices = @transform_16, window_bounds = array<i64: 1, 128>}, {transform_indices = @transform_17, window_bounds = array<i64: 1, 3, 128>}]} {
    %cst = arith.constant 0.000000e+00 : bf16
    %0 = vector.broadcast %cst : bf16 to vector<18x256xbf16>
    %c0 = arith.constant 0 : index
    %c0_0 = arith.constant 0 : index
    %1 = vector.load %arg19[%c0, %c0_0] : memref<18x256xbf16, #tpu.memory_space<vmem>>, vector<18x256xbf16>
    tpu.vector_store %arg19[%c0, %c0_0], %0 {strides = array<i32>} : memref<18x256xbf16, #tpu.memory_space<vmem>>, vector<18x256xbf16>,
    %cst_1 = arith.constant 0.000000e+00 : bf16
    %2 = vector.broadcast %cst_1 : bf16 to vector<18x256xbf16>
    %c0_2 = arith.constant 0 : index
    %c0_3 = arith.constant 0 : index
    %3 = vector.load %arg20[%c0_2, %c0_3] : memref<18x256xbf16, #tpu.memory_space<vmem>>, vector<18x256xbf16>
    tpu.vector_store %arg20[%c0_2, %c0_3], %2 {strides = array<i32>} : memref<18x256xbf16, #tpu.memory_space<vmem>>, vector<18x256xbf16>,
    %cst_4 = arith.constant 0.000000e+00 : bf16
    %4 = vector.broadcast %cst_4 : bf16 to vector<2x9x256xbf16>
    %c0_5 = arith.constant 0 : index
    %c0_6 = arith.constant 0 : index
    %c0_7 = arith.constant 0 : index
    %5 = vector.load %arg21[%c0_5, %c0_6, %c0_7] : memref<2x9x256xbf16, #tpu.memory_space<vmem>>, vector<2x9x256xbf16>
    tpu.vector_store %arg21[%c0_5, %c0_6, %c0_7], %4 {strides = array<i32>} : memref<2x9x256xbf16, #tpu.memory_space<vmem>>, vector<2x9x256xbf16>,
    %cst_8 = arith.constant 0.000000e+00 : bf16
    %6 = vector.broadcast %cst_8 : bf16 to vector<2x4x256xbf16>
    %c0_9 = arith.constant 0 : index
    %c0_10 = arith.constant 0 : index
    %c0_11 = arith.constant 0 : index
    %7 = vector.load %arg22[%c0_9, %c0_10, %c0_11] : memref<2x4x256xbf16, #tpu.memory_space<vmem>>, vector<2x4x256xbf16>
    tpu.vector_store %arg22[%c0_9, %c0_10, %c0_11], %6 {strides = array<i32>} : memref<2x4x256xbf16, #tpu.memory_space<vmem>>, vector<2x4x256xbf16>,
    %c0_12 = arith.constant 0 : index
    %c0_13 = arith.constant 0 : index
    %c0_14 = arith.constant 0 : index
    %8 = vector.load %arg1[%c0_12, %c0_13, %c0_14] : memref<1x18x256xbf16, #tpu.memory_space<vmem>>, vector<1x16x256xbf16>
    %9 = vector.shape_cast %8 : vector<1x16x256xbf16> to vector<16x256xbf16>
    %c0_15 = arith.constant 0 : index
    %c0_16 = arith.constant 0 : index
    %c0_17 = arith.constant 0 : index
    %10 = vector.load %arg2[%c0_15, %c0_16, %c0_17] : memref<3x256x256xbf16, #tpu.memory_space<vmem>>, vector<1x256x256xbf16>
    %11 = vector.shape_cast %10 : vector<1x256x256xbf16> to vector<256x256xbf16>
    %cst_18 = arith.constant dense<0.000000e+00> : vector<16x256xf32>
    %12 = tpu.matmul %9, %11, %cst_18 {dimension_numbers = #tpu.dot_dimension_numbers<[1], [0], [0], [1], [0, 0, 1, 1], [], []>} : vector<16x256xbf16>, vector<256x256xbf16>, vector<16x256xf32> -> vector<16x256xf32>
    %c0_19 = arith.constant 0 : index
    %c1 = arith.constant 1 : index
    %c0_20 = arith.constant 0 : index
    %13 = vector.load %arg1[%c0_19, %c1, %c0_20] : memref<1x18x256xbf16, #tpu.memory_space<vmem>>, vector<1x16x256xbf16>
    %14 = vector.shape_cast %13 : vector<1x16x256xbf16> to vector<16x256xbf16>
    %c1_21 = arith.constant 1 : index
    %c0_22 = arith.constant 0 : index
    %c0_23 = arith.constant 0 : index
    %15 = vector.load %arg2[%c1_21, %c0_22, %c0_23] : memref<3x256x256xbf16, #tpu.memory_space<vmem>>, vector<1x256x256xbf16>
    %16 = vector.shape_cast %15 : vector<1x256x256xbf16> to vector<256x256xbf16>
    %cst_24 = arith.constant dense<0.000000e+00> : vector<16x256xf32>
    %17 = tpu.matmul %14, %16, %cst_24 {dimension_numbers = #tpu.dot_dimension_numbers<[1], [0], [0], [1], [0, 0, 1, 1], [], []>} : vector<16x256xbf16>, vector<256x256xbf16>, vector<16x256xf32> -> vector<16x256xf32>
    %18 = arith.addf %12, %17 : vector<16x256xf32>
    %c0_25 = arith.constant 0 : index
    %c2 = arith.constant 2 : index
    %c0_26 = arith.constant 0 : index
    %19 = vector.load %arg1[%c0_25, %c2, %c0_26] : memref<1x18x256xbf16, #tpu.memory_space<vmem>>, vector<1x16x256xbf16>
    %20 = vector.shape_cast %19 : vector<1x16x256xbf16> to vector<16x256xbf16>
    %c2_27 = arith.constant 2 : index
    %c0_28 = arith.constant 0 : index
    %c0_29 = arith.constant 0 : index
    %21 = vector.load %arg2[%c2_27, %c0_28, %c0_29] : memref<3x256x256xbf16, #tpu.memory_space<vmem>>, vector<1x256x256xbf16>
    %22 = vector.shape_cast %21 : vector<1x256x256xbf16> to vector<256x256xbf16>
    %cst_30 = arith.constant dense<0.000000e+00> : vector<16x256xf32>
    %23 = tpu.matmul %20, %22, %cst_30 {dimension_numbers = #tpu.dot_dimension_numbers<[1], [0], [0], [1], [0, 0, 1, 1], [], []>} : vector<16x256xbf16>, vector<256x256xbf16>, vector<16x256xf32> -> vector<16x256xf32>
    %24 = arith.addf %18, %23 : vector<16x256xf32>
    %c0_31 = arith.constant 0 : index
    %c0_32 = arith.constant 0 : index
    %25 = vector.load %arg3[%c0_31, %c0_32] : memref<1x256xf32, #tpu.memory_space<vmem>>, vector<1x256xf32>
    %26 = vector.broadcast %25 : vector<1x256xf32> to vector<16x256xf32>
    %27 = arith.addf %24, %26 : vector<16x256xf32>
    %cst_33 = arith.constant 0.000000e+00 : f32
    %28 = vector.broadcast %cst_33 : f32 to vector<16x256xf32>
    %29 = arith.cmpf ogt, %27, %28 : vector<16x256xf32>
    %cst_34 = arith.constant 2.000000e-01 : f32
    %30 = vector.broadcast %cst_34 : f32 to vector<16x256xf32>
    %31 = arith.mulf %30, %27 : vector<16x256xf32>
    %32 = arith.select %29, %27, %31 : vector<16x256xi1>, vector<16x256xf32>
    %33 = arith.truncf %32 : vector<16x256xf32> to vector<16x256xbf16>
    %c1_35 = arith.constant 1 : index
    %c0_36 = arith.constant 0 : index
    %34 = vector.load %arg19[%c1_35, %c0_36] : memref<18x256xbf16, #tpu.memory_space<vmem>>, vector<16x256xbf16>
    tpu.vector_store %arg19[%c1_35, %c0_36], %33 {strides = array<i32>} : memref<18x256xbf16, #tpu.memory_space<vmem>>, vector<16x256xbf16>,
    %c0_37 = arith.constant 0 : index
    %c0_38 = arith.constant 0 : index
    %35 = vector.load %arg19[%c0_37, %c0_38] : memref<18x256xbf16, #tpu.memory_space<vmem>>, vector<16x256xbf16>
    %c0_39 = arith.constant 0 : index
    %c0_40 = arith.constant 0 : index
    %c0_41 = arith.constant 0 : index
    %36 = vector.load %arg4[%c0_39, %c0_40, %c0_41] : memref<3x256x256xbf16, #tpu.memory_space<vmem>>, vector<1x256x256xbf16>
    %37 = vector.shape_cast %36 : vector<1x256x256xbf16> to vector<256x256xbf16>
    %cst_42 = arith.constant dense<0.000000e+00> : vector<16x256xf32>
    %38 = tpu.matmul %35, %37, %cst_42 {dimension_numbers = #tpu.dot_dimension_numbers<[1], [0], [0], [1], [0, 0, 1, 1], [], []>} : vector<16x256xbf16>, vector<256x256xbf16>, vector<16x256xf32> -> vector<16x256xf32>
    %c1_43 = arith.constant 1 : index
    %c0_44 = arith.constant 0 : index
    %39 = vector.load %arg19[%c1_43, %c0_44] : memref<18x256xbf16, #tpu.memory_space<vmem>>, vector<16x256xbf16>
    %c1_45 = arith.constant 1 : index
    %c0_46 = arith.constant 0 : index
    %c0_47 = arith.constant 0 : index
    %40 = vector.load %arg4[%c1_45, %c0_46, %c0_47] : memref<3x256x256xbf16, #tpu.memory_space<vmem>>, vector<1x256x256xbf16>
    %41 = vector.shape_cast %40 : vector<1x256x256xbf16> to vector<256x256xbf16>
    %cst_48 = arith.constant dense<0.000000e+00> : vector<16x256xf32>
    %42 = tpu.matmul %39, %41, %cst_48 {dimension_numbers = #tpu.dot_dimension_numbers<[1], [0], [0], [1], [0, 0, 1, 1], [], []>} : vector<16x256xbf16>, vector<256x256xbf16>, vector<16x256xf32> -> vector<16x256xf32>
    %43 = arith.addf %38, %42 : vector<16x256xf32>
    %c2_49 = arith.constant 2 : index
    %c0_50 = arith.constant 0 : index
    %44 = vector.load %arg19[%c2_49, %c0_50] : memref<18x256xbf16, #tpu.memory_space<vmem>>, vector<16x256xbf16>
    %c2_51 = arith.constant 2 : index
    %c0_52 = arith.constant 0 : index
    %c0_53 = arith.constant 0 : index
    %45 = vector.load %arg4[%c2_51, %c0_52, %c0_53] : memref<3x256x256xbf16, #tpu.memory_space<vmem>>, vector<1x256x256xbf16>
    %46 = vector.shape_cast %45 : vector<1x256x256xbf16> to vector<256x256xbf16>
    %cst_54 = arith.constant dense<0.000000e+00> : vector<16x256xf32>
    %47 = tpu.matmul %44, %46, %cst_54 {dimension_numbers = #tpu.dot_dimension_numbers<[1], [0], [0], [1], [0, 0, 1, 1], [], []>} : vector<16x256xbf16>, vector<256x256xbf16>, vector<16x256xf32> -> vector<16x256xf32>
    %48 = arith.addf %43, %47 : vector<16x256xf32>
    %c0_55 = arith.constant 0 : index
    %c0_56 = arith.constant 0 : index
    %49 = vector.load %arg6[%c0_55, %c0_56] : memref<256x128xf32, #tpu.memory_space<vmem>>, vector<256x128xf32>
    %c0_57 = arith.constant 0 : index
    %c0_58 = arith.constant 0 : index
    %50 = vector.load %arg7[%c0_57, %c0_58] : memref<128x256xf32, #tpu.memory_space<vmem>>, vector<128x256xf32>
    %cst_59 = arith.constant dense<0.000000e+00> : vector<256xf32>
    %51 = vector.multi_reduction <add>, %48, %cst_59 [0] : vector<16x256xf32> to vector<256xf32>
    %52 = vector.shape_cast %51 : vector<256xf32> to vector<1x256xf32>
    %cst_60 = arith.constant dense<0.000000e+00> : vector<1x128xf32>
    %53 = tpu.matmul %52, %49, %cst_60 {dimension_numbers = #tpu.dot_dimension_numbers<[1], [0], [0], [1], [0, 0, 1, 1], [], []>} : vector<1x256xf32>, vector<256x128xf32>, vector<1x128xf32> -> vector<1x128xf32>
    %cst_61 = arith.constant 7.812500e-03 : f32
    %54 = vector.broadcast %cst_61 : f32 to vector<1x128xf32>
    %55 = arith.mulf %53, %54 : vector<1x128xf32>
    %cst_62 = arith.constant dense<0.000000e+00> : vector<1x256xf32>
    %56 = tpu.matmul %55, %50, %cst_62 {dimension_numbers = #tpu.dot_dimension_numbers<[1], [0], [0], [1], [0, 0, 1, 1], [], []>} : vector<1x128xf32>, vector<128x256xf32>, vector<1x256xf32> -> vector<1x256xf32>
    %57 = vector.broadcast %56 : vector<1x256xf32> to vector<16x256xf32>
    %58 = arith.subf %48, %57 : vector<16x256xf32>
    %59 = arith.mulf %58, %58 : vector<16x256xf32>
    %cst_63 = arith.constant dense<0.000000e+00> : vector<256xf32>
    %60 = vector.multi_reduction <add>, %59, %cst_63 [0] : vector<16x256xf32> to vector<256xf32>
    %61 = vector.shape_cast %60 : vector<256xf32> to vector<1x256xf32>
    %cst_64 = arith.constant dense<0.000000e+00> : vector<1x128xf32>
    %62 = tpu.matmul %61, %49, %cst_64 {dimension_numbers = #tpu.dot_dimension_numbers<[1], [0], [0], [1], [0, 0, 1, 1], [], []>} : vector<1x256xf32>, vector<256x128xf32>, vector<1x128xf32> -> vector<1x128xf32>
    %cst_65 = arith.constant 7.812500e-03 : f32
    %63 = vector.broadcast %cst_65 : f32 to vector<1x128xf32>
    %64 = arith.mulf %62, %63 : vector<1x128xf32>
    %cst_66 = arith.constant 9.99999974E-6 : f32
    %65 = vector.broadcast %cst_66 : f32 to vector<1x128xf32>
    %66 = arith.addf %64, %65 : vector<1x128xf32>
    %67 = math.rsqrt %66 : vector<1x128xf32>
    %cst_67 = arith.constant dense<0.000000e+00> : vector<1x256xf32>
    %68 = tpu.matmul %67, %50, %cst_67 {dimension_numbers = #tpu.dot_dimension_numbers<[1], [0], [0], [1], [0, 0, 1, 1], [], []>} : vector<1x128xf32>, vector<128x256xf32>, vector<1x256xf32> -> vector<1x256xf32>
    %69 = vector.broadcast %68 : vector<1x256xf32> to vector<16x256xf32>
    %70 = arith.mulf %58, %69 : vector<16x256xf32>
    %c0_68 = arith.constant 0 : index
    %c0_69 = arith.constant 0 : index
    %71 = vector.load %arg5[%c0_68, %c0_69] : memref<2x256xf32, #tpu.memory_space<vmem>>, vector<1x256xf32>
    %72 = vector.broadcast %71 : vector<1x256xf32> to vector<16x256xf32>
    %73 = arith.mulf %70, %72 : vector<16x256xf32>
    %c1_70 = arith.constant 1 : index
    %c0_71 = arith.constant 0 : index
    %74 = vector.load %arg5[%c1_70, %c0_71] : memref<2x256xf32, #tpu.memory_space<vmem>>, vector<1x256xf32>
    %75 = vector.broadcast %74 : vector<1x256xf32> to vector<16x256xf32>
    %76 = arith.addf %73, %75 : vector<16x256xf32>
    %cst_72 = arith.constant 0.000000e+00 : f32
    %77 = vector.broadcast %cst_72 : f32 to vector<16x256xf32>
    %78 = arith.cmpf ogt, %76, %77 : vector<16x256xf32>
    %cst_73 = arith.constant 2.000000e-01 : f32
    %79 = vector.broadcast %cst_73 : f32 to vector<16x256xf32>
    %80 = arith.mulf %79, %76 : vector<16x256xf32>
    %81 = arith.select %78, %76, %80 : vector<16x256xi1>, vector<16x256xf32>
    %82 = arith.truncf %81 : vector<16x256xf32> to vector<16x256xbf16>
    %c1_74 = arith.constant 1 : index
    %c0_75 = arith.constant 0 : index
    %83 = vector.load %arg20[%c1_74, %c0_75] : memref<18x256xbf16, #tpu.memory_space<vmem>>, vector<16x256xbf16>
    tpu.vector_store %arg20[%c1_74, %c0_75], %82 {strides = array<i32>} : memref<18x256xbf16, #tpu.memory_space<vmem>>, vector<16x256xbf16>,
    %c0_76 = arith.constant 0 : index
    %c0_77 = arith.constant 0 : index
    %84 = vector.load %arg20[%c0_76, %c0_77] : memref<18x256xbf16, #tpu.memory_space<vmem>>, vector<16x256xbf16>
    %c0_78 = arith.constant 0 : index
    %c0_79 = arith.constant 0 : index
    %c0_80 = arith.constant 0 : index
    %85 = vector.load %arg8[%c0_78, %c0_79, %c0_80] : memref<3x256x256xbf16, #tpu.memory_space<vmem>>, vector<1x256x256xbf16>
    %86 = vector.shape_cast %85 : vector<1x256x256xbf16> to vector<256x256xbf16>
    %cst_81 = arith.constant dense<0.000000e+00> : vector<16x256xf32>
    %87 = tpu.matmul %84, %86, %cst_81 {dimension_numbers = #tpu.dot_dimension_numbers<[1], [0], [0], [1], [0, 0, 1, 1], [], []>} : vector<16x256xbf16>, vector<256x256xbf16>, vector<16x256xf32> -> vector<16x256xf32>
    %c1_82 = arith.constant 1 : index
    %c0_83 = arith.constant 0 : index
    %88 = vector.load %arg20[%c1_82, %c0_83] : memref<18x256xbf16, #tpu.memory_space<vmem>>, vector<16x256xbf16>
    %c1_84 = arith.constant 1 : index
    %c0_85 = arith.constant 0 : index
    %c0_86 = arith.constant 0 : index
    %89 = vector.load %arg8[%c1_84, %c0_85, %c0_86] : memref<3x256x256xbf16, #tpu.memory_space<vmem>>, vector<1x256x256xbf16>
    %90 = vector.shape_cast %89 : vector<1x256x256xbf16> to vector<256x256xbf16>
    %cst_87 = arith.constant dense<0.000000e+00> : vector<16x256xf32>
    %91 = tpu.matmul %88, %90, %cst_87 {dimension_numbers = #tpu.dot_dimension_numbers<[1], [0], [0], [1], [0, 0, 1, 1], [], []>} : vector<16x256xbf16>, vector<256x256xbf16>, vector<16x256xf32> -> vector<16x256xf32>
    %92 = arith.addf %87, %91 : vector<16x256xf32>
    %c2_88 = arith.constant 2 : index
    %c0_89 = arith.constant 0 : index
    %93 = vector.load %arg20[%c2_88, %c0_89] : memref<18x256xbf16, #tpu.memory_space<vmem>>, vector<16x256xbf16>
    %c2_90 = arith.constant 2 : index
    %c0_91 = arith.constant 0 : index
    %c0_92 = arith.constant 0 : index
    %94 = vector.load %arg8[%c2_90, %c0_91, %c0_92] : memref<3x256x256xbf16, #tpu.memory_space<vmem>>, vector<1x256x256xbf16>
    %95 = vector.shape_cast %94 : vector<1x256x256xbf16> to vector<256x256xbf16>
    %cst_93 = arith.constant dense<0.000000e+00> : vector<16x256xf32>
    %96 = tpu.matmul %93, %95, %cst_93 {dimension_numbers = #tpu.dot_dimension_numbers<[1], [0], [0], [1], [0, 0, 1, 1], [], []>} : vector<16x256xbf16>, vector<256x256xbf16>, vector<16x256xf32> -> vector<16x256xf32>
    %97 = arith.addf %92, %96 : vector<16x256xf32>
    %c0_94 = arith.constant 0 : index
    %c0_95 = arith.constant 0 : index
    %98 = vector.load %arg10[%c0_94, %c0_95] : memref<256x128xf32, #tpu.memory_space<vmem>>, vector<256x128xf32>
    %c0_96 = arith.constant 0 : index
    %c0_97 = arith.constant 0 : index
    %99 = vector.load %arg11[%c0_96, %c0_97] : memref<128x256xf32, #tpu.memory_space<vmem>>, vector<128x256xf32>
    %cst_98 = arith.constant dense<0.000000e+00> : vector<256xf32>
    %100 = vector.multi_reduction <add>, %97, %cst_98 [0] : vector<16x256xf32> to vector<256xf32>
    %101 = vector.shape_cast %100 : vector<256xf32> to vector<1x256xf32>
    %cst_99 = arith.constant dense<0.000000e+00> : vector<1x128xf32>
    %102 = tpu.matmul %101, %98, %cst_99 {dimension_numbers = #tpu.dot_dimension_numbers<[1], [0], [0], [1], [0, 0, 1, 1], [], []>} : vector<1x256xf32>, vector<256x128xf32>, vector<1x128xf32> -> vector<1x128xf32>
    %cst_100 = arith.constant 1.562500e-02 : f32
    %103 = vector.broadcast %cst_100 : f32 to vector<1x128xf32>
    %104 = arith.mulf %102, %103 : vector<1x128xf32>
    %cst_101 = arith.constant dense<0.000000e+00> : vector<1x256xf32>
    %105 = tpu.matmul %104, %99, %cst_101 {dimension_numbers = #tpu.dot_dimension_numbers<[1], [0], [0], [1], [0, 0, 1, 1], [], []>} : vector<1x128xf32>, vector<128x256xf32>, vector<1x256xf32> -> vector<1x256xf32>
    %106 = vector.broadcast %105 : vector<1x256xf32> to vector<16x256xf32>
    %107 = arith.subf %97, %106 : vector<16x256xf32>
    %108 = arith.mulf %107, %107 : vector<16x256xf32>
    %cst_102 = arith.constant dense<0.000000e+00> : vector<256xf32>
    %109 = vector.multi_reduction <add>, %108, %cst_102 [0] : vector<16x256xf32> to vector<256xf32>
    %110 = vector.shape_cast %109 : vector<256xf32> to vector<1x256xf32>
    %cst_103 = arith.constant dense<0.000000e+00> : vector<1x128xf32>
    %111 = tpu.matmul %110, %98, %cst_103 {dimension_numbers = #tpu.dot_dimension_numbers<[1], [0], [0], [1], [0, 0, 1, 1], [], []>} : vector<1x256xf32>, vector<256x128xf32>, vector<1x128xf32> -> vector<1x128xf32>
    %cst_104 = arith.constant 1.562500e-02 : f32
    %112 = vector.broadcast %cst_104 : f32 to vector<1x128xf32>
    %113 = arith.mulf %111, %112 : vector<1x128xf32>
    %cst_105 = arith.constant 9.99999974E-6 : f32
    %114 = vector.broadcast %cst_105 : f32 to vector<1x128xf32>
    %115 = arith.addf %113, %114 : vector<1x128xf32>
    %116 = math.rsqrt %115 : vector<1x128xf32>
    %cst_106 = arith.constant dense<0.000000e+00> : vector<1x256xf32>
    %117 = tpu.matmul %116, %99, %cst_106 {dimension_numbers = #tpu.dot_dimension_numbers<[1], [0], [0], [1], [0, 0, 1, 1], [], []>} : vector<1x128xf32>, vector<128x256xf32>, vector<1x256xf32> -> vector<1x256xf32>
    %118 = vector.broadcast %117 : vector<1x256xf32> to vector<16x256xf32>
    %119 = arith.mulf %107, %118 : vector<16x256xf32>
    %c0_107 = arith.constant 0 : index
    %c0_108 = arith.constant 0 : index
    %120 = vector.load %arg9[%c0_107, %c0_108] : memref<2x256xf32, #tpu.memory_space<vmem>>, vector<1x256xf32>
    %121 = vector.broadcast %120 : vector<1x256xf32> to vector<16x256xf32>
    %122 = arith.mulf %119, %121 : vector<16x256xf32>
    %c1_109 = arith.constant 1 : index
    %c0_110 = arith.constant 0 : index
    %123 = vector.load %arg9[%c1_109, %c0_110] : memref<2x256xf32, #tpu.memory_space<vmem>>, vector<1x256xf32>
    %124 = vector.broadcast %123 : vector<1x256xf32> to vector<16x256xf32>
    %125 = arith.addf %122, %124 : vector<16x256xf32>
    %cst_111 = arith.constant 0.000000e+00 : f32
    %126 = vector.broadcast %cst_111 : f32 to vector<16x256xf32>
    %127 = arith.cmpf ogt, %125, %126 : vector<16x256xf32>
    %cst_112 = arith.constant 2.000000e-01 : f32
    %128 = vector.broadcast %cst_112 : f32 to vector<16x256xf32>
    %129 = arith.mulf %128, %125 : vector<16x256xf32>
    %130 = arith.select %127, %125, %129 : vector<16x256xi1>, vector<16x256xf32>
    %131 = vector.extract_strided_slice %130 {offsets = [0, 0], sizes = [1, 256], strides = [1, 1]} : vector<16x256xf32> to vector<1x256xf32>
    %132 = arith.truncf %131 : vector<1x256xf32> to vector<1x256xbf16>
    %c1_113 = arith.constant 1 : index
    %c0_114 = arith.constant 0 : index
    %c0_115 = arith.constant 0 : index
    %133 = vector.load %arg21[%c1_113, %c0_114, %c0_115] : memref<2x9x256xbf16, #tpu.memory_space<vmem>>, vector<1x1x256xbf16>
    %134 = vector.shape_cast %133 : vector<1x1x256xbf16> to vector<1x256xbf16>
    %135 = vector.shape_cast %132 : vector<1x256xbf16> to vector<1x1x256xbf16>
    tpu.vector_store %arg21[%c1_113, %c0_114, %c0_115], %135 {strides = array<i32>} : memref<2x9x256xbf16, #tpu.memory_space<vmem>>, vector<1x1x256xbf16>,
    %136 = vector.extract_strided_slice %130 {offsets = [1, 0], sizes = [1, 256], strides = [1, 1]} : vector<16x256xf32> to vector<1x256xf32>
    %137 = arith.truncf %136 : vector<1x256xf32> to vector<1x256xbf16>
    %c0_116 = arith.constant 0 : index
    %c1_117 = arith.constant 1 : index
    %c0_118 = arith.constant 0 : index
    %138 = vector.load %arg21[%c0_116, %c1_117, %c0_118] : memref<2x9x256xbf16, #tpu.memory_space<vmem>>, vector<1x1x256xbf16>
    %139 = vector.shape_cast %138 : vector<1x1x256xbf16> to vector<1x256xbf16>
    %140 = vector.shape_cast %137 : vector<1x256xbf16> to vector<1x1x256xbf16>
    tpu.vector_store %arg21[%c0_116, %c1_117, %c0_118], %140 {strides = array<i32>} : memref<2x9x256xbf16, #tpu.memory_space<vmem>>, vector<1x1x256xbf16>,
    %141 = vector.extract_strided_slice %130 {offsets = [2, 0], sizes = [1, 256], strides = [1, 1]} : vector<16x256xf32> to vector<1x256xf32>
    %142 = arith.truncf %141 : vector<1x256xf32> to vector<1x256xbf16>
    %c1_119 = arith.constant 1 : index
    %c1_120 = arith.constant 1 : index
    %c0_121 = arith.constant 0 : index
    %143 = vector.load %arg21[%c1_119, %c1_120, %c0_121] : memref<2x9x256xbf16, #tpu.memory_space<vmem>>, vector<1x1x256xbf16>
    %144 = vector.shape_cast %143 : vector<1x1x256xbf16> to vector<1x256xbf16>
    %145 = vector.shape_cast %142 : vector<1x256xbf16> to vector<1x1x256xbf16>
    tpu.vector_store %arg21[%c1_119, %c1_120, %c0_121], %145 {strides = array<i32>} : memref<2x9x256xbf16, #tpu.memory_space<vmem>>, vector<1x1x256xbf16>,
    %146 = vector.extract_strided_slice %130 {offsets = [3, 0], sizes = [1, 256], strides = [1, 1]} : vector<16x256xf32> to vector<1x256xf32>
    %147 = arith.truncf %146 : vector<1x256xf32> to vector<1x256xbf16>
    %c0_122 = arith.constant 0 : index
    %c2_123 = arith.constant 2 : index
    %c0_124 = arith.constant 0 : index
    %148 = vector.load %arg21[%c0_122, %c2_123, %c0_124] : memref<2x9x256xbf16, #tpu.memory_space<vmem>>, vector<1x1x256xbf16>
    %149 = vector.shape_cast %148 : vector<1x1x256xbf16> to vector<1x256xbf16>
    %150 = vector.shape_cast %147 : vector<1x256xbf16> to vector<1x1x256xbf16>
    tpu.vector_store %arg21[%c0_122, %c2_123, %c0_124], %150 {strides = array<i32>} : memref<2x9x256xbf16, #tpu.memory_space<vmem>>, vector<1x1x256xbf16>,
    %151 = vector.extract_strided_slice %130 {offsets = [4, 0], sizes = [1, 256], strides = [1, 1]} : vector<16x256xf32> to vector<1x256xf32>
    %152 = arith.truncf %151 : vector<1x256xf32> to vector<1x256xbf16>
    %c1_125 = arith.constant 1 : index
    %c2_126 = arith.constant 2 : index
    %c0_127 = arith.constant 0 : index
    %153 = vector.load %arg21[%c1_125, %c2_126, %c0_127] : memref<2x9x256xbf16, #tpu.memory_space<vmem>>, vector<1x1x256xbf16>
    %154 = vector.shape_cast %153 : vector<1x1x256xbf16> to vector<1x256xbf16>
    %155 = vector.shape_cast %152 : vector<1x256xbf16> to vector<1x1x256xbf16>
    tpu.vector_store %arg21[%c1_125, %c2_126, %c0_127], %155 {strides = array<i32>} : memref<2x9x256xbf16, #tpu.memory_space<vmem>>, vector<1x1x256xbf16>,
    %156 = vector.extract_strided_slice %130 {offsets = [5, 0], sizes = [1, 256], strides = [1, 1]} : vector<16x256xf32> to vector<1x256xf32>
    %157 = arith.truncf %156 : vector<1x256xf32> to vector<1x256xbf16>
    %c0_128 = arith.constant 0 : index
    %c3 = arith.constant 3 : index
    %c0_129 = arith.constant 0 : index
    %158 = vector.load %arg21[%c0_128, %c3, %c0_129] : memref<2x9x256xbf16, #tpu.memory_space<vmem>>, vector<1x1x256xbf16>
    %159 = vector.shape_cast %158 : vector<1x1x256xbf16> to vector<1x256xbf16>
    %160 = vector.shape_cast %157 : vector<1x256xbf16> to vector<1x1x256xbf16>
    tpu.vector_store %arg21[%c0_128, %c3, %c0_129], %160 {strides = array<i32>} : memref<2x9x256xbf16, #tpu.memory_space<vmem>>, vector<1x1x256xbf16>,
    %161 = vector.extract_strided_slice %130 {offsets = [6, 0], sizes = [1, 256], strides = [1, 1]} : vector<16x256xf32> to vector<1x256xf32>
    %162 = arith.truncf %161 : vector<1x256xf32> to vector<1x256xbf16>
    %c1_130 = arith.constant 1 : index
    %c3_131 = arith.constant 3 : index
    %c0_132 = arith.constant 0 : index
    %163 = vector.load %arg21[%c1_130, %c3_131, %c0_132] : memref<2x9x256xbf16, #tpu.memory_space<vmem>>, vector<1x1x256xbf16>
    %164 = vector.shape_cast %163 : vector<1x1x256xbf16> to vector<1x256xbf16>
    %165 = vector.shape_cast %162 : vector<1x256xbf16> to vector<1x1x256xbf16>
    tpu.vector_store %arg21[%c1_130, %c3_131, %c0_132], %165 {strides = array<i32>} : memref<2x9x256xbf16, #tpu.memory_space<vmem>>, vector<1x1x256xbf16>,
    %166 = vector.extract_strided_slice %130 {offsets = [7, 0], sizes = [1, 256], strides = [1, 1]} : vector<16x256xf32> to vector<1x256xf32>
    %167 = arith.truncf %166 : vector<1x256xf32> to vector<1x256xbf16>
    %c0_133 = arith.constant 0 : index
    %c4 = arith.constant 4 : index
    %c0_134 = arith.constant 0 : index
    %168 = vector.load %arg21[%c0_133, %c4, %c0_134] : memref<2x9x256xbf16, #tpu.memory_space<vmem>>, vector<1x1x256xbf16>
    %169 = vector.shape_cast %168 : vector<1x1x256xbf16> to vector<1x256xbf16>
    %170 = vector.shape_cast %167 : vector<1x256xbf16> to vector<1x1x256xbf16>
    tpu.vector_store %arg21[%c0_133, %c4, %c0_134], %170 {strides = array<i32>} : memref<2x9x256xbf16, #tpu.memory_space<vmem>>, vector<1x1x256xbf16>,
    %171 = vector.extract_strided_slice %130 {offsets = [8, 0], sizes = [1, 256], strides = [1, 1]} : vector<16x256xf32> to vector<1x256xf32>
    %172 = arith.truncf %171 : vector<1x256xf32> to vector<1x256xbf16>
    %c1_135 = arith.constant 1 : index
    %c4_136 = arith.constant 4 : index
    %c0_137 = arith.constant 0 : index
    %173 = vector.load %arg21[%c1_135, %c4_136, %c0_137] : memref<2x9x256xbf16, #tpu.memory_space<vmem>>, vector<1x1x256xbf16>
    %174 = vector.shape_cast %173 : vector<1x1x256xbf16> to vector<1x256xbf16>
    %175 = vector.shape_cast %172 : vector<1x256xbf16> to vector<1x1x256xbf16>
    tpu.vector_store %arg21[%c1_135, %c4_136, %c0_137], %175 {strides = array<i32>} : memref<2x9x256xbf16, #tpu.memory_space<vmem>>, vector<1x1x256xbf16>,
    %176 = vector.extract_strided_slice %130 {offsets = [9, 0], sizes = [1, 256], strides = [1, 1]} : vector<16x256xf32> to vector<1x256xf32>
    %177 = arith.truncf %176 : vector<1x256xf32> to vector<1x256xbf16>
    %c0_138 = arith.constant 0 : index
    %c5 = arith.constant 5 : index
    %c0_139 = arith.constant 0 : index
    %178 = vector.load %arg21[%c0_138, %c5, %c0_139] : memref<2x9x256xbf16, #tpu.memory_space<vmem>>, vector<1x1x256xbf16>
    %179 = vector.shape_cast %178 : vector<1x1x256xbf16> to vector<1x256xbf16>
    %180 = vector.shape_cast %177 : vector<1x256xbf16> to vector<1x1x256xbf16>
    tpu.vector_store %arg21[%c0_138, %c5, %c0_139], %180 {strides = array<i32>} : memref<2x9x256xbf16, #tpu.memory_space<vmem>>, vector<1x1x256xbf16>,
    %181 = vector.extract_strided_slice %130 {offsets = [10, 0], sizes = [1, 256], strides = [1, 1]} : vector<16x256xf32> to vector<1x256xf32>
    %182 = arith.truncf %181 : vector<1x256xf32> to vector<1x256xbf16>
    %c1_140 = arith.constant 1 : index
    %c5_141 = arith.constant 5 : index
    %c0_142 = arith.constant 0 : index
    %183 = vector.load %arg21[%c1_140, %c5_141, %c0_142] : memref<2x9x256xbf16, #tpu.memory_space<vmem>>, vector<1x1x256xbf16>
    %184 = vector.shape_cast %183 : vector<1x1x256xbf16> to vector<1x256xbf16>
    %185 = vector.shape_cast %182 : vector<1x256xbf16> to vector<1x1x256xbf16>
    tpu.vector_store %arg21[%c1_140, %c5_141, %c0_142], %185 {strides = array<i32>} : memref<2x9x256xbf16, #tpu.memory_space<vmem>>, vector<1x1x256xbf16>,
    %186 = vector.extract_strided_slice %130 {offsets = [11, 0], sizes = [1, 256], strides = [1, 1]} : vector<16x256xf32> to vector<1x256xf32>
    %187 = arith.truncf %186 : vector<1x256xf32> to vector<1x256xbf16>
    %c0_143 = arith.constant 0 : index
    %c6 = arith.constant 6 : index
    %c0_144 = arith.constant 0 : index
    %188 = vector.load %arg21[%c0_143, %c6, %c0_144] : memref<2x9x256xbf16, #tpu.memory_space<vmem>>, vector<1x1x256xbf16>
    %189 = vector.shape_cast %188 : vector<1x1x256xbf16> to vector<1x256xbf16>
    %190 = vector.shape_cast %187 : vector<1x256xbf16> to vector<1x1x256xbf16>
    tpu.vector_store %arg21[%c0_143, %c6, %c0_144], %190 {strides = array<i32>} : memref<2x9x256xbf16, #tpu.memory_space<vmem>>, vector<1x1x256xbf16>,
    %191 = vector.extract_strided_slice %130 {offsets = [12, 0], sizes = [1, 256], strides = [1, 1]} : vector<16x256xf32> to vector<1x256xf32>
    %192 = arith.truncf %191 : vector<1x256xf32> to vector<1x256xbf16>
    %c1_145 = arith.constant 1 : index
    %c6_146 = arith.constant 6 : index
    %c0_147 = arith.constant 0 : index
    %193 = vector.load %arg21[%c1_145, %c6_146, %c0_147] : memref<2x9x256xbf16, #tpu.memory_space<vmem>>, vector<1x1x256xbf16>
    %194 = vector.shape_cast %193 : vector<1x1x256xbf16> to vector<1x256xbf16>
    %195 = vector.shape_cast %192 : vector<1x256xbf16> to vector<1x1x256xbf16>
    tpu.vector_store %arg21[%c1_145, %c6_146, %c0_147], %195 {strides = array<i32>} : memref<2x9x256xbf16, #tpu.memory_space<vmem>>, vector<1x1x256xbf16>,
    %196 = vector.extract_strided_slice %130 {offsets = [13, 0], sizes = [1, 256], strides = [1, 1]} : vector<16x256xf32> to vector<1x256xf32>
    %197 = arith.truncf %196 : vector<1x256xf32> to vector<1x256xbf16>
    %c0_148 = arith.constant 0 : index
    %c7 = arith.constant 7 : index
    %c0_149 = arith.constant 0 : index
    %198 = vector.load %arg21[%c0_148, %c7, %c0_149] : memref<2x9x256xbf16, #tpu.memory_space<vmem>>, vector<1x1x256xbf16>
    %199 = vector.shape_cast %198 : vector<1x1x256xbf16> to vector<1x256xbf16>
    %200 = vector.shape_cast %197 : vector<1x256xbf16> to vector<1x1x256xbf16>
    tpu.vector_store %arg21[%c0_148, %c7, %c0_149], %200 {strides = array<i32>} : memref<2x9x256xbf16, #tpu.memory_space<vmem>>, vector<1x1x256xbf16>,
    %201 = vector.extract_strided_slice %130 {offsets = [14, 0], sizes = [1, 256], strides = [1, 1]} : vector<16x256xf32> to vector<1x256xf32>
    %202 = arith.truncf %201 : vector<1x256xf32> to vector<1x256xbf16>
    %c1_150 = arith.constant 1 : index
    %c7_151 = arith.constant 7 : index
    %c0_152 = arith.constant 0 : index
    %203 = vector.load %arg21[%c1_150, %c7_151, %c0_152] : memref<2x9x256xbf16, #tpu.memory_space<vmem>>, vector<1x1x256xbf16>
    %204 = vector.shape_cast %203 : vector<1x1x256xbf16> to vector<1x256xbf16>
    %205 = vector.shape_cast %202 : vector<1x256xbf16> to vector<1x1x256xbf16>
    tpu.vector_store %arg21[%c1_150, %c7_151, %c0_152], %205 {strides = array<i32>} : memref<2x9x256xbf16, #tpu.memory_space<vmem>>, vector<1x1x256xbf16>,
    %206 = vector.extract_strided_slice %130 {offsets = [15, 0], sizes = [1, 256], strides = [1, 1]} : vector<16x256xf32> to vector<1x256xf32>
    %207 = arith.truncf %206 : vector<1x256xf32> to vector<1x256xbf16>
    %c0_153 = arith.constant 0 : index
    %c8 = arith.constant 8 : index
    %c0_154 = arith.constant 0 : index
    %208 = vector.load %arg21[%c0_153, %c8, %c0_154] : memref<2x9x256xbf16, #tpu.memory_space<vmem>>, vector<1x1x256xbf16>
    %209 = vector.shape_cast %208 : vector<1x1x256xbf16> to vector<1x256xbf16>
    %210 = vector.shape_cast %207 : vector<1x256xbf16> to vector<1x1x256xbf16>
    tpu.vector_store %arg21[%c0_153, %c8, %c0_154], %210 {strides = array<i32>} : memref<2x9x256xbf16, #tpu.memory_space<vmem>>, vector<1x1x256xbf16>,
    %c0_155 = arith.constant 0 : index
    %c0_156 = arith.constant 0 : index
    %c0_157 = arith.constant 0 : index
    %211 = vector.load %arg21[%c0_155, %c0_156, %c0_157] : memref<2x9x256xbf16, #tpu.memory_space<vmem>>, vector<1x8x256xbf16>
    %212 = vector.shape_cast %211 : vector<1x8x256xbf16> to vector<8x256xbf16>
    %c0_158 = arith.constant 0 : index
    %c0_159 = arith.constant 0 : index
    %c0_160 = arith.constant 0 : index
    %213 = vector.load %arg12[%c0_158, %c0_159, %c0_160] : memref<4x256x256xbf16, #tpu.memory_space<vmem>>, vector<1x256x256xbf16>
    %214 = vector.shape_cast %213 : vector<1x256x256xbf16> to vector<256x256xbf16>
    %cst_161 = arith.constant dense<0.000000e+00> : vector<8x256xf32>
    %215 = tpu.matmul %212, %214, %cst_161 {dimension_numbers = #tpu.dot_dimension_numbers<[1], [0], [0], [1], [0, 0, 1, 1], [], []>} : vector<8x256xbf16>, vector<256x256xbf16>, vector<8x256xf32> -> vector<8x256xf32>
    %c1_162 = arith.constant 1 : index
    %c0_163 = arith.constant 0 : index
    %c0_164 = arith.constant 0 : index
    %216 = vector.load %arg21[%c1_162, %c0_163, %c0_164] : memref<2x9x256xbf16, #tpu.memory_space<vmem>>, vector<1x8x256xbf16>
    %217 = vector.shape_cast %216 : vector<1x8x256xbf16> to vector<8x256xbf16>
    %c1_165 = arith.constant 1 : index
    %c0_166 = arith.constant 0 : index
    %c0_167 = arith.constant 0 : index
    %218 = vector.load %arg12[%c1_165, %c0_166, %c0_167] : memref<4x256x256xbf16, #tpu.memory_space<vmem>>, vector<1x256x256xbf16>
    %219 = vector.shape_cast %218 : vector<1x256x256xbf16> to vector<256x256xbf16>
    %cst_168 = arith.constant dense<0.000000e+00> : vector<8x256xf32>
    %220 = tpu.matmul %217, %219, %cst_168 {dimension_numbers = #tpu.dot_dimension_numbers<[1], [0], [0], [1], [0, 0, 1, 1], [], []>} : vector<8x256xbf16>, vector<256x256xbf16>, vector<8x256xf32> -> vector<8x256xf32>
    %221 = arith.addf %215, %220 : vector<8x256xf32>
    %c0_169 = arith.constant 0 : index
    %c1_170 = arith.constant 1 : index
    %c0_171 = arith.constant 0 : index
    %222 = vector.load %arg21[%c0_169, %c1_170, %c0_171] : memref<2x9x256xbf16, #tpu.memory_space<vmem>>, vector<1x8x256xbf16>
    %223 = vector.shape_cast %222 : vector<1x8x256xbf16> to vector<8x256xbf16>
    %c2_172 = arith.constant 2 : index
    %c0_173 = arith.constant 0 : index
    %c0_174 = arith.constant 0 : index
    %224 = vector.load %arg12[%c2_172, %c0_173, %c0_174] : memref<4x256x256xbf16, #tpu.memory_space<vmem>>, vector<1x256x256xbf16>
    %225 = vector.shape_cast %224 : vector<1x256x256xbf16> to vector<256x256xbf16>
    %cst_175 = arith.constant dense<0.000000e+00> : vector<8x256xf32>
    %226 = tpu.matmul %223, %225, %cst_175 {dimension_numbers = #tpu.dot_dimension_numbers<[1], [0], [0], [1], [0, 0, 1, 1], [], []>} : vector<8x256xbf16>, vector<256x256xbf16>, vector<8x256xf32> -> vector<8x256xf32>
    %227 = arith.addf %221, %226 : vector<8x256xf32>
    %c1_176 = arith.constant 1 : index
    %c1_177 = arith.constant 1 : index
    %c0_178 = arith.constant 0 : index
    %228 = vector.load %arg21[%c1_176, %c1_177, %c0_178] : memref<2x9x256xbf16, #tpu.memory_space<vmem>>, vector<1x8x256xbf16>
    %229 = vector.shape_cast %228 : vector<1x8x256xbf16> to vector<8x256xbf16>
    %c3_179 = arith.constant 3 : index
    %c0_180 = arith.constant 0 : index
    %c0_181 = arith.constant 0 : index
    %230 = vector.load %arg12[%c3_179, %c0_180, %c0_181] : memref<4x256x256xbf16, #tpu.memory_space<vmem>>, vector<1x256x256xbf16>
    %231 = vector.shape_cast %230 : vector<1x256x256xbf16> to vector<256x256xbf16>
    %cst_182 = arith.constant dense<0.000000e+00> : vector<8x256xf32>
    %232 = tpu.matmul %229, %231, %cst_182 {dimension_numbers = #tpu.dot_dimension_numbers<[1], [0], [0], [1], [0, 0, 1, 1], [], []>} : vector<8x256xbf16>, vector<256x256xbf16>, vector<8x256xf32> -> vector<8x256xf32>
    %233 = arith.addf %227, %232 : vector<8x256xf32>
    %c0_183 = arith.constant 0 : index
    %c0_184 = arith.constant 0 : index
    %234 = vector.load %arg14[%c0_183, %c0_184] : memref<256x128xf32, #tpu.memory_space<vmem>>, vector<256x128xf32>
    %c0_185 = arith.constant 0 : index
    %c0_186 = arith.constant 0 : index
    %235 = vector.load %arg15[%c0_185, %c0_186] : memref<128x256xf32, #tpu.memory_space<vmem>>, vector<128x256xf32>
    %cst_187 = arith.constant dense<0.000000e+00> : vector<256xf32>
    %236 = vector.multi_reduction <add>, %233, %cst_187 [0] : vector<8x256xf32> to vector<256xf32>
    %237 = vector.shape_cast %236 : vector<256xf32> to vector<1x256xf32>
    %cst_188 = arith.constant dense<0.000000e+00> : vector<1x128xf32>
    %238 = tpu.matmul %237, %234, %cst_188 {dimension_numbers = #tpu.dot_dimension_numbers<[1], [0], [0], [1], [0, 0, 1, 1], [], []>} : vector<1x256xf32>, vector<256x128xf32>, vector<1x128xf32> -> vector<1x128xf32>
    %cst_189 = arith.constant 3.125000e-02 : f32
    %239 = vector.broadcast %cst_189 : f32 to vector<1x128xf32>
    %240 = arith.mulf %238, %239 : vector<1x128xf32>
    %cst_190 = arith.constant dense<0.000000e+00> : vector<1x256xf32>
    %241 = tpu.matmul %240, %235, %cst_190 {dimension_numbers = #tpu.dot_dimension_numbers<[1], [0], [0], [1], [0, 0, 1, 1], [], []>} : vector<1x128xf32>, vector<128x256xf32>, vector<1x256xf32> -> vector<1x256xf32>
    %242 = vector.broadcast %241 : vector<1x256xf32> to vector<8x256xf32>
    %243 = arith.subf %233, %242 : vector<8x256xf32>
    %244 = arith.mulf %243, %243 : vector<8x256xf32>
    %cst_191 = arith.constant dense<0.000000e+00> : vector<256xf32>
    %245 = vector.multi_reduction <add>, %244, %cst_191 [0] : vector<8x256xf32> to vector<256xf32>
    %246 = vector.shape_cast %245 : vector<256xf32> to vector<1x256xf32>
    %cst_192 = arith.constant dense<0.000000e+00> : vector<1x128xf32>
    %247 = tpu.matmul %246, %234, %cst_192 {dimension_numbers = #tpu.dot_dimension_numbers<[1], [0], [0], [1], [0, 0, 1, 1], [], []>} : vector<1x256xf32>, vector<256x128xf32>, vector<1x128xf32> -> vector<1x128xf32>
    %cst_193 = arith.constant 3.125000e-02 : f32
    %248 = vector.broadcast %cst_193 : f32 to vector<1x128xf32>
    %249 = arith.mulf %247, %248 : vector<1x128xf32>
    %cst_194 = arith.constant 9.99999974E-6 : f32
    %250 = vector.broadcast %cst_194 : f32 to vector<1x128xf32>
    %251 = arith.addf %249, %250 : vector<1x128xf32>
    %252 = math.rsqrt %251 : vector<1x128xf32>
    %cst_195 = arith.constant dense<0.000000e+00> : vector<1x256xf32>
    %253 = tpu.matmul %252, %235, %cst_195 {dimension_numbers = #tpu.dot_dimension_numbers<[1], [0], [0], [1], [0, 0, 1, 1], [], []>} : vector<1x128xf32>, vector<128x256xf32>, vector<1x256xf32> -> vector<1x256xf32>
    %254 = vector.broadcast %253 : vector<1x256xf32> to vector<8x256xf32>
    %255 = arith.mulf %243, %254 : vector<8x256xf32>
    %c0_196 = arith.constant 0 : index
    %c0_197 = arith.constant 0 : index
    %256 = vector.load %arg13[%c0_196, %c0_197] : memref<2x256xf32, #tpu.memory_space<vmem>>, vector<1x256xf32>
    %257 = vector.broadcast %256 : vector<1x256xf32> to vector<8x256xf32>
    %258 = arith.mulf %255, %257 : vector<8x256xf32>
    %c1_198 = arith.constant 1 : index
    %c0_199 = arith.constant 0 : index
    %259 = vector.load %arg13[%c1_198, %c0_199] : memref<2x256xf32, #tpu.memory_space<vmem>>, vector<1x256xf32>
    %260 = vector.broadcast %259 : vector<1x256xf32> to vector<8x256xf32>
    %261 = arith.addf %258, %260 : vector<8x256xf32>
    %cst_200 = arith.constant 0.000000e+00 : f32
    %262 = vector.broadcast %cst_200 : f32 to vector<8x256xf32>
    %263 = arith.cmpf ogt, %261, %262 : vector<8x256xf32>
    %cst_201 = arith.constant 2.000000e-01 : f32
    %264 = vector.broadcast %cst_201 : f32 to vector<8x256xf32>
    %265 = arith.mulf %264, %261 : vector<8x256xf32>
    %266 = arith.select %263, %261, %265 : vector<8x256xi1>, vector<8x256xf32>
    %267 = vector.extract_strided_slice %266 {offsets = [0, 0], sizes = [1, 256], strides = [1, 1]} : vector<8x256xf32> to vector<1x256xf32>
    %268 = arith.truncf %267 : vector<1x256xf32> to vector<1x256xbf16>
    %c0_202 = arith.constant 0 : index
    %c0_203 = arith.constant 0 : index
    %c0_204 = arith.constant 0 : index
    %269 = vector.load %arg22[%c0_202, %c0_203, %c0_204] : memref<2x4x256xbf16, #tpu.memory_space<vmem>>, vector<1x1x256xbf16>
    %270 = vector.shape_cast %269 : vector<1x1x256xbf16> to vector<1x256xbf16>
    %271 = vector.shape_cast %268 : vector<1x256xbf16> to vector<1x1x256xbf16>
    tpu.vector_store %arg22[%c0_202, %c0_203, %c0_204], %271 {strides = array<i32>} : memref<2x4x256xbf16, #tpu.memory_space<vmem>>, vector<1x1x256xbf16>,
    %272 = vector.extract_strided_slice %266 {offsets = [1, 0], sizes = [1, 256], strides = [1, 1]} : vector<8x256xf32> to vector<1x256xf32>
    %273 = arith.truncf %272 : vector<1x256xf32> to vector<1x256xbf16>
    %c1_205 = arith.constant 1 : index
    %c0_206 = arith.constant 0 : index
    %c0_207 = arith.constant 0 : index
    %274 = vector.load %arg22[%c1_205, %c0_206, %c0_207] : memref<2x4x256xbf16, #tpu.memory_space<vmem>>, vector<1x1x256xbf16>
    %275 = vector.shape_cast %274 : vector<1x1x256xbf16> to vector<1x256xbf16>
    %276 = vector.shape_cast %273 : vector<1x256xbf16> to vector<1x1x256xbf16>
    tpu.vector_store %arg22[%c1_205, %c0_206, %c0_207], %276 {strides = array<i32>} : memref<2x4x256xbf16, #tpu.memory_space<vmem>>, vector<1x1x256xbf16>,
    %277 = vector.extract_strided_slice %266 {offsets = [2, 0], sizes = [1, 256], strides = [1, 1]} : vector<8x256xf32> to vector<1x256xf32>
    %278 = arith.truncf %277 : vector<1x256xf32> to vector<1x256xbf16>
    %c0_208 = arith.constant 0 : index
    %c1_209 = arith.constant 1 : index
    %c0_210 = arith.constant 0 : index
    %279 = vector.load %arg22[%c0_208, %c1_209, %c0_210] : memref<2x4x256xbf16, #tpu.memory_space<vmem>>, vector<1x1x256xbf16>
    %280 = vector.shape_cast %279 : vector<1x1x256xbf16> to vector<1x256xbf16>
    %281 = vector.shape_cast %278 : vector<1x256xbf16> to vector<1x1x256xbf16>
    tpu.vector_store %arg22[%c0_208, %c1_209, %c0_210], %281 {strides = array<i32>} : memref<2x4x256xbf16, #tpu.memory_space<vmem>>, vector<1x1x256xbf16>,
    %282 = vector.extract_strided_slice %266 {offsets = [3, 0], sizes = [1, 256], strides = [1, 1]} : vector<8x256xf32> to vector<1x256xf32>
    %283 = arith.truncf %282 : vector<1x256xf32> to vector<1x256xbf16>
    %c1_211 = arith.constant 1 : index
    %c1_212 = arith.constant 1 : index
    %c0_213 = arith.constant 0 : index
    %284 = vector.load %arg22[%c1_211, %c1_212, %c0_213] : memref<2x4x256xbf16, #tpu.memory_space<vmem>>, vector<1x1x256xbf16>
    %285 = vector.shape_cast %284 : vector<1x1x256xbf16> to vector<1x256xbf16>
    %286 = vector.shape_cast %283 : vector<1x256xbf16> to vector<1x1x256xbf16>
    tpu.vector_store %arg22[%c1_211, %c1_212, %c0_213], %286 {strides = array<i32>} : memref<2x4x256xbf16, #tpu.memory_space<vmem>>, vector<1x1x256xbf16>,
    %287 = vector.extract_strided_slice %266 {offsets = [4, 0], sizes = [1, 256], strides = [1, 1]} : vector<8x256xf32> to vector<1x256xf32>
    %288 = arith.truncf %287 : vector<1x256xf32> to vector<1x256xbf16>
    %c0_214 = arith.constant 0 : index
    %c2_215 = arith.constant 2 : index
    %c0_216 = arith.constant 0 : index
    %289 = vector.load %arg22[%c0_214, %c2_215, %c0_216] : memref<2x4x256xbf16, #tpu.memory_space<vmem>>, vector<1x1x256xbf16>
    %290 = vector.shape_cast %289 : vector<1x1x256xbf16> to vector<1x256xbf16>
    %291 = vector.shape_cast %288 : vector<1x256xbf16> to vector<1x1x256xbf16>
    tpu.vector_store %arg22[%c0_214, %c2_215, %c0_216], %291 {strides = array<i32>} : memref<2x4x256xbf16, #tpu.memory_space<vmem>>, vector<1x1x256xbf16>,
    %292 = vector.extract_strided_slice %266 {offsets = [5, 0], sizes = [1, 256], strides = [1, 1]} : vector<8x256xf32> to vector<1x256xf32>
    %293 = arith.truncf %292 : vector<1x256xf32> to vector<1x256xbf16>
    %c1_217 = arith.constant 1 : index
    %c2_218 = arith.constant 2 : index
    %c0_219 = arith.constant 0 : index
    %294 = vector.load %arg22[%c1_217, %c2_218, %c0_219] : memref<2x4x256xbf16, #tpu.memory_space<vmem>>, vector<1x1x256xbf16>
    %295 = vector.shape_cast %294 : vector<1x1x256xbf16> to vector<1x256xbf16>
    %296 = vector.shape_cast %293 : vector<1x256xbf16> to vector<1x1x256xbf16>
    tpu.vector_store %arg22[%c1_217, %c2_218, %c0_219], %296 {strides = array<i32>} : memref<2x4x256xbf16, #tpu.memory_space<vmem>>, vector<1x1x256xbf16>,
    %297 = vector.extract_strided_slice %266 {offsets = [6, 0], sizes = [1, 256], strides = [1, 1]} : vector<8x256xf32> to vector<1x256xf32>
    %298 = arith.truncf %297 : vector<1x256xf32> to vector<1x256xbf16>
    %c0_220 = arith.constant 0 : index
    %c3_221 = arith.constant 3 : index
    %c0_222 = arith.constant 0 : index
    %299 = vector.load %arg22[%c0_220, %c3_221, %c0_222] : memref<2x4x256xbf16, #tpu.memory_space<vmem>>, vector<1x1x256xbf16>
    %300 = vector.shape_cast %299 : vector<1x1x256xbf16> to vector<1x256xbf16>
    %301 = vector.shape_cast %298 : vector<1x256xbf16> to vector<1x1x256xbf16>
    tpu.vector_store %arg22[%c0_220, %c3_221, %c0_222], %301 {strides = array<i32>} : memref<2x4x256xbf16, #tpu.memory_space<vmem>>, vector<1x1x256xbf16>,
    %302 = vector.extract_strided_slice %266 {offsets = [7, 0], sizes = [1, 256], strides = [1, 1]} : vector<8x256xf32> to vector<1x256xf32>
    %303 = arith.truncf %302 : vector<1x256xf32> to vector<1x256xbf16>
    %c1_223 = arith.constant 1 : index
    %c3_224 = arith.constant 3 : index
    %c0_225 = arith.constant 0 : index
    %304 = vector.load %arg22[%c1_223, %c3_224, %c0_225] : memref<2x4x256xbf16, #tpu.memory_space<vmem>>, vector<1x1x256xbf16>
    %305 = vector.shape_cast %304 : vector<1x1x256xbf16> to vector<1x256xbf16>
    %306 = vector.shape_cast %303 : vector<1x256xbf16> to vector<1x1x256xbf16>
    tpu.vector_store %arg22[%c1_223, %c3_224, %c0_225], %306 {strides = array<i32>} : memref<2x4x256xbf16, #tpu.memory_space<vmem>>, vector<1x1x256xbf16>,
    %c0_226 = arith.constant 0 : index
    %c0_227 = arith.constant 0 : index
    %c0_228 = arith.constant 0 : index
    %307 = vector.load %arg22[%c0_226, %c0_227, %c0_228] : memref<2x4x256xbf16, #tpu.memory_space<vmem>>, vector<1x3x256xbf16>
    %308 = vector.shape_cast %307 : vector<1x3x256xbf16> to vector<3x256xbf16>
    %c0_229 = arith.constant 0 : index
    %c0_230 = arith.constant 0 : index
    %c0_231 = arith.constant 0 : index
    %309 = vector.load %arg16[%c0_229, %c0_230, %c0_231] : memref<4x256x128xbf16, #tpu.memory_space<vmem>>, vector<1x256x128xbf16>
    %310 = vector.shape_cast %309 : vector<1x256x128xbf16> to vector<256x128xbf16>
    %cst_232 = arith.constant dense<0.000000e+00> : vector<3x128xf32>
    %311 = tpu.matmul %308, %310, %cst_232 {dimension_numbers = #tpu.dot_dimension_numbers<[1], [0], [0], [1], [0, 0, 1, 1], [], []>} : vector<3x256xbf16>, vector<256x128xbf16>, vector<3x128xf32> -> vector<3x128xf32>
    %c1_233 = arith.constant 1 : index
    %c0_234 = arith.constant 0 : index
    %c0_235 = arith.constant 0 : index
    %312 = vector.load %arg22[%c1_233, %c0_234, %c0_235] : memref<2x4x256xbf16, #tpu.memory_space<vmem>>, vector<1x3x256xbf16>
    %313 = vector.shape_cast %312 : vector<1x3x256xbf16> to vector<3x256xbf16>
    %c1_236 = arith.constant 1 : index
    %c0_237 = arith.constant 0 : index
    %c0_238 = arith.constant 0 : index
    %314 = vector.load %arg16[%c1_236, %c0_237, %c0_238] : memref<4x256x128xbf16, #tpu.memory_space<vmem>>, vector<1x256x128xbf16>
    %315 = vector.shape_cast %314 : vector<1x256x128xbf16> to vector<256x128xbf16>
    %cst_239 = arith.constant dense<0.000000e+00> : vector<3x128xf32>
    %316 = tpu.matmul %313, %315, %cst_239 {dimension_numbers = #tpu.dot_dimension_numbers<[1], [0], [0], [1], [0, 0, 1, 1], [], []>} : vector<3x256xbf16>, vector<256x128xbf16>, vector<3x128xf32> -> vector<3x128xf32>
    %317 = arith.addf %311, %316 : vector<3x128xf32>
    %c0_240 = arith.constant 0 : index
    %c1_241 = arith.constant 1 : index
    %c0_242 = arith.constant 0 : index
    %318 = vector.load %arg22[%c0_240, %c1_241, %c0_242] : memref<2x4x256xbf16, #tpu.memory_space<vmem>>, vector<1x3x256xbf16>
    %319 = vector.shape_cast %318 : vector<1x3x256xbf16> to vector<3x256xbf16>
    %c2_243 = arith.constant 2 : index
    %c0_244 = arith.constant 0 : index
    %c0_245 = arith.constant 0 : index
    %320 = vector.load %arg16[%c2_243, %c0_244, %c0_245] : memref<4x256x128xbf16, #tpu.memory_space<vmem>>, vector<1x256x128xbf16>
    %321 = vector.shape_cast %320 : vector<1x256x128xbf16> to vector<256x128xbf16>
    %cst_246 = arith.constant dense<0.000000e+00> : vector<3x128xf32>
    %322 = tpu.matmul %319, %321, %cst_246 {dimension_numbers = #tpu.dot_dimension_numbers<[1], [0], [0], [1], [0, 0, 1, 1], [], []>} : vector<3x256xbf16>, vector<256x128xbf16>, vector<3x128xf32> -> vector<3x128xf32>
    %323 = arith.addf %317, %322 : vector<3x128xf32>
    %c1_247 = arith.constant 1 : index
    %c1_248 = arith.constant 1 : index
    %c0_249 = arith.constant 0 : index
    %324 = vector.load %arg22[%c1_247, %c1_248, %c0_249] : memref<2x4x256xbf16, #tpu.memory_space<vmem>>, vector<1x3x256xbf16>
    %325 = vector.shape_cast %324 : vector<1x3x256xbf16> to vector<3x256xbf16>
    %c3_250 = arith.constant 3 : index
    %c0_251 = arith.constant 0 : index
    %c0_252 = arith.constant 0 : index
    %326 = vector.load %arg16[%c3_250, %c0_251, %c0_252] : memref<4x256x128xbf16, #tpu.memory_space<vmem>>, vector<1x256x128xbf16>
    %327 = vector.shape_cast %326 : vector<1x256x128xbf16> to vector<256x128xbf16>
    %cst_253 = arith.constant dense<0.000000e+00> : vector<3x128xf32>
    %328 = tpu.matmul %325, %327, %cst_253 {dimension_numbers = #tpu.dot_dimension_numbers<[1], [0], [0], [1], [0, 0, 1, 1], [], []>} : vector<3x256xbf16>, vector<256x128xbf16>, vector<3x128xf32> -> vector<3x128xf32>
    %329 = arith.addf %323, %328 : vector<3x128xf32>
    %c0_254 = arith.constant 0 : index
    %c0_255 = arith.constant 0 : index
    %330 = vector.load %arg17[%c0_254, %c0_255] : memref<1x128xf32, #tpu.memory_space<vmem>>, vector<1x128xf32>
    %331 = vector.broadcast %330 : vector<1x128xf32> to vector<3x128xf32>
    %332 = arith.addf %329, %331 : vector<3x128xf32>
    %c0_256 = arith.constant 0 : index
    %c0_257 = arith.constant 0 : index
    %c0_258 = arith.constant 0 : index
    %333 = vector.load %arg18[%c0_256, %c0_257, %c0_258] : memref<1x3x128xf32, #tpu.memory_space<vmem>>, vector<1x3x128xf32>
    %334 = vector.shape_cast %333 : vector<1x3x128xf32> to vector<3x128xf32>
    %335 = vector.shape_cast %332 : vector<3x128xf32> to vector<1x3x128xf32>
    tpu.vector_store %arg18[%c0_256, %c0_257, %c0_258], %335 {strides = array<i32>} : memref<1x3x128xf32, #tpu.memory_space<vmem>>, vector<1x3x128xf32>,
    return
  }
  func.func @transform_0(%arg0: i32) -> (i32, i32, i32) {
    %c0_i32 = arith.constant 0 : i32
    %c0_i32_0 = arith.constant 0 : i32
    %c0_i32_1 = arith.constant 0 : i32
    return %arg0, %c0_i32, %c0_i32_0 : i32, i32, i32
  }
  func.func @transform_1(%arg0: i32) -> (i32, i32, i32) {
    %c0_i32 = arith.constant 0 : i32
    %c0_i32_0 = arith.constant 0 : i32
    %c0_i32_1 = arith.constant 0 : i32
    %c0_i32_2 = arith.constant 0 : i32
    return %c0_i32, %c0_i32_0, %c0_i32_1 : i32, i32, i32
  }
  func.func @transform_2(%arg0: i32) -> (i32, i32) {
    %c0_i32 = arith.constant 0 : i32
    %c0_i32_0 = arith.constant 0 : i32
    %c0_i32_1 = arith.constant 0 : i32
    return %c0_i32, %c0_i32_0 : i32, i32
  }
  func.func @transform_3(%arg0: i32) -> (i32, i32, i32) {
    %c0_i32 = arith.constant 0 : i32
    %c0_i32_0 = arith.constant 0 : i32
    %c0_i32_1 = arith.constant 0 : i32
    %c0_i32_2 = arith.constant 0 : i32
    return %c0_i32, %c0_i32_0, %c0_i32_1 : i32, i32, i32
  }
  func.func @transform_4(%arg0: i32) -> (i32, i32) {
    %c0_i32 = arith.constant 0 : i32
    %c0_i32_0 = arith.constant 0 : i32
    %c0_i32_1 = arith.constant 0 : i32
    return %c0_i32, %c0_i32_0 : i32, i32
  }
  func.func @transform_5(%arg0: i32) -> (i32, i32) {
    %c0_i32 = arith.constant 0 : i32
    %c0_i32_0 = arith.constant 0 : i32
    %c0_i32_1 = arith.constant 0 : i32
    return %c0_i32, %c0_i32_0 : i32, i32
  }
  func.func @transform_6(%arg0: i32) -> (i32, i32) {
    %c0_i32 = arith.constant 0 : i32
    %c0_i32_0 = arith.constant 0 : i32
    %c0_i32_1 = arith.constant 0 : i32
    return %c0_i32, %c0_i32_0 : i32, i32
  }
  func.func @transform_7(%arg0: i32) -> (i32, i32, i32) {
    %c0_i32 = arith.constant 0 : i32
    %c0_i32_0 = arith.constant 0 : i32
    %c0_i32_1 = arith.constant 0 : i32
    %c0_i32_2 = arith.constant 0 : i32
    return %c0_i32, %c0_i32_0, %c0_i32_1 : i32, i32, i32
  }
  func.func @transform_8(%arg0: i32) -> (i32, i32) {
    %c0_i32 = arith.constant 0 : i32
    %c0_i32_0 = arith.constant 0 : i32
    %c0_i32_1 = arith.constant 0 : i32
    return %c0_i32, %c0_i32_0 : i32, i32
  }
  func.func @transform_9(%arg0: i32) -> (i32, i32) {
    %c0_i32 = arith.constant 0 : i32
    %c0_i32_0 = arith.constant 0 : i32
    %c0_i32_1 = arith.constant 0 : i32
    return %c0_i32, %c0_i32_0 : i32, i32
  }
  func.func @transform_10(%arg0: i32) -> (i32, i32) {
    %c0_i32 = arith.constant 0 : i32
    %c0_i32_0 = arith.constant 0 : i32
    %c0_i32_1 = arith.constant 0 : i32
    return %c0_i32, %c0_i32_0 : i32, i32
  }
  func.func @transform_11(%arg0: i32) -> (i32, i32, i32) {
    %c0_i32 = arith.constant 0 : i32
    %c0_i32_0 = arith.constant 0 : i32
    %c0_i32_1 = arith.constant 0 : i32
    %c0_i32_2 = arith.constant 0 : i32
    return %c0_i32, %c0_i32_0, %c0_i32_1 : i32, i32, i32
  }
  func.func @transform_12(%arg0: i32) -> (i32, i32) {
    %c0_i32 = arith.constant 0 : i32
    %c0_i32_0 = arith.constant 0 : i32
    %c0_i32_1 = arith.constant 0 : i32
    return %c0_i32, %c0_i32_0 : i32, i32
  }
  func.func @transform_13(%arg0: i32) -> (i32, i32) {
    %c0_i32 = arith.constant 0 : i32
    %c0_i32_0 = arith.constant 0 : i32
    %c0_i32_1 = arith.constant 0 : i32
    return %c0_i32, %c0_i32_0 : i32, i32
  }
  func.func @transform_14(%arg0: i32) -> (i32, i32) {
    %c0_i32 = arith.constant 0 : i32
    %c0_i32_0 = arith.constant 0 : i32
    %c0_i32_1 = arith.constant 0 : i32
    return %c0_i32, %c0_i32_0 : i32, i32
  }
  func.func @transform_15(%arg0: i32) -> (i32, i32, i32) {
    %c0_i32 = arith.constant 0 : i32
    %c0_i32_0 = arith.constant 0 : i32
    %c0_i32_1 = arith.constant 0 : i32
    %c0_i32_2 = arith.constant 0 : i32
    return %c0_i32, %c0_i32_0, %c0_i32_1 : i32, i32, i32
  }
  func.func @transform_16(%arg0: i32) -> (i32, i32) {
    %c0_i32 = arith.constant 0 : i32
    %c0_i32_0 = arith.constant 0 : i32
    %c0_i32_1 = arith.constant 0 : i32
    return %c0_i32, %c0_i32_0 : i32, i32
  }
  func.func @transform_17(%arg0: i32) -> (i32, i32, i32) {
    %c0_i32 = arith.constant 0 : i32
    %c0_i32_0 = arith.constant 0 : i32
    %c0_i32_1 = arith.constant 0 : i32
    return %arg0, %c0_i32, %c0_i32_0 : i32, i32, i32
  }
}

</mosaic_0001>

<llo_original>
// kernel: discriminator_forward.1
$region0: #{discriminator_forward.1}
  #allocation0 [shape = 'u32[]', space=smem, size = 0x4, offset = 0x4, fixed_abs, tag = 'smem constant byte address 0x4 - core index']
  #allocation1 [shape = 'u32[72,128]{1,0:T(1,128)}', space=vmem, size = 0x9000, scoped, tag = 'internal scratch']
  #allocation2 [shape = 'bf16[18,256]{1,0:T(8,128)(2,1)}', space=vmem, size = 0x3000, scoped, tag = 'scratch operand']
  #allocation3 [shape = 'bf16[18,256]{1,0:T(8,128)(2,1)}', space=vmem, size = 0x3000, scoped, tag = 'scratch operand']
  #allocation4 [shape = 'bf16[2,9,256]{2,1,0:T(8,128)(2,1)}', space=vmem, size = 0x4000, scoped, tag = 'scratch operand']
  #allocation5 [shape = 'bf16[2,4,256]{2,1,0:T(4,128)(2,1)}', space=vmem, size = 0x1000, scoped, tag = 'scratch operand']
  %s0 = inlined_call_operand.vmem [shape: bf16[2,18,256], index: 0, kind: input, shape index: {}]
  %s1 = inlined_call_operand.vmem [shape: bf16[3,256,256], index: 1, kind: input, shape index: {}]
  %s2 = inlined_call_operand.vmem [shape: f32[1,256], index: 2, kind: input, shape index: {}]
  %s3 = inlined_call_operand.vmem [shape: bf16[3,256,256], index: 3, kind: input, shape index: {}]
  %s4 = inlined_call_operand.vmem [shape: f32[2,256], index: 4, kind: input, shape index: {}]
  %s5 = inlined_call_operand.vmem [shape: f32[256,128], index: 5, kind: input, shape index: {}]
  %s6 = inlined_call_operand.vmem [shape: f32[128,256], index: 6, kind: input, shape index: {}]
  %s7 = inlined_call_operand.vmem [shape: bf16[3,256,256], index: 7, kind: input, shape index: {}]
  %s8 = inlined_call_operand.vmem [shape: f32[2,256], index: 8, kind: input, shape index: {}]
  %s9 = inlined_call_operand.vmem [shape: f32[256,128], index: 9, kind: input, shape index: {}]
  %s10 = inlined_call_operand.vmem [shape: f32[128,256], index: 10, kind: input, shape index: {}]
  %s11 = inlined_call_operand.vmem [shape: bf16[4,256,256], index: 11, kind: input, shape index: {}]
  %s12 = inlined_call_operand.vmem [shape: f32[2,256], index: 12, kind: input, shape index: {}]
  %s13 = inlined_call_operand.vmem [shape: f32[256,128], index: 13, kind: input, shape index: {}]
  %s14 = inlined_call_operand.vmem [shape: f32[128,256], index: 14, kind: input, shape index: {}]
  %s15 = inlined_call_operand.vmem [shape: bf16[4,256,128], index: 15, kind: input, shape index: {}]
  %s16 = inlined_call_operand.vmem [shape: f32[1,128], index: 16, kind: input, shape index: {}]
  %s17 = inlined_call_operand.vmem [shape: f32[2,3,128], index: 17, kind: output, shape index: {}]
  %s18 = sld [smem:[#allocation0]]
  $region101: #{discriminator_forward.1} parent=0
    _
  %s20 = ssub.s32 1, %s18
  %s21 = scalar_select 0, %s20, %s18
  loop: start=0, step=1, limit=4
  $region2: #{discriminator_forward.1} parent=0 // loop_pre_header
    _
  $region3: #{discriminator_forward.1} parent=0 // loop_header
    %s23 = sphi 0, %s27
    %p24 = scmp.ge.s32.totalorder %s23, 4
    %s33 = sphi 0, %s35
    %s36 = sphi 0, %s33
    %s37 = sphi 0, %s36
    %s53 = sphi 0, %s37
    %s57 = sphi 0, %s57
    %s59 = sphi 0, %s57
    %s60 = sphi 0, %s59
    %s74 = sphi 0, %s60
    %s78 = sphi 0, %s78
    %s80 = sphi 0, %s78
    %s81 = sphi 0, %s80
    %s95 = sphi 0, %s81
    %s99 = sphi 0, %s99
    %s101 = sphi 0, %s99
    %s102 = sphi 0, %s101
    %s116 = sphi 0, %s102
    %s120 = sphi 0, %s120
    %s122 = sphi 0, %s120
    %s123 = sphi 0, %s122
    %s137 = sphi 0, %s123
    %s141 = sphi 0, %s141
    %s143 = sphi 0, %s141
    %s144 = sphi 0, %s143
    %s158 = sphi 0, %s144
    %s162 = sphi 0, %s162
    %s164 = sphi 0, %s162
    %s165 = sphi 0, %s164
    %s179 = sphi 0, %s165
    %s183 = sphi 0, %s183
    %s185 = sphi 0, %s183
    %s186 = sphi 0, %s185
    %s200 = sphi 0, %s186
    %s204 = sphi 0, %s204
    %s206 = sphi 0, %s204
    %s207 = sphi 0, %s206
    %s221 = sphi 0, %s207
    %s225 = sphi 0, %s225
    %s227 = sphi 0, %s225
    %s228 = sphi 0, %s227
    %s242 = sphi 0, %s228
    %s246 = sphi 0, %s246
    %s248 = sphi 0, %s246
    %s249 = sphi 0, %s248
    %s263 = sphi 0, %s249
    %s267 = sphi 0, %s267
    %s269 = sphi 0, %s267
    %s270 = sphi 0, %s269
    %s284 = sphi 0, %s270
    %s288 = sphi 0, %s288
    %s290 = sphi 0, %s288
    %s291 = sphi 0, %s290
    %s305 = sphi 0, %s291
    %s309 = sphi 0, %s309
    %s311 = sphi 0, %s309
    %s312 = sphi 0, %s311
    %s326 = sphi 0, %s312
    %s330 = sphi 0, %s330
    %s332 = sphi 0, %s330
    %s333 = sphi 0, %s332
    %s347 = sphi 0, %s333
    %s351 = sphi 0, %s351
    %s353 = sphi 0, %s351
    %s354 = sphi 0, %s353
    %s368 = sphi 0, %s354
    %s372 = sphi 0, %s372
    %s374 = sphi 0, %s372
    %s375 = sphi 0, %s374
    %s389 = sphi 0, %s375
    %s395 = sphi 0, %s397
    %s398 = sphi 0, %s395
    %s399 = sphi 0, %s398
    %s415 = sphi 0, %s399
  $region4: #{discriminator_forward.1} parent=0 // loop_header_branch
    %26 = sbr.rel (%p24) target = $region8
  $region5: #{discriminator_forward.1} parent=0 // loop_body
    %s28 = ssub.s32 %s23, 1
    %s29 = ssub.s32 %s23, 2
    %s30 = sadd.s32 %s23, 1
    %s31 = ssub.s32 %s23, %s30
    %p32 = scmp.eq.s32.totalorder %s31, 0
    %s34 = sadd.s32 %s33, 1
    %s35 = scalar_select %p32, %s33, %s34
    %p38 = pneg %p32
    %p39 = scmp.eq.s32.totalorder %s23, 1
    %p40 = por %p38, %p39
    %p41 = scmp.ne.s32.totalorder %s33, %s36
    %p42 = scmp.eq.s32.totalorder %s23, 0
    %p43 = por %p41, %p42
    %p44 = scmp.ne.s32.totalorder %s33, %s36
    %p45 = scmp.eq.s32.totalorder %s28, 1
    %p46 = por %p44, %p45
    %p47 = scmp.ne.s32.totalorder %s36, %s37
    %p48 = scmp.eq.s32.totalorder %s28, 0
    %p49 = por %p47, %p48
    %p50 = scmp.ne.s32.totalorder %s36, %s37
    %p51 = scmp.eq.s32.totalorder %s29, 1
    %p52 = por %p50, %p51
    %p54 = scmp.ne.s32.totalorder %s37, %s53
    %p55 = scmp.eq.s32.totalorder %s29, 0
    %p56 = por %p54, %p55
    %s58 = sadd.s32 %s57, 1
    %p61 = scmp.eq.s32.totalorder %s23, 1
    %p62 = scmp.ne.s32.totalorder %s57, %s59
    %p63 = scmp.eq.s32.totalorder %s23, 0
    %p64 = por %p62, %p63
    %p65 = scmp.ne.s32.totalorder %s57, %s59
    %p66 = scmp.eq.s32.totalorder %s28, 1
    %p67 = por %p65, %p66
    %p68 = scmp.ne.s32.totalorder %s59, %s60
    %p69 = scmp.eq.s32.totalorder %s28, 0
    %p70 = por %p68, %p69
    %p71 = scmp.ne.s32.totalorder %s59, %s60
    %p72 = scmp.eq.s32.totalorder %s29, 1
    %p73 = por %p71, %p72
    %p75 = scmp.ne.s32.totalorder %s60, %s74
    %p76 = scmp.eq.s32.totalorder %s29, 0
    %p77 = por %p75, %p76
    %s79 = sadd.s32 %s78, 1
    %p82 = scmp.eq.s32.totalorder %s23, 1
    %p83 = scmp.ne.s32.totalorder %s78, %s80
    %p84 = scmp.eq.s32.totalorder %s23, 0
    %p85 = por %p83, %p84
    %p86 = scmp.ne.s32.totalorder %s78, %s80
    %p87 = scmp.eq.s32.totalorder %s28, 1
    %p88 = por %p86, %p87
    %p89 = scmp.ne.s32.totalorder %s80, %s81
    %p90 = scmp.eq.s32.totalorder %s28, 0
    %p91 = por %p89, %p90
    %p92 = scmp.ne.s32.totalorder %s80, %s81
    %p93 = scmp.eq.s32.totalorder %s29, 1
    %p94 = por %p92, %p93
    %p96 = scmp.ne.s32.totalorder %s81, %s95
    %p97 = scmp.eq.s32.totalorder %s29, 0
    %p98 = por %p96, %p97
    %s100 = sadd.s32 %s99, 1
    %p103 = scmp.eq.s32.totalorder %s23, 1
    %p104 = scmp.ne.s32.totalorder %s99, %s101
    %p105 = scmp.eq.s32.totalorder %s23, 0
    %p106 = por %p104, %p105
    %p107 = scmp.ne.s32.totalorder %s99, %s101
    %p108 = scmp.eq.s32.totalorder %s28, 1
    %p109 = por %p107, %p108
    %p110 = scmp.ne.s32.totalorder %s101, %s102
    %p111 = scmp.eq.s32.totalorder %s28, 0
    %p112 = por %p110, %p111
    %p113 = scmp.ne.s32.totalorder %s101, %s102
    %p114 = scmp.eq.s32.totalorder %s29, 1
    %p115 = por %p113, %p114
    %p117 = scmp.ne.s32.totalorder %s102, %s116
    %p118 = scmp.eq.s32.totalorder %s29, 0
    %p119 = por %p117, %p118
    %s121 = sadd.s32 %s120, 1
    %p124 = scmp.eq.s32.totalorder %s23, 1
    %p125 = scmp.ne.s32.totalorder %s120, %s122
    %p126 = scmp.eq.s32.totalorder %s23, 0
    %p127 = por %p125, %p126
    %p128 = scmp.ne.s32.totalorder %s120, %s122
    %p129 = scmp.eq.s32.totalorder %s28, 1
    %p130 = por %p128, %p129
    %p131 = scmp.ne.s32.totalorder %s122, %s123
    %p132 = scmp.eq.s32.totalorder %s28, 0
    %p133 = por %p131, %p132
    %p134 = scmp.ne.s32.totalorder %s122, %s123
    %p135 = scmp.eq.s32.totalorder %s29, 1
    %p136 = por %p134, %p135
    %p138 = scmp.ne.s32.totalorder %s123, %s137
    %p139 = scmp.eq.s32.totalorder %s29, 0
    %p140 = por %p138, %p139
    %s142 = sadd.s32 %s141, 1
    %p145 = scmp.eq.s32.totalorder %s23, 1
    %p146 = scmp.ne.s32.totalorder %s141, %s143
    %p147 = scmp.eq.s32.totalorder %s23, 0
    %p148 = por %p146, %p147
    %p149 = scmp.ne.s32.totalorder %s141, %s143
    %p150 = scmp.eq.s32.totalorder %s28, 1
    %p151 = por %p149, %p150
    %p152 = scmp.ne.s32.totalorder %s143, %s144
    %p153 = scmp.eq.s32.totalorder %s28, 0
    %p154 = por %p152, %p153
    %p155 = scmp.ne.s32.totalorder %s143, %s144
    %p156 = scmp.eq.s32.totalorder %s29, 1
    %p157 = por %p155, %p156
    %p159 = scmp.ne.s32.totalorder %s144, %s158
    %p160 = scmp.eq.s32.totalorder %s29, 0
    %p161 = por %p159, %p160
    %s163 = sadd.s32 %s162, 1
    %p166 = scmp.eq.s32.totalorder %s23, 1
    %p167 = scmp.ne.s32.totalorder %s162, %s164
    %p168 = scmp.eq.s32.totalorder %s23, 0
    %p169 = por %p167, %p168
    %p170 = scmp.ne.s32.totalorder %s162, %s164
    %p171 = scmp.eq.s32.totalorder %s28, 1
    %p172 = por %p170, %p171
    %p173 = scmp.ne.s32.totalorder %s164, %s165
    %p174 = scmp.eq.s32.totalorder %s28, 0
    %p175 = por %p173, %p174
    %p176 = scmp.ne.s32.totalorder %s164, %s165
    %p177 = scmp.eq.s32.totalorder %s29, 1
    %p178 = por %p176, %p177
    %p180 = scmp.ne.s32.totalorder %s165, %s179
    %p181 = scmp.eq.s32.totalorder %s29, 0
    %p182 = por %p180, %p181
    %s184 = sadd.s32 %s183, 1
    %p187 = scmp.eq.s32.totalorder %s23, 1
    %p188 = scmp.ne.s32.totalorder %s183, %s185
    %p189 = scmp.eq.s32.totalorder %s23, 0
    %p190 = por %p188, %p189
    %p191 = scmp.ne.s32.totalorder %s183, %s185
    %p192 = scmp.eq.s32.totalorder %s28, 1
    %p193 = por %p191, %p192
    %p194 = scmp.ne.s32.totalorder %s185, %s186
    %p195 = scmp.eq.s32.totalorder %s28, 0
    %p196 = por %p194, %p195
    %p197 = scmp.ne.s32.totalorder %s185, %s186
    %p198 = scmp.eq.s32.totalorder %s29, 1
    %p199 = por %p197, %p198
    %p201 = scmp.ne.s32.totalorder %s186, %s200
    %p202 = scmp.eq.s32.totalorder %s29, 0
    %p203 = por %p201, %p202
    %s205 = sadd.s32 %s204, 1
    %p208 = scmp.eq.s32.totalorder %s23, 1
    %p209 = scmp.ne.s32.totalorder %s204, %s206
    %p210 = scmp.eq.s32.totalorder %s23, 0
    %p211 = por %p209, %p210
    %p212 = scmp.ne.s32.totalorder %s204, %s206
    %p213 = scmp.eq.s32.totalorder %s28, 1
    %p214 = por %p212, %p213
    %p215 = scmp.ne.s32.totalorder %s206, %s207
    %p216 = scmp.eq.s32.totalorder %s28, 0
    %p217 = por %p215, %p216
    %p218 = scmp.ne.s32.totalorder %s206, %s207
    %p219 = scmp.eq.s32.totalorder %s29, 1
    %p220 = por %p218, %p219
    %p222 = scmp.ne.s32.totalorder %s207, %s221
    %p223 = scmp.eq.s32.totalorder %s29, 0
    %p224 = por %p222, %p223
    %s226 = sadd.s32 %s225, 1
    %p229 = scmp.eq.s32.totalorder %s23, 1
    %p230 = scmp.ne.s32.totalorder %s225, %s227
    %p231 = scmp.eq.s32.totalorder %s23, 0
    %p232 = por %p230, %p231
    %p233 = scmp.ne.s32.totalorder %s225, %s227
    %p234 = scmp.eq.s32.totalorder %s28, 1
    %p235 = por %p233, %p234
    %p236 = scmp.ne.s32.totalorder %s227, %s228
    %p237 = scmp.eq.s32.totalorder %s28, 0
    %p238 = por %p236, %p237
    %p239 = scmp.ne.s32.totalorder %s227, %s228
    %p240 = scmp.eq.s32.totalorder %s29, 1
    %p241 = por %p239, %p240
    %p243 = scmp.ne.s32.totalorder %s228, %s242
    %p244 = scmp.eq.s32.totalorder %s29, 0
    %p245 = por %p243, %p244
    %s247 = sadd.s32 %s246, 1
    %p250 = scmp.eq.s32.totalorder %s23, 1
    %p251 = scmp.ne.s32.totalorder %s246, %s248
    %p252 = scmp.eq.s32.totalorder %s23, 0
    %p253 = por %p251, %p252
    %p254 = scmp.ne.s32.totalorder %s246, %s248
    %p255 = scmp.eq.s32.totalorder %s28, 1
    %p256 = por %p254, %p255
    %p257 = scmp.ne.s32.totalorder %s248, %s249
    %p258 = scmp.eq.s32.totalorder %s28, 0
    %p259 = por %p257, %p258
    %p260 = scmp.ne.s32.totalorder %s248, %s249
    %p261 = scmp.eq.s32.totalorder %s29, 1
    %p262 = por %p260, %p261
    %p264 = scmp.ne.s32.totalorder %s249, %s263
    %p265 = scmp.eq.s32.totalorder %s29, 0
    %p266 = por %p264, %p265
    %s268 = sadd.s32 %s267, 1
    %p271 = scmp.eq.s32.totalorder %s23, 1
    %p272 = scmp.ne.s32.totalorder %s267, %s269
    %p273 = scmp.eq.s32.totalorder %s23, 0
    %p274 = por %p272, %p273
    %p275 = scmp.ne.s32.totalorder %s267, %s269
    %p276 = scmp.eq.s32.totalorder %s28, 1
    %p277 = por %p275, %p276
    %p278 = scmp.ne.s32.totalorder %s269, %s270
    %p279 = scmp.eq.s32.totalorder %s28, 0
    %p280 = por %p278, %p279
    %p281 = scmp.ne.s32.totalorder %s269, %s270
    %p282 = scmp.eq.s32.totalorder %s29, 1
    %p283 = por %p281, %p282
    %p285 = scmp.ne.s32.totalorder %s270, %s284
    %p286 = scmp.eq.s32.totalorder %s29, 0
    %p287 = por %p285, %p286
    %s289 = sadd.s32 %s288, 1
    %p292 = scmp.eq.s32.totalorder %s23, 1
    %p293 = scmp.ne.s32.totalorder %s288, %s290
    %p294 = scmp.eq.s32.totalorder %s23, 0
    %p295 = por %p293, %p294
    %p296 = scmp.ne.s32.totalorder %s288, %s290
    %p297 = scmp.eq.s32.totalorder %s28, 1
    %p298 = por %p296, %p297
    %p299 = scmp.ne.s32.totalorder %s290, %s291
    %p300 = scmp.eq.s32.totalorder %s28, 0
    %p301 = por %p299, %p300
    %p302 = scmp.ne.s32.totalorder %s290, %s291
    %p303 = scmp.eq.s32.totalorder %s29, 1
    %p304 = por %p302, %p303
    %p306 = scmp.ne.s32.totalorder %s291, %s305
    %p307 = scmp.eq.s32.totalorder %s29, 0
    %p308 = por %p306, %p307
    %s310 = sadd.s32 %s309, 1
    %p313 = scmp.eq.s32.totalorder %s23, 1
    %p314 = scmp.ne.s32.totalorder %s309, %s311
    %p315 = scmp.eq.s32.totalorder %s23, 0
    %p316 = por %p314, %p315
    %p317 = scmp.ne.s32.totalorder %s309, %s311
    %p318 = scmp.eq.s32.totalorder %s28, 1
    %p319 = por %p317, %p318
    %p320 = scmp.ne.s32.totalorder %s311, %s312
    %p321 = scmp.eq.s32.totalorder %s28, 0
    %p322 = por %p320, %p321
    %p323 = scmp.ne.s32.totalorder %s311, %s312
    %p324 = scmp.eq.s32.totalorder %s29, 1
    %p325 = por %p323, %p324
    %p327 = scmp.ne.s32.totalorder %s312, %s326
    %p328 = scmp.eq.s32.totalorder %s29, 0
    %p329 = por %p327, %p328
    %s331 = sadd.s32 %s330, 1
    %p334 = scmp.eq.s32.totalorder %s23, 1
    %p335 = scmp.ne.s32.totalorder %s330, %s332
    %p336 = scmp.eq.s32.totalorder %s23, 0
    %p337 = por %p335, %p336
    %p338 = scmp.ne.s32.totalorder %s330, %s332
    %p339 = scmp.eq.s32.totalorder %s28, 1
    %p340 = por %p338, %p339
    %p341 = scmp.ne.s32.totalorder %s332, %s333
    %p342 = scmp.eq.s32.totalorder %s28, 0
    %p343 = por %p341, %p342
    %p344 = scmp.ne.s32.totalorder %s332, %s333
    %p345 = scmp.eq.s32.totalorder %s29, 1
    %p346 = por %p344, %p345
    %p348 = scmp.ne.s32.totalorder %s333, %s347
    %p349 = scmp.eq.s32.totalorder %s29, 0
    %p350 = por %p348, %p349
    %s352 = sadd.s32 %s351, 1
    %p355 = scmp.eq.s32.totalorder %s23, 1
    %p356 = scmp.ne.s32.totalorder %s351, %s353
    %p357 = scmp.eq.s32.totalorder %s23, 0
    %p358 = por %p356, %p357
    %p359 = scmp.ne.s32.totalorder %s351, %s353
    %p360 = scmp.eq.s32.totalorder %s28, 1
    %p361 = por %p359, %p360
    %p362 = scmp.ne.s32.totalorder %s353, %s354
    %p363 = scmp.eq.s32.totalorder %s28, 0
    %p364 = por %p362, %p363
    %p365 = scmp.ne.s32.totalorder %s353, %s354
    %p366 = scmp.eq.s32.totalorder %s29, 1
    %p367 = por %p365, %p366
    %p369 = scmp.ne.s32.totalorder %s354, %s368
    %p370 = scmp.eq.s32.totalorder %s29, 0
    %p371 = por %p369, %p370
    %s373 = sadd.s32 %s372, 1
    %p376 = scmp.eq.s32.totalorder %s23, 1
    %p377 = scmp.ne.s32.totalorder %s372, %s374
    %p378 = scmp.eq.s32.totalorder %s23, 0
    %p379 = por %p377, %p378
    %p380 = scmp.ne.s32.totalorder %s372, %s374
    %p381 = scmp.eq.s32.totalorder %s28, 1
    %p382 = por %p380, %p381
    %p383 = scmp.ne.s32.totalorder %s374, %s375
    %p384 = scmp.eq.s32.totalorder %s28, 0
    %p385 = por %p383, %p384
    %p386 = scmp.ne.s32.totalorder %s374, %s375
    %p387 = scmp.eq.s32.totalorder %s29, 1
    %p388 = por %p386, %p387
    %p390 = scmp.ne.s32.totalorder %s375, %s389
    %p391 = scmp.eq.s32.totalorder %s29, 0
    %p392 = por %p390, %p391
    %s393 = ssub.s32 %s23, %s30
    %p394 = scmp.eq.s32.totalorder %s393, 0
    %s396 = sadd.s32 %s395, 1
    %s397 = scalar_select %p394, %s395, %s396
    %p400 = pneg %p394
    %p401 = scmp.eq.s32.totalorder %s23, 1
    %p402 = por %p400, %p401
    %p403 = scmp.ne.s32.totalorder %s395, %s398
    %p404 = scmp.eq.s32.totalorder %s23, 0
    %p405 = por %p403, %p404
    %p406 = scmp.ne.s32.totalorder %s395, %s398
    %p407 = scmp.eq.s32.totalorder %s28, 1
    %p408 = por %p406, %p407
    %p409 = scmp.ne.s32.totalorder %s398, %s399
    %p410 = scmp.eq.s32.totalorder %s28, 0
    %p411 = por %p409, %p410
    %p412 = scmp.ne.s32.totalorder %s398, %s399
    %p413 = scmp.eq.s32.totalorder %s29, 1
    %p414 = por %p412, %p413
    %p416 = scmp.ne.s32.totalorder %s399, %s415
    %p417 = scmp.eq.s32.totalorder %s29, 0
    %p418 = por %p416, %p417
    %p419 = scmp.le.s32.totalorder 1, %s23
    %p420 = scmp.lt.s32.totalorder %s23, 3
    %p421 = pnand %p419, %p420
    %p422 = pneg %p421
    // Predicated region
    $region9: #{discriminator_forward.1} parent=5 // pred_check
      _
    $region10: #{discriminator_forward.1} parent=5 // pred_check_branch
      %424 = sbr.rel (%p421) target = $region12
    $region11: #{discriminator_forward.1} parent=5 // pred_region
      %s425 = ssub.s32 %s23, 1
      // Predicated region
      $region13: #{discriminator_forward.1} parent=11 // pred_check
        %p426 = pneg %p70
      $region14: #{discriminator_forward.1} parent=11 // pred_check_branch
        %428 = sbr.rel (%p426) target = $region16
      $region15: #{discriminator_forward.1} parent=11 // pred_region
        _
      $region16: #{discriminator_forward.1} parent=11 // pred_fallthru
        _
      // Predicated region
      $region17: #{discriminator_forward.1} parent=11 // pred_check
        %p429 = pneg %p91
      $region18: #{discriminator_forward.1} parent=11 // pred_check_branch
        %431 = sbr.rel (%p429) target = $region20
      $region19: #{discriminator_forward.1} parent=11 // pred_region
        _
      $region20: #{discriminator_forward.1} parent=11 // pred_fallthru
        _
      // Predicated region
      $region21: #{discriminator_forward.1} parent=11 // pred_check
        %p432 = pneg %p112
      $region22: #{discriminator_forward.1} parent=11 // pred_check_branch
        %434 = sbr.rel (%p432) target = $region24
      $region23: #{discriminator_forward.1} parent=11 // pred_region
        _
      $region24: #{discriminator_forward.1} parent=11 // pred_fallthru
        _
      // Predicated region
      $region25: #{discriminator_forward.1} parent=11 // pred_check
        %p435 = pneg %p133
      $region26: #{discriminator_forward.1} parent=11 // pred_check_branch
        %437 = sbr.rel (%p435) target = $region28
      $region27: #{discriminator_forward.1} parent=11 // pred_region
        _
      $region28: #{discriminator_forward.1} parent=11 // pred_fallthru
        _
      // Predicated region
      $region29: #{discriminator_forward.1} parent=11 // pred_check
        %p438 = pneg %p154
      $region30: #{discriminator_forward.1} parent=11 // pred_check_branch
        %440 = sbr.rel (%p438) target = $region32
      $region31: #{discriminator_forward.1} parent=11 // pred_region
        _
      $region32: #{discriminator_forward.1} parent=11 // pred_fallthru
        _
      // Predicated region
      $region33: #{discriminator_forward.1} parent=11 // pred_check
        %p441 = pneg %p175
      $region34: #{discriminator_forward.1} parent=11 // pred_check_branch
        %443 = sbr.rel (%p441) target = $region36
      $region35: #{discriminator_forward.1} parent=11 // pred_region
        _
      $region36: #{discriminator_forward.1} parent=11 // pred_fallthru
        _
      // Predicated region
      $region37: #{discriminator_forward.1} parent=11 // pred_check
        %p444 = pneg %p196
      $region38: #{discriminator_forward.1} parent=11 // pred_check_branch
        %446 = sbr.rel (%p444) target = $region40
      $region39: #{discriminator_forward.1} parent=11 // pred_region
        _
      $region40: #{discriminator_forward.1} parent=11 // pred_fallthru
        _
      // Predicated region
      $region41: #{discriminator_forward.1} parent=11 // pred_check
        %p447 = pneg %p217
      $region42: #{discriminator_forward.1} parent=11 // pred_check_branch
        %449 = sbr.rel (%p447) target = $region44
      $region43: #{discriminator_forward.1} parent=11 // pred_region
        _
      $region44: #{discriminator_forward.1} parent=11 // pred_fallthru
        _
      // Predicated region
      $region45: #{discriminator_forward.1} parent=11 // pred_check
        %p450 = pneg %p238
      $region46: #{discriminator_forward.1} parent=11 // pred_check_branch
        %452 = sbr.rel (%p450) target = $region48
      $region47: #{discriminator_forward.1} parent=11 // pred_region
        _
      $region48: #{discriminator_forward.1} parent=11 // pred_fallthru
        _
      // Predicated region
      $region49: #{discriminator_forward.1} parent=11 // pred_check
        %p453 = pneg %p259
      $region50: #{discriminator_forward.1} parent=11 // pred_check_branch
        %455 = sbr.rel (%p453) target = $region52
      $region51: #{discriminator_forward.1} parent=11 // pred_region
        _
      $region52: #{discriminator_forward.1} parent=11 // pred_fallthru
        _
      // Predicated region
      $region53: #{discriminator_forward.1} parent=11 // pred_check
        %p456 = pneg %p280
      $region54: #{discriminator_forward.1} parent=11 // pred_check_branch
        %458 = sbr.rel (%p456) target = $region56
      $region55: #{discriminator_forward.1} parent=11 // pred_region
        _
      $region56: #{discriminator_forward.1} parent=11 // pred_fallthru
        _
      // Predicated region
      $region57: #{discriminator_forward.1} parent=11 // pred_check
        %p459 = pneg %p301
      $region58: #{discriminator_forward.1} parent=11 // pred_check_branch
        %461 = sbr.rel (%p459) target = $region60
      $region59: #{discriminator_forward.1} parent=11 // pred_region
        _
      $region60: #{discriminator_forward.1} parent=11 // pred_fallthru
        _
      // Predicated region
      $region61: #{discriminator_forward.1} parent=11 // pred_check
        %p462 = pneg %p322
      $region62: #{discriminator_forward.1} parent=11 // pred_check_branch
        %464 = sbr.rel (%p462) target = $region64
      $region63: #{discriminator_forward.1} parent=11 // pred_region
        _
      $region64: #{discriminator_forward.1} parent=11 // pred_fallthru
        _
      // Predicated region
      $region65: #{discriminator_forward.1} parent=11 // pred_check
        %p465 = pneg %p343
      $region66: #{discriminator_forward.1} parent=11 // pred_check_branch
        %467 = sbr.rel (%p465) target = $region68
      $region67: #{discriminator_forward.1} parent=11 // pred_region
        _
      $region68: #{discriminator_forward.1} parent=11 // pred_fallthru
        _
      // Predicated region
      $region69: #{discriminator_forward.1} parent=11 // pred_check
        %p468 = pneg %p364
      $region70: #{discriminator_forward.1} parent=11 // pred_check_branch
        %470 = sbr.rel (%p468) target = $region72
      $region71: #{discriminator_forward.1} parent=11 // pred_region
        _
      $region72: #{discriminator_forward.1} parent=11 // pred_fallthru
        _
      // Predicated region
      $region73: #{discriminator_forward.1} parent=11 // pred_check
        %p471 = pneg %p385
      $region74: #{discriminator_forward.1} parent=11 // pred_check_branch
        %473 = sbr.rel (%p471) target = $region76
      $region75: #{discriminator_forward.1} parent=11 // pred_region
        _
      $region76: #{discriminator_forward.1} parent=11 // pred_fallthru
        _
    $region12: #{discriminator_forward.1} parent=5 // pred_fallthru
      _
    %p474 = scmp.lt.s32.totalorder %s23, 2
    // Predicated region
    $region77: #{discriminator_forward.1} parent=5 // pred_check
      %p475 = pneg %p474
    $region78: #{discriminator_forward.1} parent=5 // pred_check_branch
      %477 = sbr.rel (%p475) target = $region80
    $region79: #{discriminator_forward.1} parent=5 // pred_region
      // Predicated region
      $region81: #{discriminator_forward.1} parent=79 // pred_check
        %p478 = pneg %p43
      $region82: #{discriminator_forward.1} parent=79 // pred_check_branch
        %480 = sbr.rel (%p478) target = $region84
      $region83: #{discriminator_forward.1} parent=79 // pred_region
        %p481 = scmp.lt.s32.totalorder %s23, 1
        %s482 = scalar_select %p481, %s23, 1
        %s483 = smul.addr %s482, 6
        %s484 = smul.addr %s483, 4
        %s485 = scalar_lea.vmem %s0, %s484
      $region84: #{discriminator_forward.1} parent=79 // pred_fallthru
        _
    $region80: #{discriminator_forward.1} parent=5 // pred_fallthru
      _
    %p486 = scmp.le.s32.totalorder 1, %s23
    %p487 = scmp.lt.s32.totalorder %s23, 3
    %p488 = pnand %p486, %p487
    %p489 = pneg %p488
    // Predicated region
    $region85: #{discriminator_forward.1} parent=5 // pred_check
      _
    $region86: #{discriminator_forward.1} parent=5 // pred_check_branch
      %491 = sbr.rel (%p488) target = $region88
    $region87: #{discriminator_forward.1} parent=5 // pred_region
      %s492 = ssub.s32 %s23, 1
      %p493 = scmp.lt.s32.totalorder %s28, 1
      %s494 = scalar_select %p493, %s28, 1
      %s495 = smul.addr %s494, 6
      %s496 = smul.addr %s495, 4
      %s497 = scalar_lea.vmem %s0, %s496
      %p498 = pneg %p49
      %p499 = pneg %p46
      %p500 = pneg %p70
      %p501 = pneg %p67
      %p502 = pneg %p91
      %p503 = pneg %p88
      %p504 = pneg %p112
      %p505 = pneg %p109
      %p506 = pneg %p133
      %p507 = pneg %p130
      %p508 = pneg %p154
      %p509 = pneg %p151
      %p510 = pneg %p175
      %p511 = pneg %p172
      %p512 = pneg %p196
      %p513 = pneg %p193
      %p514 = pneg %p217
      %p515 = pneg %p214
      %p516 = pneg %p238
      %p517 = pneg %p235
      %p518 = pneg %p259
      %p519 = pneg %p256
      %p520 = pneg %p280
      %p521 = pneg %p277
      %p522 = pneg %p301
      %p523 = pneg %p298
      %p524 = pneg %p322
      %p525 = pneg %p319
      %p526 = pneg %p343
      %p527 = pneg %p340
      %p528 = pneg %p364
      %p529 = pneg %p361
      %p530 = pneg %p385
      %p531 = pneg %p382
      %p532 = pneg %p411
      %p533 = pneg %p408
      %p534 = scmp.lt.s32.totalorder %s28, 1
      %s535 = scalar_select %p534, %s28, 1
      %s536 = smul.addr %s535, 4
      %s537 = scalar_lea.vmem %s17, %s536
      %p538 = scmp.lt.s32.totalorder %s28, 1
      %s539 = scalar_select %p538, %s28, 1
      %s540 = smul.addr %s539, 6
      %s541 = smul.addr %s540, 4
      %s542 = scalar_lea.vmem %s0, %s541
      %p543 = scmp.lt.s32.totalorder %s28, 1
      %s544 = scalar_select %p543, %s28, 1
      %s545 = smul.addr %s544, 4
      %s546 = scalar_lea.vmem %s17, %s545
      %548 = vst [vmem:[#allocation2] sm:$0xff] 0
      %549 = vst [vmem:[#allocation2 + $0x8] sm:$0xff] 0
      %550 = vst [vmem:[#allocation2 + $0x10] sm:$0x11] 0
      %551 = vst [vmem:[#allocation3] sm:$0xff] 0
      %552 = vst [vmem:[#allocation3 + $0x8] sm:$0xff] 0
      %553 = vst [vmem:[#allocation3 + $0x10] sm:$0x11] 0
      %554 = vst [vmem:[#allocation4] sm:$0xff] 0
      %vm555 = vcmask 1040384
      %vm556 = vsmask.f32 256
      %vm557 = vmand %vm555, %vm556
      %vm558 = vcmask 1044484
      %vm559 = vsmask.f32 4352
      %vm560 = vmand %vm558, %vm559
      %vm561 = vmor %vm560, %vm557
      %v562 = vld [vmem:[#allocation4 + $0x8] sm:$0x11]
      %v563 = vsel %vm561, 0, %v562
      %564 = vst [vmem:[#allocation4 + $0x8] sm:$0x11] %v563
      %565 = vst [vmem:[#allocation4 + $0x10] sm:$0xff] 0
      %v566 = vld [vmem:[#allocation4 + $0x18] sm:$0x11]
      %v567 = vsel %vm561, 0, %v566
      %568 = vst [vmem:[#allocation4 + $0x18] sm:$0x11] %v567
      %569 = vst [vmem:[#allocation5] sm:$0xf] 0
      %570 = vst [vmem:[#allocation5 + $0x4] sm:$0xf] 0
      %v571 = vld [vmem:[%s542] sm:$0xff]
      %v572 = vld [vmem:[%s542 + $0x8] sm:$0xff]
      %v573 = vld [vmem:[%s1] sm:$0xff]
      %v574 = vld [vmem:[%s1 + $0x8] sm:$0xff]
      %v575 = vld [vmem:[%s1 + $0x10] sm:$0xff]
      %v576 = vld [vmem:[%s1 + $0x18] sm:$0xff]
      %v577 = vld [vmem:[%s1 + $0x20] sm:$0xff]
      %v578 = vld [vmem:[%s1 + $0x28] sm:$0xff]
      %v579 = vld [vmem:[%s1 + $0x30] sm:$0xff]
      %v580 = vld [vmem:[%s1 + $0x38] sm:$0xff]
      %v581 = vld [vmem:[%s1 + $0x40] sm:$0xff]
      %v582 = vld [vmem:[%s1 + $0x48] sm:$0xff]
      %v583 = vld [vmem:[%s1 + $0x50] sm:$0xff]
      %v584 = vld [vmem:[%s1 + $0x58] sm:$0xff]
      %v585 = vld [vmem:[%s1 + $0x60] sm:$0xff]
      %v586 = vld [vmem:[%s1 + $0x68] sm:$0xff]
      %v587 = vld [vmem:[%s1 + $0x70] sm:$0xff]
      %v588 = vld [vmem:[%s1 + $0x78] sm:$0xff]
      %v589 = vld [vmem:[%s1 + $0x80] sm:$0xff]
      %v590 = vld [vmem:[%s1 + $0x88] sm:$0xff]
      %v591 = vld [vmem:[%s1 + $0x90] sm:$0xff]
      %v592 = vld [vmem:[%s1 + $0x98] sm:$0xff]
      %v593 = vld [vmem:[%s1 + $0xa0] sm:$0xff]
      %v594 = vld [vmem:[%s1 + $0xa8] sm:$0xff]
      %v595 = vld [vmem:[%s1 + $0xb0] sm:$0xff]
      %v596 = vld [vmem:[%s1 + $0xb8] sm:$0xff]
      %v597 = vld [vmem:[%s1 + $0xc0] sm:$0xff]
      %v598 = vld [vmem:[%s1 + $0xc8] sm:$0xff]
      %v599 = vld [vmem:[%s1 + $0xd0] sm:$0xff]
      %v600 = vld [vmem:[%s1 + $0xd8] sm:$0xff]
      %v601 = vld [vmem:[%s1 + $0xe0] sm:$0xff]
      %v602 = vld [vmem:[%s1 + $0xe8] sm:$0xff]
      %v603 = vld [vmem:[%s1 + $0xf0] sm:$0xff]
      %v604 = vld [vmem:[%s1 + $0xf8] sm:$0xff]
      %v605 = vld [vmem:[%s542 + $0x10] sm:$0x11]
      %s606 = scalar_lea.vmem %s1, 256
      %v607 = vld [vmem:[%s606] sm:$0xff]
      %v608 = vld [vmem:[%s606 + $0x8] sm:$0xff]
      %v609 = vld [vmem:[%s606 + $0x10] sm:$0xff]
      %v610 = vld [vmem:[%s606 + $0x18] sm:$0xff]
      %v611 = vld [vmem:[%s606 + $0x20] sm:$0xff]
      %v612 = vld [vmem:[%s606 + $0x28] sm:$0xff]
      %v613 = vld [vmem:[%s606 + $0x30] sm:$0xff]
      %v614 = vld [vmem:[%s606 + $0x38] sm:$0xff]
      %v615 = vld [vmem:[%s606 + $0x40] sm:$0xff]
      %v616 = vld [vmem:[%s606 + $0x48] sm:$0xff]
      %v617 = vld [vmem:[%s606 + $0x50] sm:$0xff]
      %v618 = vld [vmem:[%s606 + $0x58] sm:$0xff]
      %v619 = vld [vmem:[%s606 + $0x60] sm:$0xff]
      %v620 = vld [vmem:[%s606 + $0x68] sm:$0xff]
      %v621 = vld [vmem:[%s606 + $0x70] sm:$0xff]
      %v622 = vld [vmem:[%s606 + $0x78] sm:$0xff]
      %v623 = vld [vmem:[%s606 + $0x80] sm:$0xff]
      %v624 = vld [vmem:[%s606 + $0x88] sm:$0xff]
      %v625 = vld [vmem:[%s606 + $0x90] sm:$0xff]
      %v626 = vld [vmem:[%s606 + $0x98] sm:$0xff]
      %v627 = vld [vmem:[%s606 + $0xa0] sm:$0xff]
      %v628 = vld [vmem:[%s606 + $0xa8] sm:$0xff]
      %v629 = vld [vmem:[%s606 + $0xb0] sm:$0xff]
      %v630 = vld [vmem:[%s606 + $0xb8] sm:$0xff]
      %v631 = vld [vmem:[%s606 + $0xc0] sm:$0xff]
      %v632 = vld [vmem:[%s606 + $0xc8] sm:$0xff]
      %v633 = vld [vmem:[%s606 + $0xd0] sm:$0xff]
      %v634 = vld [vmem:[%s606 + $0xd8] sm:$0xff]
      %v635 = vld [vmem:[%s606 + $0xe0] sm:$0xff]
      %v636 = vld [vmem:[%s606 + $0xe8] sm:$0xff]
      %v637 = vld [vmem:[%s606 + $0xf0] sm:$0xff]
      %v638 = vld [vmem:[%s606 + $0xf8] sm:$0xff]
      %v642 = vunpack.c.l.b16 %v571
      %v643 = vunpack.c.h.b16 %v571
      %v644 = vunpack.c.l.b16 %v572
      %v645 = vunpack.c.h.b16 %v572
      %v646 = vunpack.c.l.b16 %v605
      %v647 = vunpack.c.h.b16 %v605
      %v648 = vpack.c.b16 %v644, %v642
      %v649 = vpack.c.b16 %v645, %v643
      %v650 = vpack.c.b16 %v646, %v646
      %v651 = vpack.c.b16 %v647, %v647
      %vm652 = vsmask.f32 7424
      %v654 = vshrl.u32 %v648, 16
      %v656 = vshll.u32 %v648, 16
      %v658 = vrot.slane %v656, 1
      %v659 = vor.u32 %v654, %v658
      %v661 = vshll.u32 %v650, 16
      %v663 = vrot.slane %v661, 1
      %v664 = vsel %vm652, %v659, %v663
      %v666 = vshrl.u32 %v649, 16
      %v668 = vshll.u32 %v649, 16
      %v670 = vrot.slane %v668, 1
      %v671 = vor.u32 %v666, %v670
      %v673 = vshll.u32 %v651, 16
      %v675 = vrot.slane %v673, 1
      %v676 = vsel %vm652, %v671, %v675
      %v711 = vunpack.c.l.b16 %v607
      %v712 = vunpack.c.h.b16 %v607
      %v713 = vunpack.c.l.b16 %v608
      %v714 = vunpack.c.h.b16 %v608
      %v715 = vunpack.c.l.b16 %v609
      %v716 = vunpack.c.h.b16 %v609
      %v717 = vunpack.c.l.b16 %v610
      %v718 = vunpack.c.h.b16 %v610
      %v719 = vunpack.c.l.b16 %v611
      %v720 = vunpack.c.h.b16 %v611
      %v721 = vunpack.c.l.b16 %v612
      %v722 = vunpack.c.h.b16 %v612
      %v723 = vunpack.c.l.b16 %v613
      %v724 = vunpack.c.h.b16 %v613
      %v725 = vunpack.c.l.b16 %v614
      %v726 = vunpack.c.h.b16 %v614
      %v727 = vunpack.c.l.b16 %v615
      %v728 = vunpack.c.h.b16 %v615
      %v729 = vunpack.c.l.b16 %v616
      %v730 = vunpack.c.h.b16 %v616
      %v731 = vunpack.c.l.b16 %v617
      %v732 = vunpack.c.h.b16 %v617
      %v733 = vunpack.c.l.b16 %v618
      %v734 = vunpack.c.h.b16 %v618
      %v735 = vunpack.c.l.b16 %v619
      %v736 = vunpack.c.h.b16 %v619
      %v737 = vunpack.c.l.b16 %v620
      %v738 = vunpack.c.h.b16 %v620
      %v739 = vunpack.c.l.b16 %v621
      %v740 = vunpack.c.h.b16 %v621
      %v741 = vunpack.c.l.b16 %v622
      %v742 = vunpack.c.h.b16 %v622
      %v743 = vunpack.c.l.b16 %v623
      %v744 = vunpack.c.h.b16 %v623
      %v745 = vunpack.c.l.b16 %v624
      %v746 = vunpack.c.h.b16 %v624
      %v747 = vunpack.c.l.b16 %v625
      %v748 = vunpack.c.h.b16 %v625
      %v749 = vunpack.c.l.b16 %v626
      %v750 = vunpack.c.h.b16 %v626
      %v751 = vunpack.c.l.b16 %v627
      %v752 = vunpack.c.h.b16 %v627
      %v753 = vunpack.c.l.b16 %v628
      %v754 = vunpack.c.h.b16 %v628
      %v755 = vunpack.c.l.b16 %v629
      %v756 = vunpack.c.h.b16 %v629
      %v757 = vunpack.c.l.b16 %v630
      %v758 = vunpack.c.h.b16 %v630
      %v759 = vunpack.c.l.b16 %v631
      %v760 = vunpack.c.h.b16 %v631
      %v761 = vunpack.c.l.b16 %v632
      %v762 = vunpack.c.h.b16 %v632
      %v763 = vunpack.c.l.b16 %v633
      %v764 = vunpack.c.h.b16 %v633
      %v765 = vunpack.c.l.b16 %v634
      %v766 = vunpack.c.h.b16 %v634
      %v767 = vunpack.c.l.b16 %v635
      %v768 = vunpack.c.h.b16 %v635
      %v769 = vunpack.c.l.b16 %v636
      %v770 = vunpack.c.h.b16 %v636
      %v771 = vunpack.c.l.b16 %v637
      %v772 = vunpack.c.h.b16 %v637
      %v773 = vunpack.c.l.b16 %v638
      %v774 = vunpack.c.h.b16 %v638
      %v775 = vpack.c.b16 %v713, %v711
      %v776 = vpack.c.b16 %v714, %v712
      %v777 = vpack.c.b16 %v717, %v715
      %v778 = vpack.c.b16 %v718, %v716
      %v779 = vpack.c.b16 %v721, %v719
      %v780 = vpack.c.b16 %v722, %v720
      %v781 = vpack.c.b16 %v725, %v723
      %v782 = vpack.c.b16 %v726, %v724
      %v783 = vpack.c.b16 %v729, %v727
      %v784 = vpack.c.b16 %v730, %v728
      %v785 = vpack.c.b16 %v733, %v731
      %v786 = vpack.c.b16 %v734, %v732
      %v787 = vpack.c.b16 %v737, %v735
      %v788 = vpack.c.b16 %v738, %v736
      %v789 = vpack.c.b16 %v741, %v739
      %v790 = vpack.c.b16 %v742, %v740
      %v791 = vpack.c.b16 %v745, %v743
      %v792 = vpack.c.b16 %v746, %v744
      %v793 = vpack.c.b16 %v749, %v747
      %v794 = vpack.c.b16 %v750, %v748
      %v795 = vpack.c.b16 %v753, %v751
      %v796 = vpack.c.b16 %v754, %v752
      %v797 = vpack.c.b16 %v757, %v755
      %v798 = vpack.c.b16 %v758, %v756
      %v799 = vpack.c.b16 %v761, %v759
      %v800 = vpack.c.b16 %v762, %v760
      %v801 = vpack.c.b16 %v765, %v763
      %v802 = vpack.c.b16 %v766, %v764
      %v803 = vpack.c.b16 %v769, %v767
      %v804 = vpack.c.b16 %v770, %v768
      %v805 = vpack.c.b16 %v773, %v771
      %v806 = vpack.c.b16 %v774, %v772
      %839 = vmatpush.bf16.msra.mxu0 %v789
      %840 = vmatpush.bf16.msra.mxu0 %v787
      %841 = vmatpush.bf16.msra.mxu0 %v785
      %842 = vmatpush.bf16.msra.mxu0 %v783
      %843 = vmatpush.bf16.msra.mxu0 %v781
      %844 = vmatpush.bf16.msra.mxu0 %v779
      %845 = vmatpush.bf16.msra.mxu0 %v777
      %846 = vmatpush.bf16.msra.mxu0 %v775
      %847 = vmatmul.bf16.gmra.mxu0 %v664
      %v848 = vpop.f32.mrf.mxu0
      %v849 = vadd.f32 0.0, %v848
      %v850 = vpop.f32.mrf.mxu0
      %v851 = vadd.f32 0.0, %v850
      %852 = vdwg.mxu0
      %853 = vmatpush.bf16.msra.mxu0 %v805
      %854 = vmatpush.bf16.msra.mxu0 %v803
      %855 = vmatpush.bf16.msra.mxu0 %v801
      %856 = vmatpush.bf16.msra.mxu0 %v799
      %857 = vmatpush.bf16.msra.mxu0 %v797
      %858 = vmatpush.bf16.msra.mxu0 %v795
      %859 = vmatpush.bf16.msra.mxu0 %v793
      %860 = vmatpush.bf16.msra.mxu0 %v791
      %861 = vmatmul.bf16.gmra.mxu0 %v676
      %v862 = vpop.f32.mrf.mxu0
      %v863 = vadd.f32 %v849, %v862
      %v864 = vpop.f32.mrf.mxu0
      %v865 = vadd.f32 %v851, %v864
      %866 = vdwg.mxu0
      %867 = vmatpush.bf16.msra.mxu0 %v790
      %868 = vmatpush.bf16.msra.mxu0 %v788
      %869 = vmatpush.bf16.msra.mxu0 %v786
      %870 = vmatpush.bf16.msra.mxu0 %v784
      %871 = vmatpush.bf16.msra.mxu0 %v782
      %872 = vmatpush.bf16.msra.mxu0 %v780
      %873 = vmatpush.bf16.msra.mxu0 %v778
      %874 = vmatpush.bf16.msra.mxu0 %v776
      %875 = vmatmul.bf16.gmra.mxu0 %v664
      %v876 = vpop.f32.mrf.mxu0
      %v877 = vadd.f32 0.0, %v876
      %v878 = vpop.f32.mrf.mxu0
      %v879 = vadd.f32 0.0, %v878
      %880 = vdwg.mxu0
      %881 = vmatpush.bf16.msra.mxu0 %v806
      %882 = vmatpush.bf16.msra.mxu0 %v804
      %883 = vmatpush.bf16.msra.mxu0 %v802
      %884 = vmatpush.bf16.msra.mxu0 %v800
      %885 = vmatpush.bf16.msra.mxu0 %v798
      %886 = vmatpush.bf16.msra.mxu0 %v796
      %887 = vmatpush.bf16.msra.mxu0 %v794
      %888 = vmatpush.bf16.msra.mxu0 %v792
      %889 = vmatmul.bf16.gmra.mxu0 %v676
      %v890 = vpop.f32.mrf.mxu0
      %v891 = vadd.f32 %v877, %v890
      %v892 = vpop.f32.mrf.mxu0
      %v893 = vadd.f32 %v879, %v892
      %894 = vdwg.mxu0
      %v929 = vunpack.c.l.b16 %v573
      %v930 = vunpack.c.h.b16 %v573
      %v931 = vunpack.c.l.b16 %v574
      %v932 = vunpack.c.h.b16 %v574
      %v933 = vunpack.c.l.b16 %v575
      %v934 = vunpack.c.h.b16 %v575
      %v935 = vunpack.c.l.b16 %v576
      %v936 = vunpack.c.h.b16 %v576
      %v937 = vunpack.c.l.b16 %v577
      %v938 = vunpack.c.h.b16 %v577
      %v939 = vunpack.c.l.b16 %v578
      %v940 = vunpack.c.h.b16 %v578
      %v941 = vunpack.c.l.b16 %v579
      %v942 = vunpack.c.h.b16 %v579
      %v943 = vunpack.c.l.b16 %v580
      %v944 = vunpack.c.h.b16 %v580
      %v945 = vunpack.c.l.b16 %v581
      %v946 = vunpack.c.h.b16 %v581
      %v947 = vunpack.c.l.b16 %v582
      %v948 = vunpack.c.h.b16 %v582
      %v949 = vunpack.c.l.b16 %v583
      %v950 = vunpack.c.h.b16 %v583
      %v951 = vunpack.c.l.b16 %v584
      %v952 = vunpack.c.h.b16 %v584
      %v953 = vunpack.c.l.b16 %v585
      %v954 = vunpack.c.h.b16 %v585
      %v955 = vunpack.c.l.b16 %v586
      %v956 = vunpack.c.h.b16 %v586
      %v957 = vunpack.c.l.b16 %v587
      %v958 = vunpack.c.h.b16 %v587
      %v959 = vunpack.c.l.b16 %v588
      %v960 = vunpack.c.h.b16 %v588
      %v961 = vunpack.c.l.b16 %v589
      %v962 = vunpack.c.h.b16 %v589
      %v963 = vunpack.c.l.b16 %v590
      %v964 = vunpack.c.h.b16 %v590
      %v965 = vunpack.c.l.b16 %v591
      %v966 = vunpack.c.h.b16 %v591
      %v967 = vunpack.c.l.b16 %v592
      %v968 = vunpack.c.h.b16 %v592
      %v969 = vunpack.c.l.b16 %v593
      %v970 = vunpack.c.h.b16 %v593
      %v971 = vunpack.c.l.b16 %v594
      %v972 = vunpack.c.h.b16 %v594
      %v973 = vunpack.c.l.b16 %v595
      %v974 = vunpack.c.h.b16 %v595
      %v975 = vunpack.c.l.b16 %v596
      %v976 = vunpack.c.h.b16 %v596
      %v977 = vunpack.c.l.b16 %v597
      %v978 = vunpack.c.h.b16 %v597
      %v979 = vunpack.c.l.b16 %v598
      %v980 = vunpack.c.h.b16 %v598
      %v981 = vunpack.c.l.b16 %v599
      %v982 = vunpack.c.h.b16 %v599
      %v983 = vunpack.c.l.b16 %v600
      %v984 = vunpack.c.h.b16 %v600
      %v985 = vunpack.c.l.b16 %v601
      %v986 = vunpack.c.h.b16 %v601
      %v987 = vunpack.c.l.b16 %v602
      %v988 = vunpack.c.h.b16 %v602
      %v989 = vunpack.c.l.b16 %v603
      %v990 = vunpack.c.h.b16 %v603
      %v991 = vunpack.c.l.b16 %v604
      %v992 = vunpack.c.h.b16 %v604
      %v993 = vpack.c.b16 %v931, %v929
      %v994 = vpack.c.b16 %v932, %v930
      %v995 = vpack.c.b16 %v935, %v933
      %v996 = vpack.c.b16 %v936, %v934
      %v997 = vpack.c.b16 %v939, %v937
      %v998 = vpack.c.b16 %v940, %v938
      %v999 = vpack.c.b16 %v943, %v941
      %v1000 = vpack.c.b16 %v944, %v942
      %v1001 = vpack.c.b16 %v947, %v945
      %v1002 = vpack.c.b16 %v948, %v946
      %v1003 = vpack.c.b16 %v951, %v949
      %v1004 = vpack.c.b16 %v952, %v950
      %v1005 = vpack.c.b16 %v955, %v953
      %v1006 = vpack.c.b16 %v956, %v954
      %v1007 = vpack.c.b16 %v959, %v957
      %v1008 = vpack.c.b16 %v960, %v958
      %v1009 = vpack.c.b16 %v963, %v961
      %v1010 = vpack.c.b16 %v964, %v962
      %v1011 = vpack.c.b16 %v967, %v965
      %v1012 = vpack.c.b16 %v968, %v966
      %v1013 = vpack.c.b16 %v971, %v969
      %v1014 = vpack.c.b16 %v972, %v970
      %v1015 = vpack.c.b16 %v975, %v973
      %v1016 = vpack.c.b16 %v976, %v974
      %v1017 = vpack.c.b16 %v979, %v977
      %v1018 = vpack.c.b16 %v980, %v978
      %v1019 = vpack.c.b16 %v983, %v981
      %v1020 = vpack.c.b16 %v984, %v982
      %v1021 = vpack.c.b16 %v987, %v985
      %v1022 = vpack.c.b16 %v988, %v986
      %v1023 = vpack.c.b16 %v991, %v989
      %v1024 = vpack.c.b16 %v992, %v990
      %1057 = vmatpush.bf16.msra.mxu0 %v1007
      %1058 = vmatpush.bf16.msra.mxu0 %v1005
      %1059 = vmatpush.bf16.msra.mxu0 %v1003
      %1060 = vmatpush.bf16.msra.mxu0 %v1001
      %1061 = vmatpush.bf16.msra.mxu0 %v999
      %1062 = vmatpush.bf16.msra.mxu0 %v997
      %1063 = vmatpush.bf16.msra.mxu0 %v995
      %1064 = vmatpush.bf16.msra.mxu0 %v993
      %1065 = vmatmul.bf16.gmra.mxu0 %v648
      %v1066 = vpop.f32.mrf.mxu0
      %v1067 = vadd.f32 %v863, %v1066
      %v1068 = vpop.f32.mrf.mxu0
      %v1069 = vadd.f32 %v865, %v1068
      %1070 = vdwg.mxu0
      %1071 = vmatpush.bf16.msra.mxu0 %v1023
      %1072 = vmatpush.bf16.msra.mxu0 %v1021
      %1073 = vmatpush.bf16.msra.mxu0 %v1019
      %1074 = vmatpush.bf16.msra.mxu0 %v1017
      %1075 = vmatpush.bf16.msra.mxu0 %v1015
      %1076 = vmatpush.bf16.msra.mxu0 %v1013
      %1077 = vmatpush.bf16.msra.mxu0 %v1011
      %1078 = vmatpush.bf16.msra.mxu0 %v1009
      %1079 = vmatmul.bf16.gmra.mxu0 %v649
      %v1080 = vpop.f32.mrf.mxu0
      %v1081 = vadd.f32 %v1067, %v1080
      %v1082 = vpop.f32.mrf.mxu0
      %v1083 = vadd.f32 %v1069, %v1082
      %1084 = vdwg.mxu0
      %1085 = vmatpush.bf16.msra.mxu0 %v1008
      %1086 = vmatpush.bf16.msra.mxu0 %v1006
      %1087 = vmatpush.bf16.msra.mxu0 %v1004
      %1088 = vmatpush.bf16.msra.mxu0 %v1002
      %1089 = vmatpush.bf16.msra.mxu0 %v1000
      %1090 = vmatpush.bf16.msra.mxu0 %v998
      %1091 = vmatpush.bf16.msra.mxu0 %v996
      %1092 = vmatpush.bf16.msra.mxu0 %v994
      %1093 = vmatmul.bf16.gmra.mxu0 %v648
      %v1094 = vpop.f32.mrf.mxu0
      %v1095 = vadd.f32 %v891, %v1094
      %v1096 = vpop.f32.mrf.mxu0
      %v1097 = vadd.f32 %v893, %v1096
      %1098 = vdwg.mxu0
      %1099 = vmatpush.bf16.msra.mxu0 %v1024
      %1100 = vmatpush.bf16.msra.mxu0 %v1022
      %1101 = vmatpush.bf16.msra.mxu0 %v1020
      %1102 = vmatpush.bf16.msra.mxu0 %v1018
      %1103 = vmatpush.bf16.msra.mxu0 %v1016
      %1104 = vmatpush.bf16.msra.mxu0 %v1014
      %1105 = vmatpush.bf16.msra.mxu0 %v1012
      %1106 = vmatpush.bf16.msra.mxu0 %v1010
      %1107 = vmatmul.bf16.gmra.mxu0 %v649
      %v1108 = vpop.f32.mrf.mxu0
      %v1109 = vadd.f32 %v1095, %v1108
      %v1110 = vpop.f32.mrf.mxu0
      %v1111 = vadd.f32 %v1097, %v1110
      %1112 = vdwg.mxu0
      %v1113 = vld [vmem:[%s542] sm:$0xee]
      %s1114 = scalar_lea.vmem %s1, 512
      %v1115 = vld [vmem:[%s1114] sm:$0xff]
      %v1116 = vld [vmem:[%s1114 + $0x8] sm:$0xff]
      %v1117 = vld [vmem:[%s1114 + $0x10] sm:$0xff]
      %v1118 = vld [vmem:[%s1114 + $0x18] sm:$0xff]
      %v1119 = vld [vmem:[%s1114 + $0x20] sm:$0xff]
      %v1120 = vld [vmem:[%s1114 + $0x28] sm:$0xff]
      %v1121 = vld [vmem:[%s1114 + $0x30] sm:$0xff]
      %v1122 = vld [vmem:[%s1114 + $0x38] sm:$0xff]
      %v1123 = vld [vmem:[%s1114 + $0x40] sm:$0xff]
      %v1124 = vld [vmem:[%s1114 + $0x48] sm:$0xff]
      %v1125 = vld [vmem:[%s1114 + $0x50] sm:$0xff]
      %v1126 = vld [vmem:[%s1114 + $0x58] sm:$0xff]
      %v1127 = vld [vmem:[%s1114 + $0x60] sm:$0xff]
      %v1128 = vld [vmem:[%s1114 + $0x68] sm:$0xff]
      %v1129 = vld [vmem:[%s1114 + $0x70] sm:$0xff]
      %v1130 = vld [vmem:[%s1114 + $0x78] sm:$0xff]
      %v1131 = vld [vmem:[%s1114 + $0x80] sm:$0xff]
      %v1132 = vld [vmem:[%s1114 + $0x88] sm:$0xff]
      %v1133 = vld [vmem:[%s1114 + $0x90] sm:$0xff]
      %v1134 = vld [vmem:[%s1114 + $0x98] sm:$0xff]
      %v1135 = vld [vmem:[%s1114 + $0xa0] sm:$0xff]
      %v1136 = vld [vmem:[%s1114 + $0xa8] sm:$0xff]
      %v1137 = vld [vmem:[%s1114 + $0xb0] sm:$0xff]
      %v1138 = vld [vmem:[%s1114 + $0xb8] sm:$0xff]
      %v1139 = vld [vmem:[%s1114 + $0xc0] sm:$0xff]
      %v1140 = vld [vmem:[%s1114 + $0xc8] sm:$0xff]
      %v1141 = vld [vmem:[%s1114 + $0xd0] sm:$0xff]
      %v1142 = vld [vmem:[%s1114 + $0xd8] sm:$0xff]
      %v1143 = vld [vmem:[%s1114 + $0xe0] sm:$0xff]
      %v1144 = vld [vmem:[%s1114 + $0xe8] sm:$0xff]
      %v1145 = vld [vmem:[%s1114 + $0xf0] sm:$0xff]
      %v1146 = vld [vmem:[%s1114 + $0xf8] sm:$0xff]
      %v1148 = vunpack.c.l.b16 %v1113
      %v1149 = vunpack.c.h.b16 %v1113
      %v1150 = vpack.c.b16 %v644, %v1148
      %v1151 = vpack.c.b16 %v645, %v1149
      %vm1152 = vcmask 1046528
      %v1153 = vrot.slane %v1150, 1
      %v1154 = vrot.slane %v650, 1
      %v1155 = vsel %vm1152, %v1153, %v1154
      %v1156 = vrot.slane %v1151, 1
      %v1157 = vrot.slane %v651, 1
      %v1158 = vsel %vm1152, %v1156, %v1157
      %v1193 = vunpack.c.l.b16 %v1115
      %v1194 = vunpack.c.h.b16 %v1115
      %v1195 = vunpack.c.l.b16 %v1116
      %v1196 = vunpack.c.h.b16 %v1116
      %v1197 = vunpack.c.l.b16 %v1117
      %v1198 = vunpack.c.h.b16 %v1117
      %v1199 = vunpack.c.l.b16 %v1118
      %v1200 = vunpack.c.h.b16 %v1118
      %v1201 = vunpack.c.l.b16 %v1119
      %v1202 = vunpack.c.h.b16 %v1119
      %v1203 = vunpack.c.l.b16 %v1120
      %v1204 = vunpack.c.h.b16 %v1120
      %v1205 = vunpack.c.l.b16 %v1121
      %v1206 = vunpack.c.h.b16 %v1121
      %v1207 = vunpack.c.l.b16 %v1122
      %v1208 = vunpack.c.h.b16 %v1122
      %v1209 = vunpack.c.l.b16 %v1123
      %v1210 = vunpack.c.h.b16 %v1123
      %v1211 = vunpack.c.l.b16 %v1124
      %v1212 = vunpack.c.h.b16 %v1124
      %v1213 = vunpack.c.l.b16 %v1125
      %v1214 = vunpack.c.h.b16 %v1125
      %v1215 = vunpack.c.l.b16 %v1126
      %v1216 = vunpack.c.h.b16 %v1126
      %v1217 = vunpack.c.l.b16 %v1127
      %v1218 = vunpack.c.h.b16 %v1127
      %v1219 = vunpack.c.l.b16 %v1128
      %v1220 = vunpack.c.h.b16 %v1128
      %v1221 = vunpack.c.l.b16 %v1129
      %v1222 = vunpack.c.h.b16 %v1129
      %v1223 = vunpack.c.l.b16 %v1130
      %v1224 = vunpack.c.h.b16 %v1130
      %v1225 = vunpack.c.l.b16 %v1131
      %v1226 = vunpack.c.h.b16 %v1131
      %v1227 = vunpack.c.l.b16 %v1132
      %v1228 = vunpack.c.h.b16 %v1132
      %v1229 = vunpack.c.l.b16 %v1133
      %v1230 = vunpack.c.h.b16 %v1133
      %v1231 = vunpack.c.l.b16 %v1134
      %v1232 = vunpack.c.h.b16 %v1134
      %v1233 = vunpack.c.l.b16 %v1135
      %v1234 = vunpack.c.h.b16 %v1135
      %v1235 = vunpack.c.l.b16 %v1136
      %v1236 = vunpack.c.h.b16 %v1136
      %v1237 = vunpack.c.l.b16 %v1137
      %v1238 = vunpack.c.h.b16 %v1137
      %v1239 = vunpack.c.l.b16 %v1138
      %v1240 = vunpack.c.h.b16 %v1138
      %v1241 = vunpack.c.l.b16 %v1139
      %v1242 = vunpack.c.h.b16 %v1139
      %v1243 = vunpack.c.l.b16 %v1140
      %v1244 = vunpack.c.h.b16 %v1140
      %v1245 = vunpack.c.l.b16 %v1141
      %v1246 = vunpack.c.h.b16 %v1141
      %v1247 = vunpack.c.l.b16 %v1142
      %v1248 = vunpack.c.h.b16 %v1142
      %v1249 = vunpack.c.l.b16 %v1143
      %v1250 = vunpack.c.h.b16 %v1143
      %v1251 = vunpack.c.l.b16 %v1144
      %v1252 = vunpack.c.h.b16 %v1144
      %v1253 = vunpack.c.l.b16 %v1145
      %v1254 = vunpack.c.h.b16 %v1145
      %v1255 = vunpack.c.l.b16 %v1146
      %v1256 = vunpack.c.h.b16 %v1146
      %v1257 = vpack.c.b16 %v1195, %v1193
      %v1258 = vpack.c.b16 %v1196, %v1194
      %v1259 = vpack.c.b16 %v1199, %v1197
      %v1260 = vpack.c.b16 %v1200, %v1198
      %v1261 = vpack.c.b16 %v1203, %v1201
      %v1262 = vpack.c.b16 %v1204, %v1202
      %v1263 = vpack.c.b16 %v1207, %v1205
      %v1264 = vpack.c.b16 %v1208, %v1206
      %v1265 = vpack.c.b16 %v1211, %v1209
      %v1266 = vpack.c.b16 %v1212, %v1210
      %v1267 = vpack.c.b16 %v1215, %v1213
      %v1268 = vpack.c.b16 %v1216, %v1214
      %v1269 = vpack.c.b16 %v1219, %v1217
      %v1270 = vpack.c.b16 %v1220, %v1218
      %v1271 = vpack.c.b16 %v1223, %v1221
      %v1272 = vpack.c.b16 %v1224, %v1222
      %v1273 = vpack.c.b16 %v1227, %v1225
      %v1274 = vpack.c.b16 %v1228, %v1226
      %v1275 = vpack.c.b16 %v1231, %v1229
      %v1276 = vpack.c.b16 %v1232, %v1230
      %v1277 = vpack.c.b16 %v1235, %v1233
      %v1278 = vpack.c.b16 %v1236, %v1234
      %v1279 = vpack.c.b16 %v1239, %v1237
      %v1280 = vpack.c.b16 %v1240, %v1238
      %v1281 = vpack.c.b16 %v1243, %v1241
      %v1282 = vpack.c.b16 %v1244, %v1242
      %v1283 = vpack.c.b16 %v1247, %v1245
      %v1284 = vpack.c.b16 %v1248, %v1246
      %v1285 = vpack.c.b16 %v1251, %v1249
      %v1286 = vpack.c.b16 %v1252, %v1250
      %v1287 = vpack.c.b16 %v1255, %v1253
      %v1288 = vpack.c.b16 %v1256, %v1254
      %1321 = vmatpush.bf16.msra.mxu0 %v1271
      %1322 = vmatpush.bf16.msra.mxu0 %v1269
      %1323 = vmatpush.bf16.msra.mxu0 %v1267
      %1324 = vmatpush.bf16.msra.mxu0 %v1265
      %1325 = vmatpush.bf16.msra.mxu0 %v1263
      %1326 = vmatpush.bf16.msra.mxu0 %v1261
      %1327 = vmatpush.bf16.msra.mxu0 %v1259
      %1328 = vmatpush.bf16.msra.mxu0 %v1257
      %1329 = vmatmul.bf16.gmra.mxu0 %v1155
      %v1330 = vpop.f32.mrf.mxu0
      %v1331 = vadd.f32 0.0, %v1330
      %v1332 = vpop.f32.mrf.mxu0
      %v1333 = vadd.f32 0.0, %v1332
      %1334 = vdwg.mxu0
      %1335 = vmatpush.bf16.msra.mxu0 %v1287
      %1336 = vmatpush.bf16.msra.mxu0 %v1285
      %1337 = vmatpush.bf16.msra.mxu0 %v1283
      %1338 = vmatpush.bf16.msra.mxu0 %v1281
      %1339 = vmatpush.bf16.msra.mxu0 %v1279
      %1340 = vmatpush.bf16.msra.mxu0 %v1277
      %1341 = vmatpush.bf16.msra.mxu0 %v1275
      %1342 = vmatpush.bf16.msra.mxu0 %v1273
      %1343 = vmatmul.bf16.gmra.mxu0 %v1158
      %v1344 = vpop.f32.mrf.mxu0
      %v1345 = vadd.f32 %v1331, %v1344
      %v1346 = vpop.f32.mrf.mxu0
      %v1347 = vadd.f32 %v1333, %v1346
      %1348 = vdwg.mxu0
      %1349 = vmatpush.bf16.msra.mxu0 %v1272
      %1350 = vmatpush.bf16.msra.mxu0 %v1270
      %1351 = vmatpush.bf16.msra.mxu0 %v1268
      %1352 = vmatpush.bf16.msra.mxu0 %v1266
      %1353 = vmatpush.bf16.msra.mxu0 %v1264
      %1354 = vmatpush.bf16.msra.mxu0 %v1262
      %1355 = vmatpush.bf16.msra.mxu0 %v1260
      %1356 = vmatpush.bf16.msra.mxu0 %v1258
      %1357 = vmatmul.bf16.gmra.mxu0 %v1155
      %v1358 = vpop.f32.mrf.mxu0
      %v1359 = vadd.f32 0.0, %v1358
      %v1360 = vpop.f32.mrf.mxu0
      %v1361 = vadd.f32 0.0, %v1360
      %1362 = vdwg.mxu0
      %1363 = vmatpush.bf16.msra.mxu0 %v1288
      %1364 = vmatpush.bf16.msra.mxu0 %v1286
      %1365 = vmatpush.bf16.msra.mxu0 %v1284
      %1366 = vmatpush.bf16.msra.mxu0 %v1282
      %1367 = vmatpush.bf16.msra.mxu0 %v1280
      %1368 = vmatpush.bf16.msra.mxu0 %v1278
      %1369 = vmatpush.bf16.msra.mxu0 %v1276
      %1370 = vmatpush.bf16.msra.mxu0 %v1274
      %1371 = vmatmul.bf16.gmra.mxu0 %v1158
      %v1372 = vpop.f32.mrf.mxu0
      %v1373 = vadd.f32 %v1359, %v1372
      %v1374 = vpop.f32.mrf.mxu0
      %v1375 = vadd.f32 %v1361, %v1374
      %1376 = vdwg.mxu0
      %v1377 = vadd.f32 %v1081, %v1345
      %v1378 = vadd.f32 %v1109, %v1373
      %v1379 = vadd.f32 %v1083, %v1347
      %v1380 = vadd.f32 %v1111, %v1375
      %v1381 = vld [vmem:[%s2] sm:$0x3]
      %v1383 = vperm.slane %v1381, 0
      %v1384 = vperm.slane %v1381, 1
      %v1387 = vadd.f32 %v1377, %v1383
      %v1388 = vadd.f32 %v1378, %v1384
      %v1389 = vadd.f32 %v1379, %v1383
      %v1390 = vadd.f32 %v1380, %v1384
      %vm1391 = vcmp.gt.f32.partialorder %v1387, 0.0
      %vm1392 = vcmp.gt.f32.partialorder %v1388, 0.0
      %vm1393 = vcmp.gt.f32.partialorder %v1389, 0.0
      %vm1394 = vcmp.gt.f32.partialorder %v1390, 0.0
      %v1395 = vmul.f32 %v1387, 0.2
      %v1396 = vmul.f32 %v1388, 0.2
      %v1397 = vmul.f32 %v1389, 0.2
      %v1398 = vmul.f32 %v1390, 0.2
      %v1399 = vsel %vm1391, %v1387, %v1395
      %v1400 = vsel %vm1392, %v1388, %v1396
      %v1401 = vsel %vm1393, %v1389, %v1397
      %v1402 = vsel %vm1394, %v1390, %v1398
      %v1403 = vpack.c.bf16 %v1400, %v1399
      %v1404 = vpack.c.bf16 %v1402, %v1401
      %vm1405 = vsmask.f32 4368
      %vm1406 = vmor %vm556, %vm1405
      %v1408 = vshrl.u32 %v1403, 16
      %v1410 = vrot.slane %v1408, 7
      %v1411 = vshll.u32 %v1403, 16
      %v1413 = vor.u32 %v1410, %v1411
      %v1414 = vrot.slane %v1410, 4
      %v1416 = vshrl.u32 %v1404, 16
      %v1418 = vrot.slane %v1416, 7
      %v1419 = vshll.u32 %v1404, 16
      %v1421 = vor.u32 %v1418, %v1419
      %v1422 = vsel %vm1406, %v1414, %v1421
      %v1423 = vrot.slane %v1418, 4
      %vm1427 = vcmask 1043456
      %vm1428 = vsmask.f32 7938
      %vm1429 = vmand %vm1427, %vm1428
      %vm1430 = vcmask 1047556
      %vm1431 = vsmask.f32 7954
      %vm1432 = vmand %vm1430, %vm1431
      %vm1433 = vmor %vm1432, %vm1429
      %v1434 = vld [vmem:[#allocation2] sm:$0xff]
      %v1435 = vsel %vm1433, %v1413, %v1434
      %1436 = vst [vmem:[#allocation2] sm:$0xff] %v1435
      %1437 = vst [vmem:[#allocation2 + $0x8] sm:$0xff] %v1422
      %v1438 = vld [vmem:[#allocation2 + $0x10] sm:$0x11]
      %v1439 = vsel %vm561, %v1423, %v1438
      %1440 = vst [vmem:[#allocation2 + $0x10] sm:$0x11] %v1439
      %v1441 = vld [vmem:[#allocation2] sm:$0xff]
      %v1442 = vld [vmem:[#allocation2 + $0x8] sm:$0xff]
      %v1443 = vld [vmem:[%s3] sm:$0xff]
      %v1444 = vld [vmem:[%s3 + $0x8] sm:$0xff]
      %v1445 = vld [vmem:[%s3 + $0x10] sm:$0xff]
      %v1446 = vld [vmem:[%s3 + $0x18] sm:$0xff]
      %v1447 = vld [vmem:[%s3 + $0x20] sm:$0xff]
      %v1448 = vld [vmem:[%s3 + $0x28] sm:$0xff]
      %v1449 = vld [vmem:[%s3 + $0x30] sm:$0xff]
      %v1450 = vld [vmem:[%s3 + $0x38] sm:$0xff]
      %v1451 = vld [vmem:[%s3 + $0x40] sm:$0xff]
      %v1452 = vld [vmem:[%s3 + $0x48] sm:$0xff]
      %v1453 = vld [vmem:[%s3 + $0x50] sm:$0xff]
      %v1454 = vld [vmem:[%s3 + $0x58] sm:$0xff]
      %v1455 = vld [vmem:[%s3 + $0x60] sm:$0xff]
      %v1456 = vld [vmem:[%s3 + $0x68] sm:$0xff]
      %v1457 = vld [vmem:[%s3 + $0x70] sm:$0xff]
      %v1458 = vld [vmem:[%s3 + $0x78] sm:$0xff]
      %v1459 = vld [vmem:[%s3 + $0x80] sm:$0xff]
      %v1460 = vld [vmem:[%s3 + $0x88] sm:$0xff]
      %v1461 = vld [vmem:[%s3 + $0x90] sm:$0xff]
      %v1462 = vld [vmem:[%s3 + $0x98] sm:$0xff]
      %v1463 = vld [vmem:[%s3 + $0xa0] sm:$0xff]
      %v1464 = vld [vmem:[%s3 + $0xa8] sm:$0xff]
      %v1465 = vld [vmem:[%s3 + $0xb0] sm:$0xff]
      %v1466 = vld [vmem:[%s3 + $0xb8] sm:$0xff]
      %v1467 = vld [vmem:[%s3 + $0xc0] sm:$0xff]
      %v1468 = vld [vmem:[%s3 + $0xc8] sm:$0xff]
      %v1469 = vld [vmem:[%s3 + $0xd0] sm:$0xff]
      %v1470 = vld [vmem:[%s3 + $0xd8] sm:$0xff]
      %v1471 = vld [vmem:[%s3 + $0xe0] sm:$0xff]
      %v1472 = vld [vmem:[%s3 + $0xe8] sm:$0xff]
      %v1473 = vld [vmem:[%s3 + $0xf0] sm:$0xff]
      %v1474 = vld [vmem:[%s3 + $0xf8] sm:$0xff]
      %v1475 = vld [vmem:[#allocation2 + $0x10] sm:$0x11]
      %s1476 = scalar_lea.vmem %s3, 256
      %v1477 = vld [vmem:[%s1476] sm:$0xff]
      %v1478 = vld [vmem:[%s1476 + $0x8] sm:$0xff]
      %v1479 = vld [vmem:[%s1476 + $0x10] sm:$0xff]
      %v1480 = vld [vmem:[%s1476 + $0x18] sm:$0xff]
      %v1481 = vld [vmem:[%s1476 + $0x20] sm:$0xff]
      %v1482 = vld [vmem:[%s1476 + $0x28] sm:$0xff]
      %v1483 = vld [vmem:[%s1476 + $0x30] sm:$0xff]
      %v1484 = vld [vmem:[%s1476 + $0x38] sm:$0xff]
      %v1485 = vld [vmem:[%s1476 + $0x40] sm:$0xff]
      %v1486 = vld [vmem:[%s1476 + $0x48] sm:$0xff]
      %v1487 = vld [vmem:[%s1476 + $0x50] sm:$0xff]
      %v1488 = vld [vmem:[%s1476 + $0x58] sm:$0xff]
      %v1489 = vld [vmem:[%s1476 + $0x60] sm:$0xff]
      %v1490 = vld [vmem:[%s1476 + $0x68] sm:$0xff]
      %v1491 = vld [vmem:[%s1476 + $0x70] sm:$0xff]
      %v1492 = vld [vmem:[%s1476 + $0x78] sm:$0xff]
      %v1493 = vld [vmem:[%s1476 + $0x80] sm:$0xff]
      %v1494 = vld [vmem:[%s1476 + $0x88] sm:$0xff]
      %v1495 = vld [vmem:[%s1476 + $0x90] sm:$0xff]
      %v1496 = vld [vmem:[%s1476 + $0x98] sm:$0xff]
      %v1497 = vld [vmem:[%s1476 + $0xa0] sm:$0xff]
      %v1498 = vld [vmem:[%s1476 + $0xa8] sm:$0xff]
      %v1499 = vld [vmem:[%s1476 + $0xb0] sm:$0xff]
      %v1500 = vld [vmem:[%s1476 + $0xb8] sm:$0xff]
      %v1501 = vld [vmem:[%s1476 + $0xc0] sm:$0xff]
      %v1502 = vld [vmem:[%s1476 + $0xc8] sm:$0xff]
      %v1503 = vld [vmem:[%s1476 + $0xd0] sm:$0xff]
      %v1504 = vld [vmem:[%s1476 + $0xd8] sm:$0xff]
      %v1505 = vld [vmem:[%s1476 + $0xe0] sm:$0xff]
      %v1506 = vld [vmem:[%s1476 + $0xe8] sm:$0xff]
      %v1507 = vld [vmem:[%s1476 + $0xf0] sm:$0xff]
      %v1508 = vld [vmem:[%s1476 + $0xf8] sm:$0xff]
      %v1512 = vunpack.c.l.b16 %v1441
      %v1513 = vunpack.c.h.b16 %v1441
      %v1514 = vunpack.c.l.b16 %v1442
      %v1515 = vunpack.c.h.b16 %v1442
      %v1516 = vunpack.c.l.b16 %v1475
      %v1517 = vunpack.c.h.b16 %v1475
      %v1518 = vpack.c.b16 %v1514, %v1512
      %v1519 = vpack.c.b16 %v1515, %v1513
      %v1520 = vpack.c.b16 %v1516, %v1516
      %v1521 = vpack.c.b16 %v1517, %v1517
      %v1523 = vshrl.u32 %v1518, 16
      %v1525 = vshll.u32 %v1518, 16
      %v1527 = vrot.slane %v1525, 1
      %v1528 = vor.u32 %v1523, %v1527
      %v1530 = vshll.u32 %v1520, 16
      %v1532 = vrot.slane %v1530, 1
      %v1533 = vsel %vm652, %v1528, %v1532
      %v1535 = vshrl.u32 %v1519, 16
      %v1537 = vshll.u32 %v1519, 16
      %v1539 = vrot.slane %v1537, 1
      %v1540 = vor.u32 %v1535, %v1539
      %v1542 = vshll.u32 %v1521, 16
      %v1544 = vrot.slane %v1542, 1
      %v1545 = vsel %vm652, %v1540, %v1544
      %v1580 = vunpack.c.l.b16 %v1477
      %v1581 = vunpack.c.h.b16 %v1477
      %v1582 = vunpack.c.l.b16 %v1478
      %v1583 = vunpack.c.h.b16 %v1478
      %v1584 = vunpack.c.l.b16 %v1479
      %v1585 = vunpack.c.h.b16 %v1479
      %v1586 = vunpack.c.l.b16 %v1480
      %v1587 = vunpack.c.h.b16 %v1480
      %v1588 = vunpack.c.l.b16 %v1481
      %v1589 = vunpack.c.h.b16 %v1481
      %v1590 = vunpack.c.l.b16 %v1482
      %v1591 = vunpack.c.h.b16 %v1482
      %v1592 = vunpack.c.l.b16 %v1483
      %v1593 = vunpack.c.h.b16 %v1483
      %v1594 = vunpack.c.l.b16 %v1484
      %v1595 = vunpack.c.h.b16 %v1484
      %v1596 = vunpack.c.l.b16 %v1485
      %v1597 = vunpack.c.h.b16 %v1485
      %v1598 = vunpack.c.l.b16 %v1486
      %v1599 = vunpack.c.h.b16 %v1486
      %v1600 = vunpack.c.l.b16 %v1487
      %v1601 = vunpack.c.h.b16 %v1487
      %v1602 = vunpack.c.l.b16 %v1488
      %v1603 = vunpack.c.h.b16 %v1488
      %v1604 = vunpack.c.l.b16 %v1489
      %v1605 = vunpack.c.h.b16 %v1489
      %v1606 = vunpack.c.l.b16 %v1490
      %v1607 = vunpack.c.h.b16 %v1490
      %v1608 = vunpack.c.l.b16 %v1491
      %v1609 = vunpack.c.h.b16 %v1491
      %v1610 = vunpack.c.l.b16 %v1492
      %v1611 = vunpack.c.h.b16 %v1492
      %v1612 = vunpack.c.l.b16 %v1493
      %v1613 = vunpack.c.h.b16 %v1493
      %v1614 = vunpack.c.l.b16 %v1494
      %v1615 = vunpack.c.h.b16 %v1494
      %v1616 = vunpack.c.l.b16 %v1495
      %v1617 = vunpack.c.h.b16 %v1495
      %v1618 = vunpack.c.l.b16 %v1496
      %v1619 = vunpack.c.h.b16 %v1496
      %v1620 = vunpack.c.l.b16 %v1497
      %v1621 = vunpack.c.h.b16 %v1497
      %v1622 = vunpack.c.l.b16 %v1498
      %v1623 = vunpack.c.h.b16 %v1498
      %v1624 = vunpack.c.l.b16 %v1499
      %v1625 = vunpack.c.h.b16 %v1499
      %v1626 = vunpack.c.l.b16 %v1500
      %v1627 = vunpack.c.h.b16 %v1500
      %v1628 = vunpack.c.l.b16 %v1501
      %v1629 = vunpack.c.h.b16 %v1501
      %v1630 = vunpack.c.l.b16 %v1502
      %v1631 = vunpack.c.h.b16 %v1502
      %v1632 = vunpack.c.l.b16 %v1503
      %v1633 = vunpack.c.h.b16 %v1503
      %v1634 = vunpack.c.l.b16 %v1504
      %v1635 = vunpack.c.h.b16 %v1504
      %v1636 = vunpack.c.l.b16 %v1505
      %v1637 = vunpack.c.h.b16 %v1505
      %v1638 = vunpack.c.l.b16 %v1506
      %v1639 = vunpack.c.h.b16 %v1506
      %v1640 = vunpack.c.l.b16 %v1507
      %v1641 = vunpack.c.h.b16 %v1507
      %v1642 = vunpack.c.l.b16 %v1508
      %v1643 = vunpack.c.h.b16 %v1508
      %v1644 = vpack.c.b16 %v1582, %v1580
      %v1645 = vpack.c.b16 %v1583, %v1581
      %v1646 = vpack.c.b16 %v1586, %v1584
      %v1647 = vpack.c.b16 %v1587, %v1585
      %v1648 = vpack.c.b16 %v1590, %v1588
      %v1649 = vpack.c.b16 %v1591, %v1589
      %v1650 = vpack.c.b16 %v1594, %v1592
      %v1651 = vpack.c.b16 %v1595, %v1593
      %v1652 = vpack.c.b16 %v1598, %v1596
      %v1653 = vpack.c.b16 %v1599, %v1597
      %v1654 = vpack.c.b16 %v1602, %v1600
      %v1655 = vpack.c.b16 %v1603, %v1601
      %v1656 = vpack.c.b16 %v1606, %v1604
      %v1657 = vpack.c.b16 %v1607, %v1605
      %v1658 = vpack.c.b16 %v1610, %v1608
      %v1659 = vpack.c.b16 %v1611, %v1609
      %v1660 = vpack.c.b16 %v1614, %v1612
      %v1661 = vpack.c.b16 %v1615, %v1613
      %v1662 = vpack.c.b16 %v1618, %v1616
      %v1663 = vpack.c.b16 %v1619, %v1617
      %v1664 = vpack.c.b16 %v1622, %v1620
      %v1665 = vpack.c.b16 %v1623, %v1621
      %v1666 = vpack.c.b16 %v1626, %v1624
      %v1667 = vpack.c.b16 %v1627, %v1625
      %v1668 = vpack.c.b16 %v1630, %v1628
      %v1669 = vpack.c.b16 %v1631, %v1629
      %v1670 = vpack.c.b16 %v1634, %v1632
      %v1671 = vpack.c.b16 %v1635, %v1633
      %v1672 = vpack.c.b16 %v1638, %v1636
      %v1673 = vpack.c.b16 %v1639, %v1637
      %v1674 = vpack.c.b16 %v1642, %v1640
      %v1675 = vpack.c.b16 %v1643, %v1641
      %1708 = vmatpush.bf16.msra.mxu0 %v1658
      %1709 = vmatpush.bf16.msra.mxu0 %v1656
      %1710 = vmatpush.bf16.msra.mxu0 %v1654
      %1711 = vmatpush.bf16.msra.mxu0 %v1652
      %1712 = vmatpush.bf16.msra.mxu0 %v1650
      %1713 = vmatpush.bf16.msra.mxu0 %v1648
      %1714 = vmatpush.bf16.msra.mxu0 %v1646
      %1715 = vmatpush.bf16.msra.mxu0 %v1644
      %1716 = vmatmul.bf16.gmra.mxu0 %v1533
      %v1717 = vpop.f32.mrf.mxu0
      %v1718 = vadd.f32 0.0, %v1717
      %v1719 = vpop.f32.mrf.mxu0
      %v1720 = vadd.f32 0.0, %v1719
      %1721 = vdwg.mxu0
      %1722 = vmatpush.bf16.msra.mxu0 %v1674
      %1723 = vmatpush.bf16.msra.mxu0 %v1672
      %1724 = vmatpush.bf16.msra.mxu0 %v1670
      %1725 = vmatpush.bf16.msra.mxu0 %v1668
      %1726 = vmatpush.bf16.msra.mxu0 %v1666
      %1727 = vmatpush.bf16.msra.mxu0 %v1664
      %1728 = vmatpush.bf16.msra.mxu0 %v1662
      %1729 = vmatpush.bf16.msra.mxu0 %v1660
      %1730 = vmatmul.bf16.gmra.mxu0 %v1545
      %v1731 = vpop.f32.mrf.mxu0
      %v1732 = vadd.f32 %v1718, %v1731
      %v1733 = vpop.f32.mrf.mxu0
      %v1734 = vadd.f32 %v1720, %v1733
      %1735 = vdwg.mxu0
      %1736 = vmatpush.bf16.msra.mxu0 %v1659
      %1737 = vmatpush.bf16.msra.mxu0 %v1657
      %1738 = vmatpush.bf16.msra.mxu0 %v1655
      %1739 = vmatpush.bf16.msra.mxu0 %v1653
      %1740 = vmatpush.bf16.msra.mxu0 %v1651
      %1741 = vmatpush.bf16.msra.mxu0 %v1649
      %1742 = vmatpush.bf16.msra.mxu0 %v1647
      %1743 = vmatpush.bf16.msra.mxu0 %v1645
      %1744 = vmatmul.bf16.gmra.mxu0 %v1533
      %v1745 = vpop.f32.mrf.mxu0
      %v1746 = vadd.f32 0.0, %v1745
      %v1747 = vpop.f32.mrf.mxu0
      %v1748 = vadd.f32 0.0, %v1747
      %1749 = vdwg.mxu0
      %1750 = vmatpush.bf16.msra.mxu0 %v1675
      %1751 = vmatpush.bf16.msra.mxu0 %v1673
      %1752 = vmatpush.bf16.msra.mxu0 %v1671
      %1753 = vmatpush.bf16.msra.mxu0 %v1669
      %1754 = vmatpush.bf16.msra.mxu0 %v1667
      %1755 = vmatpush.bf16.msra.mxu0 %v1665
      %1756 = vmatpush.bf16.msra.mxu0 %v1663
      %1757 = vmatpush.bf16.msra.mxu0 %v1661
      %1758 = vmatmul.bf16.gmra.mxu0 %v1545
      %v1759 = vpop.f32.mrf.mxu0
      %v1760 = vadd.f32 %v1746, %v1759
      %v1761 = vpop.f32.mrf.mxu0
      %v1762 = vadd.f32 %v1748, %v1761
      %1763 = vdwg.mxu0
      %v1798 = vunpack.c.l.b16 %v1443
      %v1799 = vunpack.c.h.b16 %v1443
      %v1800 = vunpack.c.l.b16 %v1444
      %v1801 = vunpack.c.h.b16 %v1444
      %v1802 = vunpack.c.l.b16 %v1445
      %v1803 = vunpack.c.h.b16 %v1445
      %v1804 = vunpack.c.l.b16 %v1446
      %v1805 = vunpack.c.h.b16 %v1446
      %v1806 = vunpack.c.l.b16 %v1447
      %v1807 = vunpack.c.h.b16 %v1447
      %v1808 = vunpack.c.l.b16 %v1448
      %v1809 = vunpack.c.h.b16 %v1448
      %v1810 = vunpack.c.l.b16 %v1449
      %v1811 = vunpack.c.h.b16 %v1449
      %v1812 = vunpack.c.l.b16 %v1450
      %v1813 = vunpack.c.h.b16 %v1450
      %v1814 = vunpack.c.l.b16 %v1451
      %v1815 = vunpack.c.h.b16 %v1451
      %v1816 = vunpack.c.l.b16 %v1452
      %v1817 = vunpack.c.h.b16 %v1452
      %v1818 = vunpack.c.l.b16 %v1453
      %v1819 = vunpack.c.h.b16 %v1453
      %v1820 = vunpack.c.l.b16 %v1454
      %v1821 = vunpack.c.h.b16 %v1454
      %v1822 = vunpack.c.l.b16 %v1455
      %v1823 = vunpack.c.h.b16 %v1455
      %v1824 = vunpack.c.l.b16 %v1456
      %v1825 = vunpack.c.h.b16 %v1456
      %v1826 = vunpack.c.l.b16 %v1457
      %v1827 = vunpack.c.h.b16 %v1457
      %v1828 = vunpack.c.l.b16 %v1458
      %v1829 = vunpack.c.h.b16 %v1458
      %v1830 = vunpack.c.l.b16 %v1459
      %v1831 = vunpack.c.h.b16 %v1459
      %v1832 = vunpack.c.l.b16 %v1460
      %v1833 = vunpack.c.h.b16 %v1460
      %v1834 = vunpack.c.l.b16 %v1461
      %v1835 = vunpack.c.h.b16 %v1461
      %v1836 = vunpack.c.l.b16 %v1462
      %v1837 = vunpack.c.h.b16 %v1462
      %v1838 = vunpack.c.l.b16 %v1463
      %v1839 = vunpack.c.h.b16 %v1463
      %v1840 = vunpack.c.l.b16 %v1464
      %v1841 = vunpack.c.h.b16 %v1464
      %v1842 = vunpack.c.l.b16 %v1465
      %v1843 = vunpack.c.h.b16 %v1465
      %v1844 = vunpack.c.l.b16 %v1466
      %v1845 = vunpack.c.h.b16 %v1466
      %v1846 = vunpack.c.l.b16 %v1467
      %v1847 = vunpack.c.h.b16 %v1467
      %v1848 = vunpack.c.l.b16 %v1468
      %v1849 = vunpack.c.h.b16 %v1468
      %v1850 = vunpack.c.l.b16 %v1469
      %v1851 = vunpack.c.h.b16 %v1469
      %v1852 = vunpack.c.l.b16 %v1470
      %v1853 = vunpack.c.h.b16 %v1470
      %v1854 = vunpack.c.l.b16 %v1471
      %v1855 = vunpack.c.h.b16 %v1471
      %v1856 = vunpack.c.l.b16 %v1472
      %v1857 = vunpack.c.h.b16 %v1472
      %v1858 = vunpack.c.l.b16 %v1473
      %v1859 = vunpack.c.h.b16 %v1473
      %v1860 = vunpack.c.l.b16 %v1474
      %v1861 = vunpack.c.h.b16 %v1474
      %v1862 = vpack.c.b16 %v1800, %v1798
      %v1863 = vpack.c.b16 %v1801, %v1799
      %v1864 = vpack.c.b16 %v1804, %v1802
      %v1865 = vpack.c.b16 %v1805, %v1803
      %v1866 = vpack.c.b16 %v1808, %v1806
      %v1867 = vpack.c.b16 %v1809, %v1807
      %v1868 = vpack.c.b16 %v1812, %v1810
      %v1869 = vpack.c.b16 %v1813, %v1811
      %v1870 = vpack.c.b16 %v1816, %v1814
      %v1871 = vpack.c.b16 %v1817, %v1815
      %v1872 = vpack.c.b16 %v1820, %v1818
      %v1873 = vpack.c.b16 %v1821, %v1819
      %v1874 = vpack.c.b16 %v1824, %v1822
      %v1875 = vpack.c.b16 %v1825, %v1823
      %v1876 = vpack.c.b16 %v1828, %v1826
      %v1877 = vpack.c.b16 %v1829, %v1827
      %v1878 = vpack.c.b16 %v1832, %v1830
      %v1879 = vpack.c.b16 %v1833, %v1831
      %v1880 = vpack.c.b16 %v1836, %v1834
      %v1881 = vpack.c.b16 %v1837, %v1835
      %v1882 = vpack.c.b16 %v1840, %v1838
      %v1883 = vpack.c.b16 %v1841, %v1839
      %v1884 = vpack.c.b16 %v1844, %v1842
      %v1885 = vpack.c.b16 %v1845, %v1843
      %v1886 = vpack.c.b16 %v1848, %v1846
      %v1887 = vpack.c.b16 %v1849, %v1847
      %v1888 = vpack.c.b16 %v1852, %v1850
      %v1889 = vpack.c.b16 %v1853, %v1851
      %v1890 = vpack.c.b16 %v1856, %v1854
      %v1891 = vpack.c.b16 %v1857, %v1855
      %v1892 = vpack.c.b16 %v1860, %v1858
      %v1893 = vpack.c.b16 %v1861, %v1859
      %1926 = vmatpush.bf16.msra.mxu0 %v1876
      %1927 = vmatpush.bf16.msra.mxu0 %v1874
      %1928 = vmatpush.bf16.msra.mxu0 %v1872
      %1929 = vmatpush.bf16.msra.mxu0 %v1870
      %1930 = vmatpush.bf16.msra.mxu0 %v1868
      %1931 = vmatpush.bf16.msra.mxu0 %v1866
      %1932 = vmatpush.bf16.msra.mxu0 %v1864
      %1933 = vmatpush.bf16.msra.mxu0 %v1862
      %1934 = vmatmul.bf16.gmra.mxu0 %v1518
      %v1935 = vpop.f32.mrf.mxu0
      %v1936 = vadd.f32 %v1732, %v1935
      %v1937 = vpop.f32.mrf.mxu0
      %v1938 = vadd.f32 %v1734, %v1937
      %1939 = vdwg.mxu0
      %1940 = vmatpush.bf16.msra.mxu0 %v1892
      %1941 = vmatpush.bf16.msra.mxu0 %v1890
      %1942 = vmatpush.bf16.msra.mxu0 %v1888
      %1943 = vmatpush.bf16.msra.mxu0 %v1886
      %1944 = vmatpush.bf16.msra.mxu0 %v1884
      %1945 = vmatpush.bf16.msra.mxu0 %v1882
      %1946 = vmatpush.bf16.msra.mxu0 %v1880
      %1947 = vmatpush.bf16.msra.mxu0 %v1878
      %1948 = vmatmul.bf16.gmra.mxu0 %v1519
      %v1949 = vpop.f32.mrf.mxu0
      %v1950 = vadd.f32 %v1936, %v1949
      %v1951 = vpop.f32.mrf.mxu0
      %v1952 = vadd.f32 %v1938, %v1951
      %1953 = vdwg.mxu0
      %1954 = vmatpush.bf16.msra.mxu0 %v1877
      %1955 = vmatpush.bf16.msra.mxu0 %v1875
      %1956 = vmatpush.bf16.msra.mxu0 %v1873
      %1957 = vmatpush.bf16.msra.mxu0 %v1871
      %1958 = vmatpush.bf16.msra.mxu0 %v1869
      %1959 = vmatpush.bf16.msra.mxu0 %v1867
      %1960 = vmatpush.bf16.msra.mxu0 %v1865
      %1961 = vmatpush.bf16.msra.mxu0 %v1863
      %1962 = vmatmul.bf16.gmra.mxu0 %v1518
      %v1963 = vpop.f32.mrf.mxu0
      %v1964 = vadd.f32 %v1760, %v1963
      %v1965 = vpop.f32.mrf.mxu0
      %v1966 = vadd.f32 %v1762, %v1965
      %1967 = vdwg.mxu0
      %1968 = vmatpush.bf16.msra.mxu0 %v1893
      %1969 = vmatpush.bf16.msra.mxu0 %v1891
      %1970 = vmatpush.bf16.msra.mxu0 %v1889
      %1971 = vmatpush.bf16.msra.mxu0 %v1887
      %1972 = vmatpush.bf16.msra.mxu0 %v1885
      %1973 = vmatpush.bf16.msra.mxu0 %v1883
      %1974 = vmatpush.bf16.msra.mxu0 %v1881
      %1975 = vmatpush.bf16.msra.mxu0 %v1879
      %1976 = vmatmul.bf16.gmra.mxu0 %v1519
      %v1977 = vpop.f32.mrf.mxu0
      %v1978 = vadd.f32 %v1964, %v1977
      %v1979 = vpop.f32.mrf.mxu0
      %v1980 = vadd.f32 %v1966, %v1979
      %1981 = vdwg.mxu0
      %v1982 = vld [vmem:[#allocation2] sm:$0xee]
      %s1983 = scalar_lea.vmem %s3, 512
      %v1984 = vld [vmem:[%s1983] sm:$0xff]
      %v1985 = vld [vmem:[%s1983 + $0x8] sm:$0xff]
      %v1986 = vld [vmem:[%s1983 + $0x10] sm:$0xff]
      %v1987 = vld [vmem:[%s1983 + $0x18] sm:$0xff]
      %v1988 = vld [vmem:[%s1983 + $0x20] sm:$0xff]
      %v1989 = vld [vmem:[%s1983 + $0x28] sm:$0xff]
      %v1990 = vld [vmem:[%s1983 + $0x30] sm:$0xff]
      %v1991 = vld [vmem:[%s1983 + $0x38] sm:$0xff]
      %v1992 = vld [vmem:[%s1983 + $0x40] sm:$0xff]
      %v1993 = vld [vmem:[%s1983 + $0x48] sm:$0xff]
      %v1994 = vld [vmem:[%s1983 + $0x50] sm:$0xff]
      %v1995 = vld [vmem:[%s1983 + $0x58] sm:$0xff]
      %v1996 = vld [vmem:[%s1983 + $0x60] sm:$0xff]
      %v1997 = vld [vmem:[%s1983 + $0x68] sm:$0xff]
      %v1998 = vld [vmem:[%s1983 + $0x70] sm:$0xff]
      %v1999 = vld [vmem:[%s1983 + $0x78] sm:$0xff]
      %v2000 = vld [vmem:[%s1983 + $0x80] sm:$0xff]
      %v2001 = vld [vmem:[%s1983 + $0x88] sm:$0xff]
      %v2002 = vld [vmem:[%s1983 + $0x90] sm:$0xff]
      %v2003 = vld [vmem:[%s1983 + $0x98] sm:$0xff]
      %v2004 = vld [vmem:[%s1983 + $0xa0] sm:$0xff]
      %v2005 = vld [vmem:[%s1983 + $0xa8] sm:$0xff]
      %v2006 = vld [vmem:[%s1983 + $0xb0] sm:$0xff]
      %v2007 = vld [vmem:[%s1983 + $0xb8] sm:$0xff]
      %v2008 = vld [vmem:[%s1983 + $0xc0] sm:$0xff]
      %v2009 = vld [vmem:[%s1983 + $0xc8] sm:$0xff]
      %v2010 = vld [vmem:[%s1983 + $0xd0] sm:$0xff]
      %v2011 = vld [vmem:[%s1983 + $0xd8] sm:$0xff]
      %v2012 = vld [vmem:[%s1983 + $0xe0] sm:$0xff]
      %v2013 = vld [vmem:[%s1983 + $0xe8] sm:$0xff]
      %v2014 = vld [vmem:[%s1983 + $0xf0] sm:$0xff]
      %v2015 = vld [vmem:[%s1983 + $0xf8] sm:$0xff]
      %v2017 = vunpack.c.l.b16 %v1982
      %v2018 = vunpack.c.h.b16 %v1982
      %v2019 = vpack.c.b16 %v1514, %v2017
      %v2020 = vpack.c.b16 %v1515, %v2018
      %v2021 = vrot.slane %v2019, 1
      %v2022 = vrot.slane %v1520, 1
      %v2023 = vsel %vm1152, %v2021, %v2022
      %v2024 = vrot.slane %v2020, 1
      %v2025 = vrot.slane %v1521, 1
      %v2026 = vsel %vm1152, %v2024, %v2025
      %v2061 = vunpack.c.l.b16 %v1984
      %v2062 = vunpack.c.h.b16 %v1984
      %v2063 = vunpack.c.l.b16 %v1985
      %v2064 = vunpack.c.h.b16 %v1985
      %v2065 = vunpack.c.l.b16 %v1986
      %v2066 = vunpack.c.h.b16 %v1986
      %v2067 = vunpack.c.l.b16 %v1987
      %v2068 = vunpack.c.h.b16 %v1987
      %v2069 = vunpack.c.l.b16 %v1988
      %v2070 = vunpack.c.h.b16 %v1988
      %v2071 = vunpack.c.l.b16 %v1989
      %v2072 = vunpack.c.h.b16 %v1989
      %v2073 = vunpack.c.l.b16 %v1990
      %v2074 = vunpack.c.h.b16 %v1990
      %v2075 = vunpack.c.l.b16 %v1991
      %v2076 = vunpack.c.h.b16 %v1991
      %v2077 = vunpack.c.l.b16 %v1992
      %v2078 = vunpack.c.h.b16 %v1992
      %v2079 = vunpack.c.l.b16 %v1993
      %v2080 = vunpack.c.h.b16 %v1993
      %v2081 = vunpack.c.l.b16 %v1994
      %v2082 = vunpack.c.h.b16 %v1994
      %v2083 = vunpack.c.l.b16 %v1995
      %v2084 = vunpack.c.h.b16 %v1995
      %v2085 = vunpack.c.l.b16 %v1996
      %v2086 = vunpack.c.h.b16 %v1996
      %v2087 = vunpack.c.l.b16 %v1997
      %v2088 = vunpack.c.h.b16 %v1997
      %v2089 = vunpack.c.l.b16 %v1998
      %v2090 = vunpack.c.h.b16 %v1998
      %v2091 = vunpack.c.l.b16 %v1999
      %v2092 = vunpack.c.h.b16 %v1999
      %v2093 = vunpack.c.l.b16 %v2000
      %v2094 = vunpack.c.h.b16 %v2000
      %v2095 = vunpack.c.l.b16 %v2001
      %v2096 = vunpack.c.h.b16 %v2001
      %v2097 = vunpack.c.l.b16 %v2002
      %v2098 = vunpack.c.h.b16 %v2002
      %v2099 = vunpack.c.l.b16 %v2003
      %v2100 = vunpack.c.h.b16 %v2003
      %v2101 = vunpack.c.l.b16 %v2004
      %v2102 = vunpack.c.h.b16 %v2004
      %v2103 = vunpack.c.l.b16 %v2005
      %v2104 = vunpack.c.h.b16 %v2005
      %v2105 = vunpack.c.l.b16 %v2006
      %v2106 = vunpack.c.h.b16 %v2006
      %v2107 = vunpack.c.l.b16 %v2007
      %v2108 = vunpack.c.h.b16 %v2007
      %v2109 = vunpack.c.l.b16 %v2008
      %v2110 = vunpack.c.h.b16 %v2008
      %v2111 = vunpack.c.l.b16 %v2009
      %v2112 = vunpack.c.h.b16 %v2009
      %v2113 = vunpack.c.l.b16 %v2010
      %v2114 = vunpack.c.h.b16 %v2010
      %v2115 = vunpack.c.l.b16 %v2011
      %v2116 = vunpack.c.h.b16 %v2011
      %v2117 = vunpack.c.l.b16 %v2012
      %v2118 = vunpack.c.h.b16 %v2012
      %v2119 = vunpack.c.l.b16 %v2013
      %v2120 = vunpack.c.h.b16 %v2013
      %v2121 = vunpack.c.l.b16 %v2014
      %v2122 = vunpack.c.h.b16 %v2014
      %v2123 = vunpack.c.l.b16 %v2015
      %v2124 = vunpack.c.h.b16 %v2015
      %v2125 = vpack.c.b16 %v2063, %v2061
      %v2126 = vpack.c.b16 %v2064, %v2062
      %v2127 = vpack.c.b16 %v2067, %v2065
      %v2128 = vpack.c.b16 %v2068, %v2066
      %v2129 = vpack.c.b16 %v2071, %v2069
      %v2130 = vpack.c.b16 %v2072, %v2070
      %v2131 = vpack.c.b16 %v2075, %v2073
      %v2132 = vpack.c.b16 %v2076, %v2074
      %v2133 = vpack.c.b16 %v2079, %v2077
      %v2134 = vpack.c.b16 %v2080, %v2078
      %v2135 = vpack.c.b16 %v2083, %v2081
      %v2136 = vpack.c.b16 %v2084, %v2082
      %v2137 = vpack.c.b16 %v2087, %v2085
      %v2138 = vpack.c.b16 %v2088, %v2086
      %v2139 = vpack.c.b16 %v2091, %v2089
      %v2140 = vpack.c.b16 %v2092, %v2090
      %v2141 = vpack.c.b16 %v2095, %v2093
      %v2142 = vpack.c.b16 %v2096, %v2094
      %v2143 = vpack.c.b16 %v2099, %v2097
      %v2144 = vpack.c.b16 %v2100, %v2098
      %v2145 = vpack.c.b16 %v2103, %v2101
      %v2146 = vpack.c.b16 %v2104, %v2102
      %v2147 = vpack.c.b16 %v2107, %v2105
      %v2148 = vpack.c.b16 %v2108, %v2106
      %v2149 = vpack.c.b16 %v2111, %v2109
      %v2150 = vpack.c.b16 %v2112, %v2110
      %v2151 = vpack.c.b16 %v2115, %v2113
      %v2152 = vpack.c.b16 %v2116, %v2114
      %v2153 = vpack.c.b16 %v2119, %v2117
      %v2154 = vpack.c.b16 %v2120, %v2118
      %v2155 = vpack.c.b16 %v2123, %v2121
      %v2156 = vpack.c.b16 %v2124, %v2122
      %2189 = vmatpush.bf16.msra.mxu0 %v2139
      %2190 = vmatpush.bf16.msra.mxu0 %v2137
      %2191 = vmatpush.bf16.msra.mxu0 %v2135
      %2192 = vmatpush.bf16.msra.mxu0 %v2133
      %2193 = vmatpush.bf16.msra.mxu0 %v2131
      %2194 = vmatpush.bf16.msra.mxu0 %v2129
      %2195 = vmatpush.bf16.msra.mxu0 %v2127
      %2196 = vmatpush.bf16.msra.mxu0 %v2125
      %2197 = vmatmul.bf16.gmra.mxu0 %v2023
      %v2198 = vpop.f32.mrf.mxu0
      %v2199 = vadd.f32 0.0, %v2198
      %v2200 = vpop.f32.mrf.mxu0
      %v2201 = vadd.f32 0.0, %v2200
      %2202 = vdwg.mxu0
      %2203 = vmatpush.bf16.msra.mxu0 %v2155
      %2204 = vmatpush.bf16.msra.mxu0 %v2153
      %2205 = vmatpush.bf16.msra.mxu0 %v2151
      %2206 = vmatpush.bf16.msra.mxu0 %v2149
      %2207 = vmatpush.bf16.msra.mxu0 %v2147
      %2208 = vmatpush.bf16.msra.mxu0 %v2145
      %2209 = vmatpush.bf16.msra.mxu0 %v2143
      %2210 = vmatpush.bf16.msra.mxu0 %v2141
      %2211 = vmatmul.bf16.gmra.mxu0 %v2026
      %v2212 = vpop.f32.mrf.mxu0
      %v2213 = vadd.f32 %v2199, %v2212
      %v2214 = vpop.f32.mrf.mxu0
      %v2215 = vadd.f32 %v2201, %v2214
      %2216 = vdwg.mxu0
      %2217 = vmatpush.bf16.msra.mxu0 %v2140
      %2218 = vmatpush.bf16.msra.mxu0 %v2138
      %2219 = vmatpush.bf16.msra.mxu0 %v2136
      %2220 = vmatpush.bf16.msra.mxu0 %v2134
      %2221 = vmatpush.bf16.msra.mxu0 %v2132
      %2222 = vmatpush.bf16.msra.mxu0 %v2130
      %2223 = vmatpush.bf16.msra.mxu0 %v2128
      %2224 = vmatpush.bf16.msra.mxu0 %v2126
      %2225 = vmatmul.bf16.gmra.mxu0 %v2023
      %v2226 = vpop.f32.mrf.mxu0
      %v2227 = vadd.f32 0.0, %v2226
      %v2228 = vpop.f32.mrf.mxu0
      %v2229 = vadd.f32 0.0, %v2228
      %2230 = vdwg.mxu0
      %2231 = vmatpush.bf16.msra.mxu0 %v2156
      %2232 = vmatpush.bf16.msra.mxu0 %v2154
      %2233 = vmatpush.bf16.msra.mxu0 %v2152
      %2234 = vmatpush.bf16.msra.mxu0 %v2150
      %2235 = vmatpush.bf16.msra.mxu0 %v2148
      %2236 = vmatpush.bf16.msra.mxu0 %v2146
      %2237 = vmatpush.bf16.msra.mxu0 %v2144
      %2238 = vmatpush.bf16.msra.mxu0 %v2142
      %2239 = vmatmul.bf16.gmra.mxu0 %v2026
      %v2240 = vpop.f32.mrf.mxu0
      %v2241 = vadd.f32 %v2227, %v2240
      %v2242 = vpop.f32.mrf.mxu0
      %v2243 = vadd.f32 %v2229, %v2242
      %2244 = vdwg.mxu0
      %v2245 = vadd.f32 %v1950, %v2213
      %v2246 = vadd.f32 %v1978, %v2241
      %v2247 = vadd.f32 %v1952, %v2215
      %v2248 = vadd.f32 %v1980, %v2243
      %v2249 = vld [vmem:[%s5] sm:$0xff]
      %v2250 = vld [vmem:[%s5 + $0x8] sm:$0xff]
      %v2251 = vld [vmem:[%s5 + $0x10] sm:$0xff]
      %v2252 = vld [vmem:[%s5 + $0x18] sm:$0xff]
      %v2253 = vld [vmem:[%s5 + $0x20] sm:$0xff]
      %v2254 = vld [vmem:[%s5 + $0x28] sm:$0xff]
      %v2255 = vld [vmem:[%s5 + $0x30] sm:$0xff]
      %v2256 = vld [vmem:[%s5 + $0x38] sm:$0xff]
      %v2257 = vld [vmem:[%s5 + $0x40] sm:$0xff]
      %v2258 = vld [vmem:[%s5 + $0x48] sm:$0xff]
      %v2259 = vld [vmem:[%s5 + $0x50] sm:$0xff]
      %v2260 = vld [vmem:[%s5 + $0x58] sm:$0xff]
      %v2261 = vld [vmem:[%s5 + $0x60] sm:$0xff]
      %v2262 = vld [vmem:[%s5 + $0x68] sm:$0xff]
      %v2263 = vld [vmem:[%s5 + $0x70] sm:$0xff]
      %v2264 = vld [vmem:[%s5 + $0x78] sm:$0xff]
      %v2265 = vld [vmem:[%s5 + $0x80] sm:$0xff]
      %v2266 = vld [vmem:[%s5 + $0x88] sm:$0xff]
      %v2267 = vld [vmem:[%s5 + $0x90] sm:$0xff]
      %v2268 = vld [vmem:[%s5 + $0x98] sm:$0xff]
      %v2269 = vld [vmem:[%s5 + $0xa0] sm:$0xff]
      %v2270 = vld [vmem:[%s5 + $0xa8] sm:$0xff]
      %v2271 = vld [vmem:[%s5 + $0xb0] sm:$0xff]
      %v2272 = vld [vmem:[%s5 + $0xb8] sm:$0xff]
      %v2273 = vld [vmem:[%s5 + $0xc0] sm:$0xff]
      %v2274 = vld [vmem:[%s5 + $0xc8] sm:$0xff]
      %v2275 = vld [vmem:[%s5 + $0xd0] sm:$0xff]
      %v2276 = vld [vmem:[%s5 + $0xd8] sm:$0xff]
      %v2277 = vld [vmem:[%s5 + $0xe0] sm:$0xff]
      %v2278 = vld [vmem:[%s5 + $0xe8] sm:$0xff]
      %v2279 = vld [vmem:[%s5 + $0xf0] sm:$0xff]
      %v2280 = vld [vmem:[%s5 + $0xf8] sm:$0xff]
      %v2281 = vld [vmem:[%s6] sm:$0xff]
      %v2282 = vld [vmem:[%s6 + $0x8] sm:$0xff]
      %v2283 = vld [vmem:[%s6 + $0x10] sm:$0xff]
      %v2284 = vld [vmem:[%s6 + $0x18] sm:$0xff]
      %v2285 = vld [vmem:[%s6 + $0x20] sm:$0xff]
      %v2286 = vld [vmem:[%s6 + $0x28] sm:$0xff]
      %v2287 = vld [vmem:[%s6 + $0x30] sm:$0xff]
      %v2288 = vld [vmem:[%s6 + $0x38] sm:$0xff]
      %v2289 = vld [vmem:[%s6 + $0x40] sm:$0xff]
      %v2290 = vld [vmem:[%s6 + $0x48] sm:$0xff]
      %v2291 = vld [vmem:[%s6 + $0x50] sm:$0xff]
      %v2292 = vld [vmem:[%s6 + $0x58] sm:$0xff]
      %v2293 = vld [vmem:[%s6 + $0x60] sm:$0xff]
      %v2294 = vld [vmem:[%s6 + $0x68] sm:$0xff]
      %v2295 = vld [vmem:[%s6 + $0x70] sm:$0xff]
      %v2296 = vld [vmem:[%s6 + $0x78] sm:$0xff]
      %v2297 = vld [vmem:[%s6 + $0x80] sm:$0xff]
      %v2298 = vld [vmem:[%s6 + $0x88] sm:$0xff]
      %v2299 = vld [vmem:[%s6 + $0x90] sm:$0xff]
      %v2300 = vld [vmem:[%s6 + $0x98] sm:$0xff]
      %v2301 = vld [vmem:[%s6 + $0xa0] sm:$0xff]
      %v2302 = vld [vmem:[%s6 + $0xa8] sm:$0xff]
      %v2303 = vld [vmem:[%s6 + $0xb0] sm:$0xff]
      %v2304 = vld [vmem:[%s6 + $0xb8] sm:$0xff]
      %v2305 = vld [vmem:[%s6 + $0xc0] sm:$0xff]
      %v2306 = vld [vmem:[%s6 + $0xc8] sm:$0xff]
      %v2307 = vld [vmem:[%s6 + $0xd0] sm:$0xff]
      %v2308 = vld [vmem:[%s6 + $0xd8] sm:$0xff]
      %v2309 = vld [vmem:[%s6 + $0xe0] sm:$0xff]
      %v2310 = vld [vmem:[%s6 + $0xe8] sm:$0xff]
      %v2311 = vld [vmem:[%s6 + $0xf0] sm:$0xff]
      %v2312 = vld [vmem:[%s6 + $0xf8] sm:$0xff]
      %v2313 = vadd.f32 %v2245, %v2247
      %v2314 = vrot.slane %v2313, 4
      %v2315 = vadd.f32 %v2313, %v2314
      %v2316 = vrot.slane %v2315, 2
      %v2317 = vadd.f32 %v2315, %v2316
      %v2318 = vrot.slane %v2317, 1
      %v2319 = vadd.f32 %v2317, %v2318
      %v2320 = vadd.f32 %v2246, %v2248
      %v2321 = vrot.slane %v2320, 4
      %v2322 = vadd.f32 %v2320, %v2321
      %v2323 = vrot.slane %v2322, 2
      %v2324 = vadd.f32 %v2322, %v2323
      %v2325 = vrot.slane %v2324, 1
      %v2326 = vadd.f32 %v2324, %v2325
      %2327 = vmatpush.msra.mxu0 %v2264
      %2328 = vmatpush.msra.mxu0 %v2263
      %2329 = vmatpush.msra.mxu0 %v2262
      %2330 = vmatpush.msra.mxu0 %v2261
      %2331 = vmatpush.msra.mxu0 %v2260
      %2332 = vmatpush.msra.mxu0 %v2259
      %2333 = vmatpush.msra.mxu0 %v2258
      %2334 = vmatpush.msra.mxu0 %v2257
      %2335 = vmatpush.msra.mxu0 %v2256
      %2336 = vmatpush.msra.mxu0 %v2255
      %2337 = vmatpush.msra.mxu0 %v2254
      %2338 = vmatpush.msra.mxu0 %v2253
      %2339 = vmatpush.msra.mxu0 %v2252
      %2340 = vmatpush.msra.mxu0 %v2251
      %2341 = vmatpush.msra.mxu0 %v2250
      %2342 = vmatpush.msra.mxu0 %v2249
      %2343 = vmatmul.f32.gmra.mxu0 %v2319
      %v2344 = vpop.f32.mrf.mxu0
      %v2345 = vadd.f32 0.0, %v2344
      %2346 = vdwg.mxu0
      %2347 = vmatpush.msra.mxu0 %v2280
      %2348 = vmatpush.msra.mxu0 %v2279
      %2349 = vmatpush.msra.mxu0 %v2278
      %2350 = vmatpush.msra.mxu0 %v2277
      %2351 = vmatpush.msra.mxu0 %v2276
      %2352 = vmatpush.msra.mxu0 %v2275
      %2353 = vmatpush.msra.mxu0 %v2274
      %2354 = vmatpush.msra.mxu0 %v2273
      %2355 = vmatpush.msra.mxu0 %v2272
      %2356 = vmatpush.msra.mxu0 %v2271
      %2357 = vmatpush.msra.mxu0 %v2270
      %2358 = vmatpush.msra.mxu0 %v2269
      %2359 = vmatpush.msra.mxu0 %v2268
      %2360 = vmatpush.msra.mxu0 %v2267
      %2361 = vmatpush.msra.mxu0 %v2266
      %2362 = vmatpush.msra.mxu0 %v2265
      %2363 = vmatmul.f32.gmra.mxu0 %v2326
      %v2364 = vpop.f32.mrf.mxu0
      %v2365 = vadd.f32 %v2345, %v2364
      %2366 = vdwg.mxu0
      %v2367 = vmul.f32 %v2365, 0.0078125
      %2368 = vmatpush.msra.mxu0 %v2311
      %2369 = vmatpush.msra.mxu0 %v2309
      %2370 = vmatpush.msra.mxu0 %v2307
      %2371 = vmatpush.msra.mxu0 %v2305
      %2372 = vmatpush.msra.mxu0 %v2303
      %2373 = vmatpush.msra.mxu0 %v2301
      %2374 = vmatpush.msra.mxu0 %v2299
      %2375 = vmatpush.msra.mxu0 %v2297
      %2376 = vmatpush.msra.mxu0 %v2295
      %2377 = vmatpush.msra.mxu0 %v2293
      %2378 = vmatpush.msra.mxu0 %v2291
      %2379 = vmatpush.msra.mxu0 %v2289
      %2380 = vmatpush.msra.mxu0 %v2287
      %2381 = vmatpush.msra.mxu0 %v2285
      %2382 = vmatpush.msra.mxu0 %v2283
      %2383 = vmatpush.msra.mxu0 %v2281
      %2384 = vmatmul.f32.gmra.mxu0 %v2367
      %v2385 = vpop.f32.mrf.mxu0
      %v2386 = vadd.f32 0.0, %v2385
      %2387 = vdwg.mxu0
      %2388 = vmatpush.msra.mxu0 %v2312
      %2389 = vmatpush.msra.mxu0 %v2310
      %2390 = vmatpush.msra.mxu0 %v2308
      %2391 = vmatpush.msra.mxu0 %v2306
      %2392 = vmatpush.msra.mxu0 %v2304
      %2393 = vmatpush.msra.mxu0 %v2302
      %2394 = vmatpush.msra.mxu0 %v2300
      %2395 = vmatpush.msra.mxu0 %v2298
      %2396 = vmatpush.msra.mxu0 %v2296
      %2397 = vmatpush.msra.mxu0 %v2294
      %2398 = vmatpush.msra.mxu0 %v2292
      %2399 = vmatpush.msra.mxu0 %v2290
      %2400 = vmatpush.msra.mxu0 %v2288
      %2401 = vmatpush.msra.mxu0 %v2286
      %2402 = vmatpush.msra.mxu0 %v2284
      %2403 = vmatpush.msra.mxu0 %v2282
      %2404 = vmatmul.f32.gmra.mxu0 %v2367
      %v2405 = vpop.f32.mrf.mxu0
      %v2406 = vadd.f32 0.0, %v2405
      %2407 = vdwg.mxu0
      %v2408 = vperm.slane %v2386, 0
      %v2409 = vperm.slane %v2406, 0
      %v2410 = vsub.f32 %v2245, %v2408
      %v2411 = vsub.f32 %v2246, %v2409
      %v2412 = vsub.f32 %v2247, %v2408
      %v2413 = vsub.f32 %v2248, %v2409
      %v2414 = vmul.f32 %v2410, %v2410
      %v2415 = vmul.f32 %v2411, %v2411
      %v2416 = vmul.f32 %v2412, %v2412
      %v2417 = vmul.f32 %v2413, %v2413
      %v2418 = vadd.f32 %v2414, %v2416
      %v2419 = vrot.slane %v2418, 4
      %v2420 = vadd.f32 %v2418, %v2419
      %v2421 = vrot.slane %v2420, 2
      %v2422 = vadd.f32 %v2420, %v2421
      %v2423 = vrot.slane %v2422, 1
      %v2424 = vadd.f32 %v2422, %v2423
      %v2425 = vadd.f32 %v2415, %v2417
      %v2426 = vrot.slane %v2425, 4
      %v2427 = vadd.f32 %v2425, %v2426
      %v2428 = vrot.slane %v2427, 2
      %v2429 = vadd.f32 %v2427, %v2428
      %v2430 = vrot.slane %v2429, 1
      %v2431 = vadd.f32 %v2429, %v2430
      %2432 = vmatpush.msra.mxu0 %v2264
      %2433 = vmatpush.msra.mxu0 %v2263
      %2434 = vmatpush.msra.mxu0 %v2262
      %2435 = vmatpush.msra.mxu0 %v2261
      %2436 = vmatpush.msra.mxu0 %v2260
      %2437 = vmatpush.msra.mxu0 %v2259
      %2438 = vmatpush.msra.mxu0 %v2258
      %2439 = vmatpush.msra.mxu0 %v2257
      %2440 = vmatpush.msra.mxu0 %v2256
      %2441 = vmatpush.msra.mxu0 %v2255
      %2442 = vmatpush.msra.mxu0 %v2254
      %2443 = vmatpush.msra.mxu0 %v2253
      %2444 = vmatpush.msra.mxu0 %v2252
      %2445 = vmatpush.msra.mxu0 %v2251
      %2446 = vmatpush.msra.mxu0 %v2250
      %2447 = vmatpush.msra.mxu0 %v2249
      %2448 = vmatmul.f32.gmra.mxu0 %v2424
      %v2449 = vpop.f32.mrf.mxu0
      %v2450 = vadd.f32 0.0, %v2449
      %2451 = vdwg.mxu0
      %2452 = vmatpush.msra.mxu0 %v2280
      %2453 = vmatpush.msra.mxu0 %v2279
      %2454 = vmatpush.msra.mxu0 %v2278
      %2455 = vmatpush.msra.mxu0 %v2277
      %2456 = vmatpush.msra.mxu0 %v2276
      %2457 = vmatpush.msra.mxu0 %v2275
      %2458 = vmatpush.msra.mxu0 %v2274
      %2459 = vmatpush.msra.mxu0 %v2273
      %2460 = vmatpush.msra.mxu0 %v2272
      %2461 = vmatpush.msra.mxu0 %v2271
      %2462 = vmatpush.msra.mxu0 %v2270
      %2463 = vmatpush.msra.mxu0 %v2269
      %2464 = vmatpush.msra.mxu0 %v2268
      %2465 = vmatpush.msra.mxu0 %v2267
      %2466 = vmatpush.msra.mxu0 %v2266
      %2467 = vmatpush.msra.mxu0 %v2265
      %2468 = vmatmul.f32.gmra.mxu0 %v2431
      %v2469 = vpop.f32.mrf.mxu0
      %v2470 = vadd.f32 %v2450, %v2469
      %2471 = vdwg.mxu0
      %v2472 = vmul.f32 %v2470, 0.0078125
      %v2473 = vadd.f32 %v2472, 1e-05
      %v2474 = vrsqrt.pop %v2473
      %v2475 = vmul.f32 %v2474, %v2473
      %v2476 = vmul.f32 %v2475, %v2474
      %v2477 = vmul.f32 0.5, %v2476
      %v2478 = vsub.f32 1.5, %v2477
      %v2479 = vmul.f32 %v2474, %v2478
      %vm2480 = vweird.f32 %v2473
      %vm2481 = vweird.f32 %v2474
      %vm2482 = vmor %vm2480, %vm2481
      %v2483 = vsel %vm2482, %v2474, %v2479
      %2484 = vmatpush.msra.mxu0 %v2311
      %2485 = vmatpush.msra.mxu0 %v2309
      %2486 = vmatpush.msra.mxu0 %v2307
      %2487 = vmatpush.msra.mxu0 %v2305
      %2488 = vmatpush.msra.mxu0 %v2303
      %2489 = vmatpush.msra.mxu0 %v2301
      %2490 = vmatpush.msra.mxu0 %v2299
      %2491 = vmatpush.msra.mxu0 %v2297
      %2492 = vmatpush.msra.mxu0 %v2295
      %2493 = vmatpush.msra.mxu0 %v2293
      %2494 = vmatpush.msra.mxu0 %v2291
      %2495 = vmatpush.msra.mxu0 %v2289
      %2496 = vmatpush.msra.mxu0 %v2287
      %2497 = vmatpush.msra.mxu0 %v2285
      %2498 = vmatpush.msra.mxu0 %v2283
      %2499 = vmatpush.msra.mxu0 %v2281
      %2500 = vmatmul.f32.gmra.mxu0 %v2483
      %v2501 = vpop.f32.mrf.mxu0
      %v2502 = vadd.f32 0.0, %v2501
      %2503 = vdwg.mxu0
      %2504 = vmatpush.msra.mxu0 %v2312
      %2505 = vmatpush.msra.mxu0 %v2310
      %2506 = vmatpush.msra.mxu0 %v2308
      %2507 = vmatpush.msra.mxu0 %v2306
      %2508 = vmatpush.msra.mxu0 %v2304
      %2509 = vmatpush.msra.mxu0 %v2302
      %2510 = vmatpush.msra.mxu0 %v2300
      %2511 = vmatpush.msra.mxu0 %v2298
      %2512 = vmatpush.msra.mxu0 %v2296
      %2513 = vmatpush.msra.mxu0 %v2294
      %2514 = vmatpush.msra.mxu0 %v2292
      %2515 = vmatpush.msra.mxu0 %v2290
      %2516 = vmatpush.msra.mxu0 %v2288
      %2517 = vmatpush.msra.mxu0 %v2286
      %2518 = vmatpush.msra.mxu0 %v2284
      %2519 = vmatpush.msra.mxu0 %v2282
      %2520 = vmatmul.f32.gmra.mxu0 %v2483
      %v2521 = vpop.f32.mrf.mxu0
      %v2522 = vadd.f32 0.0, %v2521
      %2523 = vdwg.mxu0
      %v2524 = vperm.slane %v2502, 0
      %v2525 = vperm.slane %v2522, 0
      %v2526 = vmul.f32 %v2410, %v2524
      %v2527 = vmul.f32 %v2411, %v2525
      %v2528 = vmul.f32 %v2412, %v2524
      %v2529 = vmul.f32 %v2413, %v2525
      %v2530 = vld [vmem:[%s4] ss:$2 sm:$0x3]
      %v2532 = vperm.slane %v2530, 0
      %v2533 = vperm.slane %v2530, 1
      %v2536 = vmul.f32 %v2526, %v2532
      %v2537 = vmul.f32 %v2527, %v2533
      %v2538 = vmul.f32 %v2528, %v2532
      %v2539 = vmul.f32 %v2529, %v2533
      %s2540 = scalar_lea.vmem %s4, 1
      %v2541 = vld [vmem:[%s2540] ss:$2 sm:$0x3]
      %v2543 = vperm.slane %v2541, 0
      %v2544 = vperm.slane %v2541, 1
      %v2547 = vadd.f32 %v2536, %v2543
      %v2548 = vadd.f32 %v2537, %v2544
      %v2549 = vadd.f32 %v2538, %v2543
      %v2550 = vadd.f32 %v2539, %v2544
      %vm2551 = vcmp.gt.f32.partialorder %v2547, 0.0
      %vm2552 = vcmp.gt.f32.partialorder %v2548, 0.0
      %vm2553 = vcmp.gt.f32.partialorder %v2549, 0.0
      %vm2554 = vcmp.gt.f32.partialorder %v2550, 0.0
      %v2555 = vmul.f32 %v2547, 0.2
      %v2556 = vmul.f32 %v2548, 0.2
      %v2557 = vmul.f32 %v2549, 0.2
      %v2558 = vmul.f32 %v2550, 0.2
      %v2559 = vsel %vm2551, %v2547, %v2555
      %v2560 = vsel %vm2552, %v2548, %v2556
      %v2561 = vsel %vm2553, %v2549, %v2557
      %v2562 = vsel %vm2554, %v2550, %v2558
      %v2563 = vpack.c.bf16 %v2560, %v2559
      %v2564 = vpack.c.bf16 %v2562, %v2561
      %v2566 = vshrl.u32 %v2563, 16
      %v2568 = vrot.slane %v2566, 7
      %v2569 = vshll.u32 %v2563, 16
      %v2571 = vor.u32 %v2568, %v2569
      %v2572 = vrot.slane %v2568, 4
      %v2574 = vshrl.u32 %v2564, 16
      %v2576 = vrot.slane %v2574, 7
      %v2577 = vshll.u32 %v2564, 16
      %v2579 = vor.u32 %v2576, %v2577
      %v2580 = vsel %vm1406, %v2572, %v2579
      %v2581 = vrot.slane %v2576, 4
      %v2585 = vld [vmem:[#allocation3] sm:$0xff]
      %v2586 = vsel %vm1433, %v2571, %v2585
      %2587 = vst [vmem:[#allocation3] sm:$0xff] %v2586
      %2588 = vst [vmem:[#allocation3 + $0x8] sm:$0xff] %v2580
      %v2589 = vld [vmem:[#allocation3 + $0x10] sm:$0x11]
      %v2590 = vsel %vm561, %v2581, %v2589
      %2591 = vst [vmem:[#allocation3 + $0x10] sm:$0x11] %v2590
      %v2592 = vld [vmem:[#allocation3] sm:$0xff]
      %v2593 = vld [vmem:[#allocation3 + $0x8] sm:$0xff]
      %v2594 = vld [vmem:[%s7] sm:$0xff]
      %v2595 = vld [vmem:[%s7 + $0x8] sm:$0xff]
      %v2596 = vld [vmem:[%s7 + $0x10] sm:$0xff]
      %v2597 = vld [vmem:[%s7 + $0x18] sm:$0xff]
      %v2598 = vld [vmem:[%s7 + $0x20] sm:$0xff]
      %v2599 = vld [vmem:[%s7 + $0x28] sm:$0xff]
      %v2600 = vld [vmem:[%s7 + $0x30] sm:$0xff]
      %v2601 = vld [vmem:[%s7 + $0x38] sm:$0xff]
      %v2602 = vld [vmem:[%s7 + $0x40] sm:$0xff]
      %v2603 = vld [vmem:[%s7 + $0x48] sm:$0xff]
      %v2604 = vld [vmem:[%s7 + $0x50] sm:$0xff]
      %v2605 = vld [vmem:[%s7 + $0x58] sm:$0xff]
      %v2606 = vld [vmem:[%s7 + $0x60] sm:$0xff]
      %v2607 = vld [vmem:[%s7 + $0x68] sm:$0xff]
      %v2608 = vld [vmem:[%s7 + $0x70] sm:$0xff]
      %v2609 = vld [vmem:[%s7 + $0x78] sm:$0xff]
      %v2610 = vld [vmem:[%s7 + $0x80] sm:$0xff]
      %v2611 = vld [vmem:[%s7 + $0x88] sm:$0xff]
      %v2612 = vld [vmem:[%s7 + $0x90] sm:$0xff]
      %v2613 = vld [vmem:[%s7 + $0x98] sm:$0xff]
      %v2614 = vld [vmem:[%s7 + $0xa0] sm:$0xff]
      %v2615 = vld [vmem:[%s7 + $0xa8] sm:$0xff]
      %v2616 = vld [vmem:[%s7 + $0xb0] sm:$0xff]
      %v2617 = vld [vmem:[%s7 + $0xb8] sm:$0xff]
      %v2618 = vld [vmem:[%s7 + $0xc0] sm:$0xff]
      %v2619 = vld [vmem:[%s7 + $0xc8] sm:$0xff]
      %v2620 = vld [vmem:[%s7 + $0xd0] sm:$0xff]
      %v2621 = vld [vmem:[%s7 + $0xd8] sm:$0xff]
      %v2622 = vld [vmem:[%s7 + $0xe0] sm:$0xff]
      %v2623 = vld [vmem:[%s7 + $0xe8] sm:$0xff]
      %v2624 = vld [vmem:[%s7 + $0xf0] sm:$0xff]
      %v2625 = vld [vmem:[%s7 + $0xf8] sm:$0xff]
      %v2626 = vld [vmem:[#allocation3 + $0x10] sm:$0x11]
      %s2627 = scalar_lea.vmem %s7, 256
      %v2628 = vld [vmem:[%s2627] sm:$0xff]
      %v2629 = vld [vmem:[%s2627 + $0x8] sm:$0xff]
      %v2630 = vld [vmem:[%s2627 + $0x10] sm:$0xff]
      %v2631 = vld [vmem:[%s2627 + $0x18] sm:$0xff]
      %v2632 = vld [vmem:[%s2627 + $0x20] sm:$0xff]
      %v2633 = vld [vmem:[%s2627 + $0x28] sm:$0xff]
      %v2634 = vld [vmem:[%s2627 + $0x30] sm:$0xff]
      %v2635 = vld [vmem:[%s2627 + $0x38] sm:$0xff]
      %v2636 = vld [vmem:[%s2627 + $0x40] sm:$0xff]
      %v2637 = vld [vmem:[%s2627 + $0x48] sm:$0xff]
      %v2638 = vld [vmem:[%s2627 + $0x50] sm:$0xff]
      %v2639 = vld [vmem:[%s2627 + $0x58] sm:$0xff]
      %v2640 = vld [vmem:[%s2627 + $0x60] sm:$0xff]
      %v2641 = vld [vmem:[%s2627 + $0x68] sm:$0xff]
      %v2642 = vld [vmem:[%s2627 + $0x70] sm:$0xff]
      %v2643 = vld [vmem:[%s2627 + $0x78] sm:$0xff]
      %v2644 = vld [vmem:[%s2627 + $0x80] sm:$0xff]
      %v2645 = vld [vmem:[%s2627 + $0x88] sm:$0xff]
      %v2646 = vld [vmem:[%s2627 + $0x90] sm:$0xff]
      %v2647 = vld [vmem:[%s2627 + $0x98] sm:$0xff]
      %v2648 = vld [vmem:[%s2627 + $0xa0] sm:$0xff]
      %v2649 = vld [vmem:[%s2627 + $0xa8] sm:$0xff]
      %v2650 = vld [vmem:[%s2627 + $0xb0] sm:$0xff]
      %v2651 = vld [vmem:[%s2627 + $0xb8] sm:$0xff]
      %v2652 = vld [vmem:[%s2627 + $0xc0] sm:$0xff]
      %v2653 = vld [vmem:[%s2627 + $0xc8] sm:$0xff]
      %v2654 = vld [vmem:[%s2627 + $0xd0] sm:$0xff]
      %v2655 = vld [vmem:[%s2627 + $0xd8] sm:$0xff]
      %v2656 = vld [vmem:[%s2627 + $0xe0] sm:$0xff]
      %v2657 = vld [vmem:[%s2627 + $0xe8] sm:$0xff]
      %v2658 = vld [vmem:[%s2627 + $0xf0] sm:$0xff]
      %v2659 = vld [vmem:[%s2627 + $0xf8] sm:$0xff]
      %v2663 = vunpack.c.l.b16 %v2592
      %v2664 = vunpack.c.h.b16 %v2592
      %v2665 = vunpack.c.l.b16 %v2593
      %v2666 = vunpack.c.h.b16 %v2593
      %v2667 = vunpack.c.l.b16 %v2626
      %v2668 = vunpack.c.h.b16 %v2626
      %v2669 = vpack.c.b16 %v2665, %v2663
      %v2670 = vpack.c.b16 %v2666, %v2664
      %v2671 = vpack.c.b16 %v2667, %v2667
      %v2672 = vpack.c.b16 %v2668, %v2668
      %v2674 = vshrl.u32 %v2669, 16
      %v2676 = vshll.u32 %v2669, 16
      %v2678 = vrot.slane %v2676, 1
      %v2679 = vor.u32 %v2674, %v2678
      %v2681 = vshll.u32 %v2671, 16
      %v2683 = vrot.slane %v2681, 1
      %v2684 = vsel %vm652, %v2679, %v2683
      %v2686 = vshrl.u32 %v2670, 16
      %v2688 = vshll.u32 %v2670, 16
      %v2690 = vrot.slane %v2688, 1
      %v2691 = vor.u32 %v2686, %v2690
      %v2693 = vshll.u32 %v2672, 16
      %v2695 = vrot.slane %v2693, 1
      %v2696 = vsel %vm652, %v2691, %v2695
      %v2731 = vunpack.c.l.b16 %v2628
      %v2732 = vunpack.c.h.b16 %v2628
      %v2733 = vunpack.c.l.b16 %v2629
      %v2734 = vunpack.c.h.b16 %v2629
      %v2735 = vunpack.c.l.b16 %v2630
      %v2736 = vunpack.c.h.b16 %v2630
      %v2737 = vunpack.c.l.b16 %v2631
      %v2738 = vunpack.c.h.b16 %v2631
      %v2739 = vunpack.c.l.b16 %v2632
      %v2740 = vunpack.c.h.b16 %v2632
      %v2741 = vunpack.c.l.b16 %v2633
      %v2742 = vunpack.c.h.b16 %v2633
      %v2743 = vunpack.c.l.b16 %v2634
      %v2744 = vunpack.c.h.b16 %v2634
      %v2745 = vunpack.c.l.b16 %v2635
      %v2746 = vunpack.c.h.b16 %v2635
      %v2747 = vunpack.c.l.b16 %v2636
      %v2748 = vunpack.c.h.b16 %v2636
      %v2749 = vunpack.c.l.b16 %v2637
      %v2750 = vunpack.c.h.b16 %v2637
      %v2751 = vunpack.c.l.b16 %v2638
      %v2752 = vunpack.c.h.b16 %v2638
      %v2753 = vunpack.c.l.b16 %v2639
      %v2754 = vunpack.c.h.b16 %v2639
      %v2755 = vunpack.c.l.b16 %v2640
      %v2756 = vunpack.c.h.b16 %v2640
      %v2757 = vunpack.c.l.b16 %v2641
      %v2758 = vunpack.c.h.b16 %v2641
      %v2759 = vunpack.c.l.b16 %v2642
      %v2760 = vunpack.c.h.b16 %v2642
      %v2761 = vunpack.c.l.b16 %v2643
      %v2762 = vunpack.c.h.b16 %v2643
      %v2763 = vunpack.c.l.b16 %v2644
      %v2764 = vunpack.c.h.b16 %v2644
      %v2765 = vunpack.c.l.b16 %v2645
      %v2766 = vunpack.c.h.b16 %v2645
      %v2767 = vunpack.c.l.b16 %v2646
      %v2768 = vunpack.c.h.b16 %v2646
      %v2769 = vunpack.c.l.b16 %v2647
      %v2770 = vunpack.c.h.b16 %v2647
      %v2771 = vunpack.c.l.b16 %v2648
      %v2772 = vunpack.c.h.b16 %v2648
      %v2773 = vunpack.c.l.b16 %v2649
      %v2774 = vunpack.c.h.b16 %v2649
      %v2775 = vunpack.c.l.b16 %v2650
      %v2776 = vunpack.c.h.b16 %v2650
      %v2777 = vunpack.c.l.b16 %v2651
      %v2778 = vunpack.c.h.b16 %v2651
      %v2779 = vunpack.c.l.b16 %v2652
      %v2780 = vunpack.c.h.b16 %v2652
      %v2781 = vunpack.c.l.b16 %v2653
      %v2782 = vunpack.c.h.b16 %v2653
      %v2783 = vunpack.c.l.b16 %v2654
      %v2784 = vunpack.c.h.b16 %v2654
      %v2785 = vunpack.c.l.b16 %v2655
      %v2786 = vunpack.c.h.b16 %v2655
      %v2787 = vunpack.c.l.b16 %v2656
      %v2788 = vunpack.c.h.b16 %v2656
      %v2789 = vunpack.c.l.b16 %v2657
      %v2790 = vunpack.c.h.b16 %v2657
      %v2791 = vunpack.c.l.b16 %v2658
      %v2792 = vunpack.c.h.b16 %v2658
      %v2793 = vunpack.c.l.b16 %v2659
      %v2794 = vunpack.c.h.b16 %v2659
      %v2795 = vpack.c.b16 %v2733, %v2731
      %v2796 = vpack.c.b16 %v2734, %v2732
      %v2797 = vpack.c.b16 %v2737, %v2735
      %v2798 = vpack.c.b16 %v2738, %v2736
      %v2799 = vpack.c.b16 %v2741, %v2739
      %v2800 = vpack.c.b16 %v2742, %v2740
      %v2801 = vpack.c.b16 %v2745, %v2743
      %v2802 = vpack.c.b16 %v2746, %v2744
      %v2803 = vpack.c.b16 %v2749, %v2747
      %v2804 = vpack.c.b16 %v2750, %v2748
      %v2805 = vpack.c.b16 %v2753, %v2751
      %v2806 = vpack.c.b16 %v2754, %v2752
      %v2807 = vpack.c.b16 %v2757, %v2755
      %v2808 = vpack.c.b16 %v2758, %v2756
      %v2809 = vpack.c.b16 %v2761, %v2759
      %v2810 = vpack.c.b16 %v2762, %v2760
      %v2811 = vpack.c.b16 %v2765, %v2763
      %v2812 = vpack.c.b16 %v2766, %v2764
      %v2813 = vpack.c.b16 %v2769, %v2767
      %v2814 = vpack.c.b16 %v2770, %v2768
      %v2815 = vpack.c.b16 %v2773, %v2771
      %v2816 = vpack.c.b16 %v2774, %v2772
      %v2817 = vpack.c.b16 %v2777, %v2775
      %v2818 = vpack.c.b16 %v2778, %v2776
      %v2819 = vpack.c.b16 %v2781, %v2779
      %v2820 = vpack.c.b16 %v2782, %v2780
      %v2821 = vpack.c.b16 %v2785, %v2783
      %v2822 = vpack.c.b16 %v2786, %v2784
      %v2823 = vpack.c.b16 %v2789, %v2787
      %v2824 = vpack.c.b16 %v2790, %v2788
      %v2825 = vpack.c.b16 %v2793, %v2791
      %v2826 = vpack.c.b16 %v2794, %v2792
      %2859 = vmatpush.bf16.msra.mxu0 %v2809
      %2860 = vmatpush.bf16.msra.mxu0 %v2807
      %2861 = vmatpush.bf16.msra.mxu0 %v2805
      %2862 = vmatpush.bf16.msra.mxu0 %v2803
      %2863 = vmatpush.bf16.msra.mxu0 %v2801
      %2864 = vmatpush.bf16.msra.mxu0 %v2799
      %2865 = vmatpush.bf16.msra.mxu0 %v2797
      %2866 = vmatpush.bf16.msra.mxu0 %v2795
      %2867 = vmatmul.bf16.gmra.mxu0 %v2684
      %v2868 = vpop.f32.mrf.mxu0
      %v2869 = vadd.f32 0.0, %v2868
      %v2870 = vpop.f32.mrf.mxu0
      %v2871 = vadd.f32 0.0, %v2870
      %2872 = vdwg.mxu0
      %2873 = vmatpush.bf16.msra.mxu0 %v2825
      %2874 = vmatpush.bf16.msra.mxu0 %v2823
      %2875 = vmatpush.bf16.msra.mxu0 %v2821
      %2876 = vmatpush.bf16.msra.mxu0 %v2819
      %2877 = vmatpush.bf16.msra.mxu0 %v2817
      %2878 = vmatpush.bf16.msra.mxu0 %v2815
      %2879 = vmatpush.bf16.msra.mxu0 %v2813
      %2880 = vmatpush.bf16.msra.mxu0 %v2811
      %2881 = vmatmul.bf16.gmra.mxu0 %v2696
      %v2882 = vpop.f32.mrf.mxu0
      %v2883 = vadd.f32 %v2869, %v2882
      %v2884 = vpop.f32.mrf.mxu0
      %v2885 = vadd.f32 %v2871, %v2884
      %2886 = vdwg.mxu0
      %2887 = vmatpush.bf16.msra.mxu0 %v2810
      %2888 = vmatpush.bf16.msra.mxu0 %v2808
      %2889 = vmatpush.bf16.msra.mxu0 %v2806
      %2890 = vmatpush.bf16.msra.mxu0 %v2804
      %2891 = vmatpush.bf16.msra.mxu0 %v2802
      %2892 = vmatpush.bf16.msra.mxu0 %v2800
      %2893 = vmatpush.bf16.msra.mxu0 %v2798
      %2894 = vmatpush.bf16.msra.mxu0 %v2796
      %2895 = vmatmul.bf16.gmra.mxu0 %v2684
      %v2896 = vpop.f32.mrf.mxu0
      %v2897 = vadd.f32 0.0, %v2896
      %v2898 = vpop.f32.mrf.mxu0
      %v2899 = vadd.f32 0.0, %v2898
      %2900 = vdwg.mxu0
      %2901 = vmatpush.bf16.msra.mxu0 %v2826
      %2902 = vmatpush.bf16.msra.mxu0 %v2824
      %2903 = vmatpush.bf16.msra.mxu0 %v2822
      %2904 = vmatpush.bf16.msra.mxu0 %v2820
      %2905 = vmatpush.bf16.msra.mxu0 %v2818
      %2906 = vmatpush.bf16.msra.mxu0 %v2816
      %2907 = vmatpush.bf16.msra.mxu0 %v2814
      %2908 = vmatpush.bf16.msra.mxu0 %v2812
      %2909 = vmatmul.bf16.gmra.mxu0 %v2696
      %v2910 = vpop.f32.mrf.mxu0
      %v2911 = vadd.f32 %v2897, %v2910
      %v2912 = vpop.f32.mrf.mxu0
      %v2913 = vadd.f32 %v2899, %v2912
      %2914 = vdwg.mxu0
      %v2949 = vunpack.c.l.b16 %v2594
      %v2950 = vunpack.c.h.b16 %v2594
      %v2951 = vunpack.c.l.b16 %v2595
      %v2952 = vunpack.c.h.b16 %v2595
      %v2953 = vunpack.c.l.b16 %v2596
      %v2954 = vunpack.c.h.b16 %v2596
      %v2955 = vunpack.c.l.b16 %v2597
      %v2956 = vunpack.c.h.b16 %v2597
      %v2957 = vunpack.c.l.b16 %v2598
      %v2958 = vunpack.c.h.b16 %v2598
      %v2959 = vunpack.c.l.b16 %v2599
      %v2960 = vunpack.c.h.b16 %v2599
      %v2961 = vunpack.c.l.b16 %v2600
      %v2962 = vunpack.c.h.b16 %v2600
      %v2963 = vunpack.c.l.b16 %v2601
      %v2964 = vunpack.c.h.b16 %v2601
      %v2965 = vunpack.c.l.b16 %v2602
      %v2966 = vunpack.c.h.b16 %v2602
      %v2967 = vunpack.c.l.b16 %v2603
      %v2968 = vunpack.c.h.b16 %v2603
      %v2969 = vunpack.c.l.b16 %v2604
      %v2970 = vunpack.c.h.b16 %v2604
      %v2971 = vunpack.c.l.b16 %v2605
      %v2972 = vunpack.c.h.b16 %v2605
      %v2973 = vunpack.c.l.b16 %v2606
      %v2974 = vunpack.c.h.b16 %v2606
      %v2975 = vunpack.c.l.b16 %v2607
      %v2976 = vunpack.c.h.b16 %v2607
      %v2977 = vunpack.c.l.b16 %v2608
      %v2978 = vunpack.c.h.b16 %v2608
      %v2979 = vunpack.c.l.b16 %v2609
      %v2980 = vunpack.c.h.b16 %v2609
      %v2981 = vunpack.c.l.b16 %v2610
      %v2982 = vunpack.c.h.b16 %v2610
      %v2983 = vunpack.c.l.b16 %v2611
      %v2984 = vunpack.c.h.b16 %v2611
      %v2985 = vunpack.c.l.b16 %v2612
      %v2986 = vunpack.c.h.b16 %v2612
      %v2987 = vunpack.c.l.b16 %v2613
      %v2988 = vunpack.c.h.b16 %v2613
      %v2989 = vunpack.c.l.b16 %v2614
      %v2990 = vunpack.c.h.b16 %v2614
      %v2991 = vunpack.c.l.b16 %v2615
      %v2992 = vunpack.c.h.b16 %v2615
      %v2993 = vunpack.c.l.b16 %v2616
      %v2994 = vunpack.c.h.b16 %v2616
      %v2995 = vunpack.c.l.b16 %v2617
      %v2996 = vunpack.c.h.b16 %v2617
      %v2997 = vunpack.c.l.b16 %v2618
      %v2998 = vunpack.c.h.b16 %v2618
      %v2999 = vunpack.c.l.b16 %v2619
      %v3000 = vunpack.c.h.b16 %v2619
      %v3001 = vunpack.c.l.b16 %v2620
      %v3002 = vunpack.c.h.b16 %v2620
      %v3003 = vunpack.c.l.b16 %v2621
      %v3004 = vunpack.c.h.b16 %v2621
      %v3005 = vunpack.c.l.b16 %v2622
      %v3006 = vunpack.c.h.b16 %v2622
      %v3007 = vunpack.c.l.b16 %v2623
      %v3008 = vunpack.c.h.b16 %v2623
      %v3009 = vunpack.c.l.b16 %v2624
      %v3010 = vunpack.c.h.b16 %v2624
      %v3011 = vunpack.c.l.b16 %v2625
      %v3012 = vunpack.c.h.b16 %v2625
      %v3013 = vpack.c.b16 %v2951, %v2949
      %v3014 = vpack.c.b16 %v2952, %v2950
      %v3015 = vpack.c.b16 %v2955, %v2953
      %v3016 = vpack.c.b16 %v2956, %v2954
      %v3017 = vpack.c.b16 %v2959, %v2957
      %v3018 = vpack.c.b16 %v2960, %v2958
      %v3019 = vpack.c.b16 %v2963, %v2961
      %v3020 = vpack.c.b16 %v2964, %v2962
      %v3021 = vpack.c.b16 %v2967, %v2965
      %v3022 = vpack.c.b16 %v2968, %v2966
      %v3023 = vpack.c.b16 %v2971, %v2969
      %v3024 = vpack.c.b16 %v2972, %v2970
      %v3025 = vpack.c.b16 %v2975, %v2973
      %v3026 = vpack.c.b16 %v2976, %v2974
      %v3027 = vpack.c.b16 %v2979, %v2977
      %v3028 = vpack.c.b16 %v2980, %v2978
      %v3029 = vpack.c.b16 %v2983, %v2981
      %v3030 = vpack.c.b16 %v2984, %v2982
      %v3031 = vpack.c.b16 %v2987, %v2985
      %v3032 = vpack.c.b16 %v2988, %v2986
      %v3033 = vpack.c.b16 %v2991, %v2989
      %v3034 = vpack.c.b16 %v2992, %v2990
      %v3035 = vpack.c.b16 %v2995, %v2993
      %v3036 = vpack.c.b16 %v2996, %v2994
      %v3037 = vpack.c.b16 %v2999, %v2997
      %v3038 = vpack.c.b16 %v3000, %v2998
      %v3039 = vpack.c.b16 %v3003, %v3001
      %v3040 = vpack.c.b16 %v3004, %v3002
      %v3041 = vpack.c.b16 %v3007, %v3005
      %v3042 = vpack.c.b16 %v3008, %v3006
      %v3043 = vpack.c.b16 %v3011, %v3009
      %v3044 = vpack.c.b16 %v3012, %v3010
      %3077 = vmatpush.bf16.msra.mxu0 %v3027
      %3078 = vmatpush.bf16.msra.mxu0 %v3025
      %3079 = vmatpush.bf16.msra.mxu0 %v3023
      %3080 = vmatpush.bf16.msra.mxu0 %v3021
      %3081 = vmatpush.bf16.msra.mxu0 %v3019
      %3082 = vmatpush.bf16.msra.mxu0 %v3017
      %3083 = vmatpush.bf16.msra.mxu0 %v3015
      %3084 = vmatpush.bf16.msra.mxu0 %v3013
      %3085 = vmatmul.bf16.gmra.mxu0 %v2669
      %v3086 = vpop.f32.mrf.mxu0
      %v3087 = vadd.f32 %v2883, %v3086
      %v3088 = vpop.f32.mrf.mxu0
      %v3089 = vadd.f32 %v2885, %v3088
      %3090 = vdwg.mxu0
      %3091 = vmatpush.bf16.msra.mxu0 %v3043
      %3092 = vmatpush.bf16.msra.mxu0 %v3041
      %3093 = vmatpush.bf16.msra.mxu0 %v3039
      %3094 = vmatpush.bf16.msra.mxu0 %v3037
      %3095 = vmatpush.bf16.msra.mxu0 %v3035
      %3096 = vmatpush.bf16.msra.mxu0 %v3033
      %3097 = vmatpush.bf16.msra.mxu0 %v3031
      %3098 = vmatpush.bf16.msra.mxu0 %v3029
      %3099 = vmatmul.bf16.gmra.mxu0 %v2670
      %v3100 = vpop.f32.mrf.mxu0
      %v3101 = vadd.f32 %v3087, %v3100
      %v3102 = vpop.f32.mrf.mxu0
      %v3103 = vadd.f32 %v3089, %v3102
      %3104 = vdwg.mxu0
      %3105 = vmatpush.bf16.msra.mxu0 %v3028
      %3106 = vmatpush.bf16.msra.mxu0 %v3026
      %3107 = vmatpush.bf16.msra.mxu0 %v3024
      %3108 = vmatpush.bf16.msra.mxu0 %v3022
      %3109 = vmatpush.bf16.msra.mxu0 %v3020
      %3110 = vmatpush.bf16.msra.mxu0 %v3018
      %3111 = vmatpush.bf16.msra.mxu0 %v3016
      %3112 = vmatpush.bf16.msra.mxu0 %v3014
      %3113 = vmatmul.bf16.gmra.mxu0 %v2669
      %v3114 = vpop.f32.mrf.mxu0
      %v3115 = vadd.f32 %v2911, %v3114
      %v3116 = vpop.f32.mrf.mxu0
      %v3117 = vadd.f32 %v2913, %v3116
      %3118 = vdwg.mxu0
      %3119 = vmatpush.bf16.msra.mxu0 %v3044
      %3120 = vmatpush.bf16.msra.mxu0 %v3042
      %3121 = vmatpush.bf16.msra.mxu0 %v3040
      %3122 = vmatpush.bf16.msra.mxu0 %v3038
      %3123 = vmatpush.bf16.msra.mxu0 %v3036
      %3124 = vmatpush.bf16.msra.mxu0 %v3034
      %3125 = vmatpush.bf16.msra.mxu0 %v3032
      %3126 = vmatpush.bf16.msra.mxu0 %v3030
      %3127 = vmatmul.bf16.gmra.mxu0 %v2670
      %v3128 = vpop.f32.mrf.mxu0
      %v3129 = vadd.f32 %v3115, %v3128
      %v3130 = vpop.f32.mrf.mxu0
      %v3131 = vadd.f32 %v3117, %v3130
      %3132 = vdwg.mxu0
      %v3133 = vld [vmem:[#allocation3] sm:$0xee]
      %s3134 = scalar_lea.vmem %s7, 512
      %v3135 = vld [vmem:[%s3134] sm:$0xff]
      %v3136 = vld [vmem:[%s3134 + $0x8] sm:$0xff]
      %v3137 = vld [vmem:[%s3134 + $0x10] sm:$0xff]
      %v3138 = vld [vmem:[%s3134 + $0x18] sm:$0xff]
      %v3139 = vld [vmem:[%s3134 + $0x20] sm:$0xff]
      %v3140 = vld [vmem:[%s3134 + $0x28] sm:$0xff]
      %v3141 = vld [vmem:[%s3134 + $0x30] sm:$0xff]
      %v3142 = vld [vmem:[%s3134 + $0x38] sm:$0xff]
      %v3143 = vld [vmem:[%s3134 + $0x40] sm:$0xff]
      %v3144 = vld [vmem:[%s3134 + $0x48] sm:$0xff]
      %v3145 = vld [vmem:[%s3134 + $0x50] sm:$0xff]
      %v3146 = vld [vmem:[%s3134 + $0x58] sm:$0xff]
      %v3147 = vld [vmem:[%s3134 + $0x60] sm:$0xff]
      %v3148 = vld [vmem:[%s3134 + $0x68] sm:$0xff]
      %v3149 = vld [vmem:[%s3134 + $0x70] sm:$0xff]
      %v3150 = vld [vmem:[%s3134 + $0x78] sm:$0xff]
      %v3151 = vld [vmem:[%s3134 + $0x80] sm:$0xff]
      %v3152 = vld [vmem:[%s3134 + $0x88] sm:$0xff]
      %v3153 = vld [vmem:[%s3134 + $0x90] sm:$0xff]
      %v3154 = vld [vmem:[%s3134 + $0x98] sm:$0xff]
      %v3155 = vld [vmem:[%s3134 + $0xa0] sm:$0xff]
      %v3156 = vld [vmem:[%s3134 + $0xa8] sm:$0xff]
      %v3157 = vld [vmem:[%s3134 + $0xb0] sm:$0xff]
      %v3158 = vld [vmem:[%s3134 + $0xb8] sm:$0xff]
      %v3159 = vld [vmem:[%s3134 + $0xc0] sm:$0xff]
      %v3160 = vld [vmem:[%s3134 + $0xc8] sm:$0xff]
      %v3161 = vld [vmem:[%s3134 + $0xd0] sm:$0xff]
      %v3162 = vld [vmem:[%s3134 + $0xd8] sm:$0xff]
      %v3163 = vld [vmem:[%s3134 + $0xe0] sm:$0xff]
      %v3164 = vld [vmem:[%s3134 + $0xe8] sm:$0xff]
      %v3165 = vld [vmem:[%s3134 + $0xf0] sm:$0xff]
      %v3166 = vld [vmem:[%s3134 + $0xf8] sm:$0xff]
      %v3168 = vunpack.c.l.b16 %v3133
      %v3169 = vunpack.c.h.b16 %v3133
      %v3170 = vpack.c.b16 %v2665, %v3168
      %v3171 = vpack.c.b16 %v2666, %v3169
      %v3172 = vrot.slane %v3170, 1
      %v3173 = vrot.slane %v2671, 1
      %v3174 = vsel %vm1152, %v3172, %v3173
      %v3175 = vrot.slane %v3171, 1
      %v3176 = vrot.slane %v2672, 1
      %v3177 = vsel %vm1152, %v3175, %v3176
      %v3212 = vunpack.c.l.b16 %v3135
      %v3213 = vunpack.c.h.b16 %v3135
      %v3214 = vunpack.c.l.b16 %v3136
      %v3215 = vunpack.c.h.b16 %v3136
      %v3216 = vunpack.c.l.b16 %v3137
      %v3217 = vunpack.c.h.b16 %v3137
      %v3218 = vunpack.c.l.b16 %v3138
      %v3219 = vunpack.c.h.b16 %v3138
      %v3220 = vunpack.c.l.b16 %v3139
      %v3221 = vunpack.c.h.b16 %v3139
      %v3222 = vunpack.c.l.b16 %v3140
      %v3223 = vunpack.c.h.b16 %v3140
      %v3224 = vunpack.c.l.b16 %v3141
      %v3225 = vunpack.c.h.b16 %v3141
      %v3226 = vunpack.c.l.b16 %v3142
      %v3227 = vunpack.c.h.b16 %v3142
      %v3228 = vunpack.c.l.b16 %v3143
      %v3229 = vunpack.c.h.b16 %v3143
      %v3230 = vunpack.c.l.b16 %v3144
      %v3231 = vunpack.c.h.b16 %v3144
      %v3232 = vunpack.c.l.b16 %v3145
      %v3233 = vunpack.c.h.b16 %v3145
      %v3234 = vunpack.c.l.b16 %v3146
      %v3235 = vunpack.c.h.b16 %v3146
      %v3236 = vunpack.c.l.b16 %v3147
      %v3237 = vunpack.c.h.b16 %v3147
      %v3238 = vunpack.c.l.b16 %v3148
      %v3239 = vunpack.c.h.b16 %v3148
      %v3240 = vunpack.c.l.b16 %v3149
      %v3241 = vunpack.c.h.b16 %v3149
      %v3242 = vunpack.c.l.b16 %v3150
      %v3243 = vunpack.c.h.b16 %v3150
      %v3244 = vunpack.c.l.b16 %v3151
      %v3245 = vunpack.c.h.b16 %v3151
      %v3246 = vunpack.c.l.b16 %v3152
      %v3247 = vunpack.c.h.b16 %v3152
      %v3248 = vunpack.c.l.b16 %v3153
      %v3249 = vunpack.c.h.b16 %v3153
      %v3250 = vunpack.c.l.b16 %v3154
      %v3251 = vunpack.c.h.b16 %v3154
      %v3252 = vunpack.c.l.b16 %v3155
      %v3253 = vunpack.c.h.b16 %v3155
      %v3254 = vunpack.c.l.b16 %v3156
      %v3255 = vunpack.c.h.b16 %v3156
      %v3256 = vunpack.c.l.b16 %v3157
      %v3257 = vunpack.c.h.b16 %v3157
      %v3258 = vunpack.c.l.b16 %v3158
      %v3259 = vunpack.c.h.b16 %v3158
      %v3260 = vunpack.c.l.b16 %v3159
      %v3261 = vunpack.c.h.b16 %v3159
      %v3262 = vunpack.c.l.b16 %v3160
      %v3263 = vunpack.c.h.b16 %v3160
      %v3264 = vunpack.c.l.b16 %v3161
      %v3265 = vunpack.c.h.b16 %v3161
      %v3266 = vunpack.c.l.b16 %v3162
      %v3267 = vunpack.c.h.b16 %v3162
      %v3268 = vunpack.c.l.b16 %v3163
      %v3269 = vunpack.c.h.b16 %v3163
      %v3270 = vunpack.c.l.b16 %v3164
      %v3271 = vunpack.c.h.b16 %v3164
      %v3272 = vunpack.c.l.b16 %v3165
      %v3273 = vunpack.c.h.b16 %v3165
      %v3274 = vunpack.c.l.b16 %v3166
      %v3275 = vunpack.c.h.b16 %v3166
      %v3276 = vpack.c.b16 %v3214, %v3212
      %v3277 = vpack.c.b16 %v3215, %v3213
      %v3278 = vpack.c.b16 %v3218, %v3216
      %v3279 = vpack.c.b16 %v3219, %v3217
      %v3280 = vpack.c.b16 %v3222, %v3220
      %v3281 = vpack.c.b16 %v3223, %v3221
      %v3282 = vpack.c.b16 %v3226, %v3224
      %v3283 = vpack.c.b16 %v3227, %v3225
      %v3284 = vpack.c.b16 %v3230, %v3228
      %v3285 = vpack.c.b16 %v3231, %v3229
      %v3286 = vpack.c.b16 %v3234, %v3232
      %v3287 = vpack.c.b16 %v3235, %v3233
      %v3288 = vpack.c.b16 %v3238, %v3236
      %v3289 = vpack.c.b16 %v3239, %v3237
      %v3290 = vpack.c.b16 %v3242, %v3240
      %v3291 = vpack.c.b16 %v3243, %v3241
      %v3292 = vpack.c.b16 %v3246, %v3244
      %v3293 = vpack.c.b16 %v3247, %v3245
      %v3294 = vpack.c.b16 %v3250, %v3248
      %v3295 = vpack.c.b16 %v3251, %v3249
      %v3296 = vpack.c.b16 %v3254, %v3252
      %v3297 = vpack.c.b16 %v3255, %v3253
      %v3298 = vpack.c.b16 %v3258, %v3256
      %v3299 = vpack.c.b16 %v3259, %v3257
      %v3300 = vpack.c.b16 %v3262, %v3260
      %v3301 = vpack.c.b16 %v3263, %v3261
      %v3302 = vpack.c.b16 %v3266, %v3264
      %v3303 = vpack.c.b16 %v3267, %v3265
      %v3304 = vpack.c.b16 %v3270, %v3268
      %v3305 = vpack.c.b16 %v3271, %v3269
      %v3306 = vpack.c.b16 %v3274, %v3272
      %v3307 = vpack.c.b16 %v3275, %v3273
      %3340 = vmatpush.bf16.msra.mxu0 %v3290
      %3341 = vmatpush.bf16.msra.mxu0 %v3288
      %3342 = vmatpush.bf16.msra.mxu0 %v3286
      %3343 = vmatpush.bf16.msra.mxu0 %v3284
      %3344 = vmatpush.bf16.msra.mxu0 %v3282
      %3345 = vmatpush.bf16.msra.mxu0 %v3280
      %3346 = vmatpush.bf16.msra.mxu0 %v3278
      %3347 = vmatpush.bf16.msra.mxu0 %v3276
      %3348 = vmatmul.bf16.gmra.mxu0 %v3174
      %v3349 = vpop.f32.mrf.mxu0
      %v3350 = vadd.f32 0.0, %v3349
      %v3351 = vpop.f32.mrf.mxu0
      %v3352 = vadd.f32 0.0, %v3351
      %3353 = vdwg.mxu0
      %3354 = vmatpush.bf16.msra.mxu0 %v3306
      %3355 = vmatpush.bf16.msra.mxu0 %v3304
      %3356 = vmatpush.bf16.msra.mxu0 %v3302
      %3357 = vmatpush.bf16.msra.mxu0 %v3300
      %3358 = vmatpush.bf16.msra.mxu0 %v3298
      %3359 = vmatpush.bf16.msra.mxu0 %v3296
      %3360 = vmatpush.bf16.msra.mxu0 %v3294
      %3361 = vmatpush.bf16.msra.mxu0 %v3292
      %3362 = vmatmul.bf16.gmra.mxu0 %v3177
      %v3363 = vpop.f32.mrf.mxu0
      %v3364 = vadd.f32 %v3350, %v3363
      %v3365 = vpop.f32.mrf.mxu0
      %v3366 = vadd.f32 %v3352, %v3365
      %3367 = vdwg.mxu0
      %3368 = vmatpush.bf16.msra.mxu0 %v3291
      %3369 = vmatpush.bf16.msra.mxu0 %v3289
      %3370 = vmatpush.bf16.msra.mxu0 %v3287
      %3371 = vmatpush.bf16.msra.mxu0 %v3285
      %3372 = vmatpush.bf16.msra.mxu0 %v3283
      %3373 = vmatpush.bf16.msra.mxu0 %v3281
      %3374 = vmatpush.bf16.msra.mxu0 %v3279
      %3375 = vmatpush.bf16.msra.mxu0 %v3277
      %3376 = vmatmul.bf16.gmra.mxu0 %v3174
      %v3377 = vpop.f32.mrf.mxu0
      %v3378 = vadd.f32 0.0, %v3377
      %v3379 = vpop.f32.mrf.mxu0
      %v3380 = vadd.f32 0.0, %v3379
      %3381 = vdwg.mxu0
      %3382 = vmatpush.bf16.msra.mxu0 %v3307
      %3383 = vmatpush.bf16.msra.mxu0 %v3305
      %3384 = vmatpush.bf16.msra.mxu0 %v3303
      %3385 = vmatpush.bf16.msra.mxu0 %v3301
      %3386 = vmatpush.bf16.msra.mxu0 %v3299
      %3387 = vmatpush.bf16.msra.mxu0 %v3297
      %3388 = vmatpush.bf16.msra.mxu0 %v3295
      %3389 = vmatpush.bf16.msra.mxu0 %v3293
      %3390 = vmatmul.bf16.gmra.mxu0 %v3177
      %v3391 = vpop.f32.mrf.mxu0
      %v3392 = vadd.f32 %v3378, %v3391
      %v3393 = vpop.f32.mrf.mxu0
      %v3394 = vadd.f32 %v3380, %v3393
      %3395 = vdwg.mxu0
      %v3396 = vadd.f32 %v3101, %v3364
      %v3397 = vadd.f32 %v3129, %v3392
      %v3398 = vadd.f32 %v3103, %v3366
      %v3399 = vadd.f32 %v3131, %v3394
      %v3400 = vld [vmem:[%s9] sm:$0xff]
      %v3401 = vld [vmem:[%s9 + $0x8] sm:$0xff]
      %v3402 = vld [vmem:[%s9 + $0x10] sm:$0xff]
      %v3403 = vld [vmem:[%s9 + $0x18] sm:$0xff]
      %v3404 = vld [vmem:[%s9 + $0x20] sm:$0xff]
      %v3405 = vld [vmem:[%s9 + $0x28] sm:$0xff]
      %v3406 = vld [vmem:[%s9 + $0x30] sm:$0xff]
      %v3407 = vld [vmem:[%s9 + $0x38] sm:$0xff]
      %v3408 = vld [vmem:[%s9 + $0x40] sm:$0xff]
      %v3409 = vld [vmem:[%s9 + $0x48] sm:$0xff]
      %v3410 = vld [vmem:[%s9 + $0x50] sm:$0xff]
      %v3411 = vld [vmem:[%s9 + $0x58] sm:$0xff]
      %v3412 = vld [vmem:[%s9 + $0x60] sm:$0xff]
      %v3413 = vld [vmem:[%s9 + $0x68] sm:$0xff]
      %v3414 = vld [vmem:[%s9 + $0x70] sm:$0xff]
      %v3415 = vld [vmem:[%s9 + $0x78] sm:$0xff]
      %v3416 = vld [vmem:[%s9 + $0x80] sm:$0xff]
      %v3417 = vld [vmem:[%s9 + $0x88] sm:$0xff]
      %v3418 = vld [vmem:[%s9 + $0x90] sm:$0xff]
      %v3419 = vld [vmem:[%s9 + $0x98] sm:$0xff]
      %v3420 = vld [vmem:[%s9 + $0xa0] sm:$0xff]
      %v3421 = vld [vmem:[%s9 + $0xa8] sm:$0xff]
      %v3422 = vld [vmem:[%s9 + $0xb0] sm:$0xff]
      %v3423 = vld [vmem:[%s9 + $0xb8] sm:$0xff]
      %v3424 = vld [vmem:[%s9 + $0xc0] sm:$0xff]
      %v3425 = vld [vmem:[%s9 + $0xc8] sm:$0xff]
      %v3426 = vld [vmem:[%s9 + $0xd0] sm:$0xff]
      %v3427 = vld [vmem:[%s9 + $0xd8] sm:$0xff]
      %v3428 = vld [vmem:[%s9 + $0xe0] sm:$0xff]
      %v3429 = vld [vmem:[%s9 + $0xe8] sm:$0xff]
      %v3430 = vld [vmem:[%s9 + $0xf0] sm:$0xff]
      %v3431 = vld [vmem:[%s9 + $0xf8] sm:$0xff]
      %v3432 = vld [vmem:[%s10] sm:$0xff]
      %v3433 = vld [vmem:[%s10 + $0x8] sm:$0xff]
      %v3434 = vld [vmem:[%s10 + $0x10] sm:$0xff]
      %v3435 = vld [vmem:[%s10 + $0x18] sm:$0xff]
      %v3436 = vld [vmem:[%s10 + $0x20] sm:$0xff]
      %v3437 = vld [vmem:[%s10 + $0x28] sm:$0xff]
      %v3438 = vld [vmem:[%s10 + $0x30] sm:$0xff]
      %v3439 = vld [vmem:[%s10 + $0x38] sm:$0xff]
      %v3440 = vld [vmem:[%s10 + $0x40] sm:$0xff]
      %v3441 = vld [vmem:[%s10 + $0x48] sm:$0xff]
      %v3442 = vld [vmem:[%s10 + $0x50] sm:$0xff]
      %v3443 = vld [vmem:[%s10 + $0x58] sm:$0xff]
      %v3444 = vld [vmem:[%s10 + $0x60] sm:$0xff]
      %v3445 = vld [vmem:[%s10 + $0x68] sm:$0xff]
      %v3446 = vld [vmem:[%s10 + $0x70] sm:$0xff]
      %v3447 = vld [vmem:[%s10 + $0x78] sm:$0xff]
      %v3448 = vld [vmem:[%s10 + $0x80] sm:$0xff]
      %v3449 = vld [vmem:[%s10 + $0x88] sm:$0xff]
      %v3450 = vld [vmem:[%s10 + $0x90] sm:$0xff]
      %v3451 = vld [vmem:[%s10 + $0x98] sm:$0xff]
      %v3452 = vld [vmem:[%s10 + $0xa0] sm:$0xff]
      %v3453 = vld [vmem:[%s10 + $0xa8] sm:$0xff]
      %v3454 = vld [vmem:[%s10 + $0xb0] sm:$0xff]
      %v3455 = vld [vmem:[%s10 + $0xb8] sm:$0xff]
      %v3456 = vld [vmem:[%s10 + $0xc0] sm:$0xff]
      %v3457 = vld [vmem:[%s10 + $0xc8] sm:$0xff]
      %v3458 = vld [vmem:[%s10 + $0xd0] sm:$0xff]
      %v3459 = vld [vmem:[%s10 + $0xd8] sm:$0xff]
      %v3460 = vld [vmem:[%s10 + $0xe0] sm:$0xff]
      %v3461 = vld [vmem:[%s10 + $0xe8] sm:$0xff]
      %v3462 = vld [vmem:[%s10 + $0xf0] sm:$0xff]
      %v3463 = vld [vmem:[%s10 + $0xf8] sm:$0xff]
      %v3464 = vadd.f32 %v3396, %v3398
      %v3465 = vrot.slane %v3464, 4
      %v3466 = vadd.f32 %v3464, %v3465
      %v3467 = vrot.slane %v3466, 2
      %v3468 = vadd.f32 %v3466, %v3467
      %v3469 = vrot.slane %v3468, 1
      %v3470 = vadd.f32 %v3468, %v3469
      %v3471 = vadd.f32 %v3397, %v3399
      %v3472 = vrot.slane %v3471, 4
      %v3473 = vadd.f32 %v3471, %v3472
      %v3474 = vrot.slane %v3473, 2
      %v3475 = vadd.f32 %v3473, %v3474
      %v3476 = vrot.slane %v3475, 1
      %v3477 = vadd.f32 %v3475, %v3476
      %3478 = vmatpush.msra.mxu0 %v3415
      %3479 = vmatpush.msra.mxu0 %v3414
      %3480 = vmatpush.msra.mxu0 %v3413
      %3481 = vmatpush.msra.mxu0 %v3412
      %3482 = vmatpush.msra.mxu0 %v3411
      %3483 = vmatpush.msra.mxu0 %v3410
      %3484 = vmatpush.msra.mxu0 %v3409
      %3485 = vmatpush.msra.mxu0 %v3408
      %3486 = vmatpush.msra.mxu0 %v3407
      %3487 = vmatpush.msra.mxu0 %v3406
      %3488 = vmatpush.msra.mxu0 %v3405
      %3489 = vmatpush.msra.mxu0 %v3404
      %3490 = vmatpush.msra.mxu0 %v3403
      %3491 = vmatpush.msra.mxu0 %v3402
      %3492 = vmatpush.msra.mxu0 %v3401
      %3493 = vmatpush.msra.mxu0 %v3400
      %3494 = vmatmul.f32.gmra.mxu0 %v3470
      %v3495 = vpop.f32.mrf.mxu0
      %v3496 = vadd.f32 0.0, %v3495
      %3497 = vdwg.mxu0
      %3498 = vmatpush.msra.mxu0 %v3431
      %3499 = vmatpush.msra.mxu0 %v3430
      %3500 = vmatpush.msra.mxu0 %v3429
      %3501 = vmatpush.msra.mxu0 %v3428
      %3502 = vmatpush.msra.mxu0 %v3427
      %3503 = vmatpush.msra.mxu0 %v3426
      %3504 = vmatpush.msra.mxu0 %v3425
      %3505 = vmatpush.msra.mxu0 %v3424
      %3506 = vmatpush.msra.mxu0 %v3423
      %3507 = vmatpush.msra.mxu0 %v3422
      %3508 = vmatpush.msra.mxu0 %v3421
      %3509 = vmatpush.msra.mxu0 %v3420
      %3510 = vmatpush.msra.mxu0 %v3419
      %3511 = vmatpush.msra.mxu0 %v3418
      %3512 = vmatpush.msra.mxu0 %v3417
      %3513 = vmatpush.msra.mxu0 %v3416
      %3514 = vmatmul.f32.gmra.mxu0 %v3477
      %v3515 = vpop.f32.mrf.mxu0
      %v3516 = vadd.f32 %v3496, %v3515
      %3517 = vdwg.mxu0
      %v3518 = vmul.f32 %v3516, 0.015625
      %3519 = vmatpush.msra.mxu0 %v3462
      %3520 = vmatpush.msra.mxu0 %v3460
      %3521 = vmatpush.msra.mxu0 %v3458
      %3522 = vmatpush.msra.mxu0 %v3456
      %3523 = vmatpush.msra.mxu0 %v3454
      %3524 = vmatpush.msra.mxu0 %v3452
      %3525 = vmatpush.msra.mxu0 %v3450
      %3526 = vmatpush.msra.mxu0 %v3448
      %3527 = vmatpush.msra.mxu0 %v3446
      %3528 = vmatpush.msra.mxu0 %v3444
      %3529 = vmatpush.msra.mxu0 %v3442
      %3530 = vmatpush.msra.mxu0 %v3440
      %3531 = vmatpush.msra.mxu0 %v3438
      %3532 = vmatpush.msra.mxu0 %v3436
      %3533 = vmatpush.msra.mxu0 %v3434
      %3534 = vmatpush.msra.mxu0 %v3432
      %3535 = vmatmul.f32.gmra.mxu0 %v3518
      %v3536 = vpop.f32.mrf.mxu0
      %v3537 = vadd.f32 0.0, %v3536
      %3538 = vdwg.mxu0
      %3539 = vmatpush.msra.mxu0 %v3463
      %3540 = vmatpush.msra.mxu0 %v3461
      %3541 = vmatpush.msra.mxu0 %v3459
      %3542 = vmatpush.msra.mxu0 %v3457
      %3543 = vmatpush.msra.mxu0 %v3455
      %3544 = vmatpush.msra.mxu0 %v3453
      %3545 = vmatpush.msra.mxu0 %v3451
      %3546 = vmatpush.msra.mxu0 %v3449
      %3547 = vmatpush.msra.mxu0 %v3447
      %3548 = vmatpush.msra.mxu0 %v3445
      %3549 = vmatpush.msra.mxu0 %v3443
      %3550 = vmatpush.msra.mxu0 %v3441
      %3551 = vmatpush.msra.mxu0 %v3439
      %3552 = vmatpush.msra.mxu0 %v3437
      %3553 = vmatpush.msra.mxu0 %v3435
      %3554 = vmatpush.msra.mxu0 %v3433
      %3555 = vmatmul.f32.gmra.mxu0 %v3518
      %v3556 = vpop.f32.mrf.mxu0
      %v3557 = vadd.f32 0.0, %v3556
      %3558 = vdwg.mxu0
      %v3559 = vperm.slane %v3537, 0
      %v3560 = vperm.slane %v3557, 0
      %v3561 = vsub.f32 %v3396, %v3559
      %v3562 = vsub.f32 %v3397, %v3560
      %v3563 = vsub.f32 %v3398, %v3559
      %v3564 = vsub.f32 %v3399, %v3560
      %v3565 = vmul.f32 %v3561, %v3561
      %v3566 = vmul.f32 %v3562, %v3562
      %v3567 = vmul.f32 %v3563, %v3563
      %v3568 = vmul.f32 %v3564, %v3564
      %v3569 = vadd.f32 %v3565, %v3567
      %v3570 = vrot.slane %v3569, 4
      %v3571 = vadd.f32 %v3569, %v3570
      %v3572 = vrot.slane %v3571, 2
      %v3573 = vadd.f32 %v3571, %v3572
      %v3574 = vrot.slane %v3573, 1
      %v3575 = vadd.f32 %v3573, %v3574
      %v3576 = vadd.f32 %v3566, %v3568
      %v3577 = vrot.slane %v3576, 4
      %v3578 = vadd.f32 %v3576, %v3577
      %v3579 = vrot.slane %v3578, 2
      %v3580 = vadd.f32 %v3578, %v3579
      %v3581 = vrot.slane %v3580, 1
      %v3582 = vadd.f32 %v3580, %v3581
      %3583 = vmatpush.msra.mxu0 %v3415
      %3584 = vmatpush.msra.mxu0 %v3414
      %3585 = vmatpush.msra.mxu0 %v3413
      %3586 = vmatpush.msra.mxu0 %v3412
      %3587 = vmatpush.msra.mxu0 %v3411
      %3588 = vmatpush.msra.mxu0 %v3410
      %3589 = vmatpush.msra.mxu0 %v3409
      %3590 = vmatpush.msra.mxu0 %v3408
      %3591 = vmatpush.msra.mxu0 %v3407
      %3592 = vmatpush.msra.mxu0 %v3406
      %3593 = vmatpush.msra.mxu0 %v3405
      %3594 = vmatpush.msra.mxu0 %v3404
      %3595 = vmatpush.msra.mxu0 %v3403
      %3596 = vmatpush.msra.mxu0 %v3402
      %3597 = vmatpush.msra.mxu0 %v3401
      %3598 = vmatpush.msra.mxu0 %v3400
      %3599 = vmatmul.f32.gmra.mxu0 %v3575
      %v3600 = vpop.f32.mrf.mxu0
      %v3601 = vadd.f32 0.0, %v3600
      %3602 = vdwg.mxu0
      %3603 = vmatpush.msra.mxu0 %v3431
      %3604 = vmatpush.msra.mxu0 %v3430
      %3605 = vmatpush.msra.mxu0 %v3429
      %3606 = vmatpush.msra.mxu0 %v3428
      %3607 = vmatpush.msra.mxu0 %v3427
      %3608 = vmatpush.msra.mxu0 %v3426
      %3609 = vmatpush.msra.mxu0 %v3425
      %3610 = vmatpush.msra.mxu0 %v3424
      %3611 = vmatpush.msra.mxu0 %v3423
      %3612 = vmatpush.msra.mxu0 %v3422
      %3613 = vmatpush.msra.mxu0 %v3421
      %3614 = vmatpush.msra.mxu0 %v3420
      %3615 = vmatpush.msra.mxu0 %v3419
      %3616 = vmatpush.msra.mxu0 %v3418
      %3617 = vmatpush.msra.mxu0 %v3417
      %3618 = vmatpush.msra.mxu0 %v3416
      %3619 = vmatmul.f32.gmra.mxu0 %v3582
      %v3620 = vpop.f32.mrf.mxu0
      %v3621 = vadd.f32 %v3601, %v3620
      %3622 = vdwg.mxu0
      %v3623 = vmul.f32 %v3621, 0.015625
      %v3624 = vadd.f32 %v3623, 1e-05
      %v3625 = vrsqrt.pop %v3624
      %v3626 = vmul.f32 %v3625, %v3624
      %v3627 = vmul.f32 %v3626, %v3625
      %v3628 = vmul.f32 0.5, %v3627
      %v3629 = vsub.f32 1.5, %v3628
      %v3630 = vmul.f32 %v3625, %v3629
      %vm3631 = vweird.f32 %v3624
      %vm3632 = vweird.f32 %v3625
      %vm3633 = vmor %vm3631, %vm3632
      %v3634 = vsel %vm3633, %v3625, %v3630
      %3635 = vmatpush.msra.mxu0 %v3462
      %3636 = vmatpush.msra.mxu0 %v3460
      %3637 = vmatpush.msra.mxu0 %v3458
      %3638 = vmatpush.msra.mxu0 %v3456
      %3639 = vmatpush.msra.mxu0 %v3454
      %3640 = vmatpush.msra.mxu0 %v3452
      %3641 = vmatpush.msra.mxu0 %v3450
      %3642 = vmatpush.msra.mxu0 %v3448
      %3643 = vmatpush.msra.mxu0 %v3446
      %3644 = vmatpush.msra.mxu0 %v3444
      %3645 = vmatpush.msra.mxu0 %v3442
      %3646 = vmatpush.msra.mxu0 %v3440
      %3647 = vmatpush.msra.mxu0 %v3438
      %3648 = vmatpush.msra.mxu0 %v3436
      %3649 = vmatpush.msra.mxu0 %v3434
      %3650 = vmatpush.msra.mxu0 %v3432
      %3651 = vmatmul.f32.gmra.mxu0 %v3634
      %v3652 = vpop.f32.mrf.mxu0
      %v3653 = vadd.f32 0.0, %v3652
      %3654 = vdwg.mxu0
      %3655 = vmatpush.msra.mxu0 %v3463
      %3656 = vmatpush.msra.mxu0 %v3461
      %3657 = vmatpush.msra.mxu0 %v3459
      %3658 = vmatpush.msra.mxu0 %v3457
      %3659 = vmatpush.msra.mxu0 %v3455
      %3660 = vmatpush.msra.mxu0 %v3453
      %3661 = vmatpush.msra.mxu0 %v3451
      %3662 = vmatpush.msra.mxu0 %v3449
      %3663 = vmatpush.msra.mxu0 %v3447
      %3664 = vmatpush.msra.mxu0 %v3445
      %3665 = vmatpush.msra.mxu0 %v3443
      %3666 = vmatpush.msra.mxu0 %v3441
      %3667 = vmatpush.msra.mxu0 %v3439
      %3668 = vmatpush.msra.mxu0 %v3437
      %3669 = vmatpush.msra.mxu0 %v3435
      %3670 = vmatpush.msra.mxu0 %v3433
      %3671 = vmatmul.f32.gmra.mxu0 %v3634
      %v3672 = vpop.f32.mrf.mxu0
      %v3673 = vadd.f32 0.0, %v3672
      %3674 = vdwg.mxu0
      %v3675 = vperm.slane %v3653, 0
      %v3676 = vperm.slane %v3673, 0
      %v3677 = vmul.f32 %v3561, %v3675
      %v3678 = vmul.f32 %v3562, %v3676
      %v3679 = vmul.f32 %v3563, %v3675
      %v3680 = vmul.f32 %v3564, %v3676
      %v3681 = vld [vmem:[%s8] ss:$2 sm:$0x3]
      %v3683 = vperm.slane %v3681, 0
      %v3684 = vperm.slane %v3681, 1
      %v3687 = vmul.f32 %v3677, %v3683
      %v3688 = vmul.f32 %v3678, %v3684
      %v3689 = vmul.f32 %v3679, %v3683
      %v3690 = vmul.f32 %v3680, %v3684
      %s3691 = scalar_lea.vmem %s8, 1
      %v3692 = vld [vmem:[%s3691] ss:$2 sm:$0x3]
      %v3694 = vperm.slane %v3692, 0
      %v3695 = vperm.slane %v3692, 1
      %v3698 = vadd.f32 %v3687, %v3694
      %v3699 = vadd.f32 %v3688, %v3695
      %v3700 = vadd.f32 %v3689, %v3694
      %v3701 = vadd.f32 %v3690, %v3695
      %vm3702 = vcmp.gt.f32.partialorder %v3698, 0.0
      %vm3703 = vcmp.gt.f32.partialorder %v3699, 0.0
      %vm3704 = vcmp.gt.f32.partialorder %v3700, 0.0
      %vm3705 = vcmp.gt.f32.partialorder %v3701, 0.0
      %v3706 = vmul.f32 %v3698, 0.2
      %v3707 = vmul.f32 %v3699, 0.2
      %v3708 = vmul.f32 %v3700, 0.2
      %v3709 = vmul.f32 %v3701, 0.2
      %v3710 = vsel %vm3702, %v3698, %v3706
      %v3711 = vsel %vm3703, %v3699, %v3707
      %v3712 = vsel %vm3704, %v3700, %v3708
      %v3713 = vsel %vm3705, %v3701, %v3709
      %v3714 = vpack.c.bf16 %v3711, %v3710
      %s3715 = scalar_lea.vmem [#allocation4], 16
      %v3716 = vld [vmem:[%s3715] sm:$0x11]
      %v3717 = vsel %vm561, %v3714, %v3716
      %3718 = vst [vmem:[%s3715] sm:$0x11] %v3717
      %vm3719 = vmand %vm555, %vm1428
      %vm3720 = vmand %vm558, %vm1431
      %vm3721 = vmor %vm3720, %vm3719
      %v3722 = vld [vmem:[#allocation4] sm:$0x11]
      %v3723 = vsel %vm3721, %v3714, %v3722
      %3724 = vst [vmem:[#allocation4] sm:$0x11] %v3723
      %v3726 = vshll.u32 %v3714, 16
      %v3728 = vrot.slane %v3726, 5
      %v3729 = vrot.slane %v3728, 4
      %v3731 = vld [vmem:[%s3715] sm:$0x11]
      %v3732 = vsel %vm3721, %v3729, %v3731
      %3733 = vst [vmem:[%s3715] sm:$0x11] %v3732
      %v3734 = vshrl.u32 %v3714, 16
      %v3736 = vrot.slane %v3734, 4
      %v3737 = vrot.slane %v3736, 4
      %vm3739 = vcmask 1041409
      %vm3740 = vsmask.f32 1280
      %vm3741 = vmand %vm3739, %vm3740
      %vm3742 = vcmask 1045509
      %vm3743 = vsmask.f32 5376
      %vm3744 = vmand %vm3742, %vm3743
      %vm3745 = vmor %vm3744, %vm3741
      %v3746 = vld [vmem:[#allocation4] sm:$0x22]
      %v3747 = vsel %vm3745, %v3737, %v3746
      %3748 = vst [vmem:[#allocation4] sm:$0x22] %v3747
      %v3750 = vrot.slane %v3714, 5
      %v3751 = vrot.slane %v3750, 4
      %v3753 = vld [vmem:[%s3715] sm:$0x22]
      %v3754 = vsel %vm3745, %v3751, %v3753
      %3755 = vst [vmem:[%s3715] sm:$0x22] %v3754
      %vm3756 = vsmask.f32 7942
      %vm3757 = vmand %vm3739, %vm3756
      %vm3758 = vsmask.f32 7958
      %vm3759 = vmand %vm3742, %vm3758
      %vm3760 = vmor %vm3759, %vm3757
      %v3761 = vld [vmem:[#allocation4] sm:$0x22]
      %v3762 = vsel %vm3760, %v3751, %v3761
      %3763 = vst [vmem:[#allocation4] sm:$0x22] %v3762
      %v3764 = vrot.slane %v3726, 6
      %v3765 = vrot.slane %v3764, 4
      %v3767 = vld [vmem:[%s3715] sm:$0x22]
      %v3768 = vsel %vm3760, %v3765, %v3767
      %3769 = vst [vmem:[%s3715] sm:$0x22] %v3768
      %v3770 = vrot.slane %v3734, 5
      %v3771 = vrot.slane %v3770, 4
      %vm3773 = vcmask 1042434
      %vm3774 = vsmask.f32 2304
      %vm3775 = vmand %vm3773, %vm3774
      %vm3776 = vcmask 1046534
      %vm3777 = vsmask.f32 6400
      %vm3778 = vmand %vm3776, %vm3777
      %vm3779 = vmor %vm3778, %vm3775
      %v3780 = vld [vmem:[#allocation4] sm:$0x44]
      %v3781 = vsel %vm3779, %v3771, %v3780
      %3782 = vst [vmem:[#allocation4] sm:$0x44] %v3781
      %v3783 = vpack.c.bf16 %v3713, %v3712
      %v3785 = vrot.slane %v3783, 6
      %v3787 = vld [vmem:[%s3715] sm:$0x44]
      %v3788 = vsel %vm3779, %v3785, %v3787
      %3789 = vst [vmem:[%s3715] sm:$0x44] %v3788
      %vm3790 = vsmask.f32 7946
      %vm3791 = vmand %vm3773, %vm3790
      %vm3792 = vsmask.f32 7962
      %vm3793 = vmand %vm3776, %vm3792
      %vm3794 = vmor %vm3793, %vm3791
      %v3795 = vld [vmem:[#allocation4] sm:$0x44]
      %v3796 = vsel %vm3794, %v3785, %v3795
      %3797 = vst [vmem:[#allocation4] sm:$0x44] %v3796
      %v3799 = vshll.u32 %v3783, 16
      %v3801 = vrot.slane %v3799, 7
      %v3803 = vld [vmem:[%s3715] sm:$0x44]
      %v3804 = vsel %vm3794, %v3801, %v3803
      %3805 = vst [vmem:[%s3715] sm:$0x44] %v3804
      %v3806 = vshrl.u32 %v3783, 16
      %v3808 = vrot.slane %v3806, 6
      %vm3810 = vcmask 1043459
      %vm3811 = vsmask.f32 3328
      %vm3812 = vmand %vm3810, %vm3811
      %vm3813 = vcmask 1047559
      %vm3814 = vmand %vm3813, %vm652
      %vm3815 = vmor %vm3814, %vm3812
      %v3816 = vld [vmem:[#allocation4] sm:$0x88]
      %v3817 = vsel %vm3815, %v3808, %v3816
      %3818 = vst [vmem:[#allocation4] sm:$0x88] %v3817
      %v3819 = vrot.slane %v3783, 7
      %v3821 = vld [vmem:[%s3715] sm:$0x88]
      %v3822 = vsel %vm3815, %v3819, %v3821
      %3823 = vst [vmem:[%s3715] sm:$0x88] %v3822
      %vm3824 = vsmask.f32 7950
      %vm3825 = vmand %vm3810, %vm3824
      %vm3826 = vsmask.f32 7966
      %vm3827 = vmand %vm3813, %vm3826
      %vm3828 = vmor %vm3827, %vm3825
      %v3829 = vld [vmem:[#allocation4] sm:$0x88]
      %v3830 = vsel %vm3828, %v3819, %v3829
      %3831 = vst [vmem:[#allocation4] sm:$0x88] %v3830
      %v3833 = vld [vmem:[%s3715] sm:$0x88]
      %v3834 = vsel %vm3828, %v3799, %v3833
      %3835 = vst [vmem:[%s3715] sm:$0x88] %v3834
      %v3836 = vrot.slane %v3806, 7
      %v3837 = vrot.slane %v3836, 4
      %v3839 = vld [vmem:[#allocation4 + $0x8] sm:$0x11]
      %v3840 = vsel %vm561, %v3837, %v3839
      %3841 = vst [vmem:[#allocation4 + $0x8] sm:$0x11] %v3840
      %v3842 = vld [vmem:[#allocation4] sm:$0xff]
      %v3843 = vld [vmem:[%s11] sm:$0xff]
      %v3844 = vld [vmem:[%s11 + $0x8] sm:$0xff]
      %v3845 = vld [vmem:[%s11 + $0x10] sm:$0xff]
      %v3846 = vld [vmem:[%s11 + $0x18] sm:$0xff]
      %v3847 = vld [vmem:[%s11 + $0x20] sm:$0xff]
      %v3848 = vld [vmem:[%s11 + $0x28] sm:$0xff]
      %v3849 = vld [vmem:[%s11 + $0x30] sm:$0xff]
      %v3850 = vld [vmem:[%s11 + $0x38] sm:$0xff]
      %v3851 = vld [vmem:[%s11 + $0x40] sm:$0xff]
      %v3852 = vld [vmem:[%s11 + $0x48] sm:$0xff]
      %v3853 = vld [vmem:[%s11 + $0x50] sm:$0xff]
      %v3854 = vld [vmem:[%s11 + $0x58] sm:$0xff]
      %v3855 = vld [vmem:[%s11 + $0x60] sm:$0xff]
      %v3856 = vld [vmem:[%s11 + $0x68] sm:$0xff]
      %v3857 = vld [vmem:[%s11 + $0x70] sm:$0xff]
      %v3858 = vld [vmem:[%s11 + $0x78] sm:$0xff]
      %v3859 = vld [vmem:[%s11 + $0x80] sm:$0xff]
      %v3860 = vld [vmem:[%s11 + $0x88] sm:$0xff]
      %v3861 = vld [vmem:[%s11 + $0x90] sm:$0xff]
      %v3862 = vld [vmem:[%s11 + $0x98] sm:$0xff]
      %v3863 = vld [vmem:[%s11 + $0xa0] sm:$0xff]
      %v3864 = vld [vmem:[%s11 + $0xa8] sm:$0xff]
      %v3865 = vld [vmem:[%s11 + $0xb0] sm:$0xff]
      %v3866 = vld [vmem:[%s11 + $0xb8] sm:$0xff]
      %v3867 = vld [vmem:[%s11 + $0xc0] sm:$0xff]
      %v3868 = vld [vmem:[%s11 + $0xc8] sm:$0xff]
      %v3869 = vld [vmem:[%s11 + $0xd0] sm:$0xff]
      %v3870 = vld [vmem:[%s11 + $0xd8] sm:$0xff]
      %v3871 = vld [vmem:[%s11 + $0xe0] sm:$0xff]
      %v3872 = vld [vmem:[%s11 + $0xe8] sm:$0xff]
      %v3873 = vld [vmem:[%s11 + $0xf0] sm:$0xff]
      %v3874 = vld [vmem:[%s11 + $0xf8] sm:$0xff]
      %v3875 = vld [vmem:[%s3715] sm:$0xff]
      %s3876 = scalar_lea.vmem %s11, 256
      %v3877 = vld [vmem:[%s3876] sm:$0xff]
      %v3878 = vld [vmem:[%s3876 + $0x8] sm:$0xff]
      %v3879 = vld [vmem:[%s3876 + $0x10] sm:$0xff]
      %v3880 = vld [vmem:[%s3876 + $0x18] sm:$0xff]
      %v3881 = vld [vmem:[%s3876 + $0x20] sm:$0xff]
      %v3882 = vld [vmem:[%s3876 + $0x28] sm:$0xff]
      %v3883 = vld [vmem:[%s3876 + $0x30] sm:$0xff]
      %v3884 = vld [vmem:[%s3876 + $0x38] sm:$0xff]
      %v3885 = vld [vmem:[%s3876 + $0x40] sm:$0xff]
      %v3886 = vld [vmem:[%s3876 + $0x48] sm:$0xff]
      %v3887 = vld [vmem:[%s3876 + $0x50] sm:$0xff]
      %v3888 = vld [vmem:[%s3876 + $0x58] sm:$0xff]
      %v3889 = vld [vmem:[%s3876 + $0x60] sm:$0xff]
      %v3890 = vld [vmem:[%s3876 + $0x68] sm:$0xff]
      %v3891 = vld [vmem:[%s3876 + $0x70] sm:$0xff]
      %v3892 = vld [vmem:[%s3876 + $0x78] sm:$0xff]
      %v3893 = vld [vmem:[%s3876 + $0x80] sm:$0xff]
      %v3894 = vld [vmem:[%s3876 + $0x88] sm:$0xff]
      %v3895 = vld [vmem:[%s3876 + $0x90] sm:$0xff]
      %v3896 = vld [vmem:[%s3876 + $0x98] sm:$0xff]
      %v3897 = vld [vmem:[%s3876 + $0xa0] sm:$0xff]
      %v3898 = vld [vmem:[%s3876 + $0xa8] sm:$0xff]
      %v3899 = vld [vmem:[%s3876 + $0xb0] sm:$0xff]
      %v3900 = vld [vmem:[%s3876 + $0xb8] sm:$0xff]
      %v3901 = vld [vmem:[%s3876 + $0xc0] sm:$0xff]
      %v3902 = vld [vmem:[%s3876 + $0xc8] sm:$0xff]
      %v3903 = vld [vmem:[%s3876 + $0xd0] sm:$0xff]
      %v3904 = vld [vmem:[%s3876 + $0xd8] sm:$0xff]
      %v3905 = vld [vmem:[%s3876 + $0xe0] sm:$0xff]
      %v3906 = vld [vmem:[%s3876 + $0xe8] sm:$0xff]
      %v3907 = vld [vmem:[%s3876 + $0xf0] sm:$0xff]
      %v3908 = vld [vmem:[%s3876 + $0xf8] sm:$0xff]
      %v3910 = vunpack.c.l.b16 %v3875
      %v3911 = vunpack.c.h.b16 %v3875
      %v3912 = vpack.c.b16 %v3910, %v3910
      %v3913 = vpack.c.b16 %v3911, %v3911
      %v3948 = vunpack.c.l.b16 %v3877
      %v3949 = vunpack.c.h.b16 %v3877
      %v3950 = vunpack.c.l.b16 %v3878
      %v3951 = vunpack.c.h.b16 %v3878
      %v3952 = vunpack.c.l.b16 %v3879
      %v3953 = vunpack.c.h.b16 %v3879
      %v3954 = vunpack.c.l.b16 %v3880
      %v3955 = vunpack.c.h.b16 %v3880
      %v3956 = vunpack.c.l.b16 %v3881
      %v3957 = vunpack.c.h.b16 %v3881
      %v3958 = vunpack.c.l.b16 %v3882
      %v3959 = vunpack.c.h.b16 %v3882
      %v3960 = vunpack.c.l.b16 %v3883
      %v3961 = vunpack.c.h.b16 %v3883
      %v3962 = vunpack.c.l.b16 %v3884
      %v3963 = vunpack.c.h.b16 %v3884
      %v3964 = vunpack.c.l.b16 %v3885
      %v3965 = vunpack.c.h.b16 %v3885
      %v3966 = vunpack.c.l.b16 %v3886
      %v3967 = vunpack.c.h.b16 %v3886
      %v3968 = vunpack.c.l.b16 %v3887
      %v3969 = vunpack.c.h.b16 %v3887
      %v3970 = vunpack.c.l.b16 %v3888
      %v3971 = vunpack.c.h.b16 %v3888
      %v3972 = vunpack.c.l.b16 %v3889
      %v3973 = vunpack.c.h.b16 %v3889
      %v3974 = vunpack.c.l.b16 %v3890
      %v3975 = vunpack.c.h.b16 %v3890
      %v3976 = vunpack.c.l.b16 %v3891
      %v3977 = vunpack.c.h.b16 %v3891
      %v3978 = vunpack.c.l.b16 %v3892
      %v3979 = vunpack.c.h.b16 %v3892
      %v3980 = vunpack.c.l.b16 %v3893
      %v3981 = vunpack.c.h.b16 %v3893
      %v3982 = vunpack.c.l.b16 %v3894
      %v3983 = vunpack.c.h.b16 %v3894
      %v3984 = vunpack.c.l.b16 %v3895
      %v3985 = vunpack.c.h.b16 %v3895
      %v3986 = vunpack.c.l.b16 %v3896
      %v3987 = vunpack.c.h.b16 %v3896
      %v3988 = vunpack.c.l.b16 %v3897
      %v3989 = vunpack.c.h.b16 %v3897
      %v3990 = vunpack.c.l.b16 %v3898
      %v3991 = vunpack.c.h.b16 %v3898
      %v3992 = vunpack.c.l.b16 %v3899
      %v3993 = vunpack.c.h.b16 %v3899
      %v3994 = vunpack.c.l.b16 %v3900
      %v3995 = vunpack.c.h.b16 %v3900
      %v3996 = vunpack.c.l.b16 %v3901
      %v3997 = vunpack.c.h.b16 %v3901
      %v3998 = vunpack.c.l.b16 %v3902
      %v3999 = vunpack.c.h.b16 %v3902
      %v4000 = vunpack.c.l.b16 %v3903
      %v4001 = vunpack.c.h.b16 %v3903
      %v4002 = vunpack.c.l.b16 %v3904
      %v4003 = vunpack.c.h.b16 %v3904
      %v4004 = vunpack.c.l.b16 %v3905
      %v4005 = vunpack.c.h.b16 %v3905
      %v4006 = vunpack.c.l.b16 %v3906
      %v4007 = vunpack.c.h.b16 %v3906
      %v4008 = vunpack.c.l.b16 %v3907
      %v4009 = vunpack.c.h.b16 %v3907
      %v4010 = vunpack.c.l.b16 %v3908
      %v4011 = vunpack.c.h.b16 %v3908
      %v4012 = vpack.c.b16 %v3950, %v3948
      %v4013 = vpack.c.b16 %v3951, %v3949
      %v4014 = vpack.c.b16 %v3954, %v3952
      %v4015 = vpack.c.b16 %v3955, %v3953
      %v4016 = vpack.c.b16 %v3958, %v3956
      %v4017 = vpack.c.b16 %v3959, %v3957
      %v4018 = vpack.c.b16 %v3962, %v3960
      %v4019 = vpack.c.b16 %v3963, %v3961
      %v4020 = vpack.c.b16 %v3966, %v3964
      %v4021 = vpack.c.b16 %v3967, %v3965
      %v4022 = vpack.c.b16 %v3970, %v3968
      %v4023 = vpack.c.b16 %v3971, %v3969
      %v4024 = vpack.c.b16 %v3974, %v3972
      %v4025 = vpack.c.b16 %v3975, %v3973
      %v4026 = vpack.c.b16 %v3978, %v3976
      %v4027 = vpack.c.b16 %v3979, %v3977
      %v4028 = vpack.c.b16 %v3982, %v3980
      %v4029 = vpack.c.b16 %v3983, %v3981
      %v4030 = vpack.c.b16 %v3986, %v3984
      %v4031 = vpack.c.b16 %v3987, %v3985
      %v4032 = vpack.c.b16 %v3990, %v3988
      %v4033 = vpack.c.b16 %v3991, %v3989
      %v4034 = vpack.c.b16 %v3994, %v3992
      %v4035 = vpack.c.b16 %v3995, %v3993
      %v4036 = vpack.c.b16 %v3998, %v3996
      %v4037 = vpack.c.b16 %v3999, %v3997
      %v4038 = vpack.c.b16 %v4002, %v4000
      %v4039 = vpack.c.b16 %v4003, %v4001
      %v4040 = vpack.c.b16 %v4006, %v4004
      %v4041 = vpack.c.b16 %v4007, %v4005
      %v4042 = vpack.c.b16 %v4010, %v4008
      %v4043 = vpack.c.b16 %v4011, %v4009
      %4076 = vmatpush.bf16.msra.mxu0 %v4026
      %4077 = vmatpush.bf16.msra.mxu0 %v4024
      %4078 = vmatpush.bf16.msra.mxu0 %v4022
      %4079 = vmatpush.bf16.msra.mxu0 %v4020
      %4080 = vmatpush.bf16.msra.mxu0 %v4018
      %4081 = vmatpush.bf16.msra.mxu0 %v4016
      %4082 = vmatpush.bf16.msra.mxu0 %v4014
      %4083 = vmatpush.bf16.msra.mxu0 %v4012
      %4084 = vmatmul.bf16.gmra.mxu0 %v3912
      %v4085 = vpop.f32.mrf.mxu0
      %v4086 = vadd.f32 0.0, %v4085
      %v4087 = vpop.f32.mrf.mxu0
      %4088 = vdwg.mxu0
      %4089 = vmatpush.bf16.msra.mxu0 %v4042
      %4090 = vmatpush.bf16.msra.mxu0 %v4040
      %4091 = vmatpush.bf16.msra.mxu0 %v4038
      %4092 = vmatpush.bf16.msra.mxu0 %v4036
      %4093 = vmatpush.bf16.msra.mxu0 %v4034
      %4094 = vmatpush.bf16.msra.mxu0 %v4032
      %4095 = vmatpush.bf16.msra.mxu0 %v4030
      %4096 = vmatpush.bf16.msra.mxu0 %v4028
      %4097 = vmatmul.bf16.gmra.mxu0 %v3913
      %v4098 = vpop.f32.mrf.mxu0
      %v4099 = vadd.f32 %v4086, %v4098
      %v4100 = vpop.f32.mrf.mxu0
      %4101 = vdwg.mxu0
      %4102 = vmatpush.bf16.msra.mxu0 %v4027
      %4103 = vmatpush.bf16.msra.mxu0 %v4025
      %4104 = vmatpush.bf16.msra.mxu0 %v4023
      %4105 = vmatpush.bf16.msra.mxu0 %v4021
      %4106 = vmatpush.bf16.msra.mxu0 %v4019
      %4107 = vmatpush.bf16.msra.mxu0 %v4017
      %4108 = vmatpush.bf16.msra.mxu0 %v4015
      %4109 = vmatpush.bf16.msra.mxu0 %v4013
      %4110 = vmatmul.bf16.gmra.mxu0 %v3912
      %v4111 = vpop.f32.mrf.mxu0
      %v4112 = vadd.f32 0.0, %v4111
      %v4113 = vpop.f32.mrf.mxu0
      %4114 = vdwg.mxu0
      %4115 = vmatpush.bf16.msra.mxu0 %v4043
      %4116 = vmatpush.bf16.msra.mxu0 %v4041
      %4117 = vmatpush.bf16.msra.mxu0 %v4039
      %4118 = vmatpush.bf16.msra.mxu0 %v4037
      %4119 = vmatpush.bf16.msra.mxu0 %v4035
      %4120 = vmatpush.bf16.msra.mxu0 %v4033
      %4121 = vmatpush.bf16.msra.mxu0 %v4031
      %4122 = vmatpush.bf16.msra.mxu0 %v4029
      %4123 = vmatmul.bf16.gmra.mxu0 %v3913
      %v4124 = vpop.f32.mrf.mxu0
      %v4125 = vadd.f32 %v4112, %v4124
      %v4126 = vpop.f32.mrf.mxu0
      %4127 = vdwg.mxu0
      %v4129 = vunpack.c.l.b16 %v3842
      %v4130 = vunpack.c.h.b16 %v3842
      %v4131 = vpack.c.b16 %v4129, %v4129
      %v4132 = vpack.c.b16 %v4130, %v4130
      %v4167 = vunpack.c.l.b16 %v3843
      %v4168 = vunpack.c.h.b16 %v3843
      %v4169 = vunpack.c.l.b16 %v3844
      %v4170 = vunpack.c.h.b16 %v3844
      %v4171 = vunpack.c.l.b16 %v3845
      %v4172 = vunpack.c.h.b16 %v3845
      %v4173 = vunpack.c.l.b16 %v3846
      %v4174 = vunpack.c.h.b16 %v3846
      %v4175 = vunpack.c.l.b16 %v3847
      %v4176 = vunpack.c.h.b16 %v3847
      %v4177 = vunpack.c.l.b16 %v3848
      %v4178 = vunpack.c.h.b16 %v3848
      %v4179 = vunpack.c.l.b16 %v3849
      %v4180 = vunpack.c.h.b16 %v3849
      %v4181 = vunpack.c.l.b16 %v3850
      %v4182 = vunpack.c.h.b16 %v3850
      %v4183 = vunpack.c.l.b16 %v3851
      %v4184 = vunpack.c.h.b16 %v3851
      %v4185 = vunpack.c.l.b16 %v3852
      %v4186 = vunpack.c.h.b16 %v3852
      %v4187 = vunpack.c.l.b16 %v3853
      %v4188 = vunpack.c.h.b16 %v3853
      %v4189 = vunpack.c.l.b16 %v3854
      %v4190 = vunpack.c.h.b16 %v3854
      %v4191 = vunpack.c.l.b16 %v3855
      %v4192 = vunpack.c.h.b16 %v3855
      %v4193 = vunpack.c.l.b16 %v3856
      %v4194 = vunpack.c.h.b16 %v3856
      %v4195 = vunpack.c.l.b16 %v3857
      %v4196 = vunpack.c.h.b16 %v3857
      %v4197 = vunpack.c.l.b16 %v3858
      %v4198 = vunpack.c.h.b16 %v3858
      %v4199 = vunpack.c.l.b16 %v3859
      %v4200 = vunpack.c.h.b16 %v3859
      %v4201 = vunpack.c.l.b16 %v3860
      %v4202 = vunpack.c.h.b16 %v3860
      %v4203 = vunpack.c.l.b16 %v3861
      %v4204 = vunpack.c.h.b16 %v3861
      %v4205 = vunpack.c.l.b16 %v3862
      %v4206 = vunpack.c.h.b16 %v3862
      %v4207 = vunpack.c.l.b16 %v3863
      %v4208 = vunpack.c.h.b16 %v3863
      %v4209 = vunpack.c.l.b16 %v3864
      %v4210 = vunpack.c.h.b16 %v3864
      %v4211 = vunpack.c.l.b16 %v3865
      %v4212 = vunpack.c.h.b16 %v3865
      %v4213 = vunpack.c.l.b16 %v3866
      %v4214 = vunpack.c.h.b16 %v3866
      %v4215 = vunpack.c.l.b16 %v3867
      %v4216 = vunpack.c.h.b16 %v3867
      %v4217 = vunpack.c.l.b16 %v3868
      %v4218 = vunpack.c.h.b16 %v3868
      %v4219 = vunpack.c.l.b16 %v3869
      %v4220 = vunpack.c.h.b16 %v3869
      %v4221 = vunpack.c.l.b16 %v3870
      %v4222 = vunpack.c.h.b16 %v3870
      %v4223 = vunpack.c.l.b16 %v3871
      %v4224 = vunpack.c.h.b16 %v3871
      %v4225 = vunpack.c.l.b16 %v3872
      %v4226 = vunpack.c.h.b16 %v3872
      %v4227 = vunpack.c.l.b16 %v3873
      %v4228 = vunpack.c.h.b16 %v3873
      %v4229 = vunpack.c.l.b16 %v3874
      %v4230 = vunpack.c.h.b16 %v3874
      %v4231 = vpack.c.b16 %v4169, %v4167
      %v4232 = vpack.c.b16 %v4170, %v4168
      %v4233 = vpack.c.b16 %v4173, %v4171
      %v4234 = vpack.c.b16 %v4174, %v4172
      %v4235 = vpack.c.b16 %v4177, %v4175
      %v4236 = vpack.c.b16 %v4178, %v4176
      %v4237 = vpack.c.b16 %v4181, %v4179
      %v4238 = vpack.c.b16 %v4182, %v4180
      %v4239 = vpack.c.b16 %v4185, %v4183
      %v4240 = vpack.c.b16 %v4186, %v4184
      %v4241 = vpack.c.b16 %v4189, %v4187
      %v4242 = vpack.c.b16 %v4190, %v4188
      %v4243 = vpack.c.b16 %v4193, %v4191
      %v4244 = vpack.c.b16 %v4194, %v4192
      %v4245 = vpack.c.b16 %v4197, %v4195
      %v4246 = vpack.c.b16 %v4198, %v4196
      %v4247 = vpack.c.b16 %v4201, %v4199
      %v4248 = vpack.c.b16 %v4202, %v4200
      %v4249 = vpack.c.b16 %v4205, %v4203
      %v4250 = vpack.c.b16 %v4206, %v4204
      %v4251 = vpack.c.b16 %v4209, %v4207
      %v4252 = vpack.c.b16 %v4210, %v4208
      %v4253 = vpack.c.b16 %v4213, %v4211
      %v4254 = vpack.c.b16 %v4214, %v4212
      %v4255 = vpack.c.b16 %v4217, %v4215
      %v4256 = vpack.c.b16 %v4218, %v4216
      %v4257 = vpack.c.b16 %v4221, %v4219
      %v4258 = vpack.c.b16 %v4222, %v4220
      %v4259 = vpack.c.b16 %v4225, %v4223
      %v4260 = vpack.c.b16 %v4226, %v4224
      %v4261 = vpack.c.b16 %v4229, %v4227
      %v4262 = vpack.c.b16 %v4230, %v4228
      %4295 = vmatpush.bf16.msra.mxu0 %v4245
      %4296 = vmatpush.bf16.msra.mxu0 %v4243
      %4297 = vmatpush.bf16.msra.mxu0 %v4241
      %4298 = vmatpush.bf16.msra.mxu0 %v4239
      %4299 = vmatpush.bf16.msra.mxu0 %v4237
      %4300 = vmatpush.bf16.msra.mxu0 %v4235
      %4301 = vmatpush.bf16.msra.mxu0 %v4233
      %4302 = vmatpush.bf16.msra.mxu0 %v4231
      %4303 = vmatmul.bf16.gmra.mxu0 %v4131
      %v4304 = vpop.f32.mrf.mxu0
      %v4305 = vadd.f32 %v4099, %v4304
      %v4306 = vpop.f32.mrf.mxu0
      %4307 = vdwg.mxu0
      %4308 = vmatpush.bf16.msra.mxu0 %v4261
      %4309 = vmatpush.bf16.msra.mxu0 %v4259
      %4310 = vmatpush.bf16.msra.mxu0 %v4257
      %4311 = vmatpush.bf16.msra.mxu0 %v4255
      %4312 = vmatpush.bf16.msra.mxu0 %v4253
      %4313 = vmatpush.bf16.msra.mxu0 %v4251
      %4314 = vmatpush.bf16.msra.mxu0 %v4249
      %4315 = vmatpush.bf16.msra.mxu0 %v4247
      %4316 = vmatmul.bf16.gmra.mxu0 %v4132
      %v4317 = vpop.f32.mrf.mxu0
      %v4318 = vadd.f32 %v4305, %v4317
      %v4319 = vpop.f32.mrf.mxu0
      %4320 = vdwg.mxu0
      %4321 = vmatpush.bf16.msra.mxu0 %v4246
      %4322 = vmatpush.bf16.msra.mxu0 %v4244
      %4323 = vmatpush.bf16.msra.mxu0 %v4242
      %4324 = vmatpush.bf16.msra.mxu0 %v4240
      %4325 = vmatpush.bf16.msra.mxu0 %v4238
      %4326 = vmatpush.bf16.msra.mxu0 %v4236
      %4327 = vmatpush.bf16.msra.mxu0 %v4234
      %4328 = vmatpush.bf16.msra.mxu0 %v4232
      %4329 = vmatmul.bf16.gmra.mxu0 %v4131
      %v4330 = vpop.f32.mrf.mxu0
      %v4331 = vadd.f32 %v4125, %v4330
      %v4332 = vpop.f32.mrf.mxu0
      %4333 = vdwg.mxu0
      %4334 = vmatpush.bf16.msra.mxu0 %v4262
      %4335 = vmatpush.bf16.msra.mxu0 %v4260
      %4336 = vmatpush.bf16.msra.mxu0 %v4258
      %4337 = vmatpush.bf16.msra.mxu0 %v4256
      %4338 = vmatpush.bf16.msra.mxu0 %v4254
      %4339 = vmatpush.bf16.msra.mxu0 %v4252
      %4340 = vmatpush.bf16.msra.mxu0 %v4250
      %4341 = vmatpush.bf16.msra.mxu0 %v4248
      %4342 = vmatmul.bf16.gmra.mxu0 %v4132
      %v4343 = vpop.f32.mrf.mxu0
      %v4344 = vadd.f32 %v4331, %v4343
      %v4345 = vpop.f32.mrf.mxu0
      %4346 = vdwg.mxu0
      %v4347 = vld [vmem:[#allocation4] sm:$0xff]
      %v4348 = vld [vmem:[#allocation4 + $0x8] sm:$0x11]
      %s4349 = scalar_lea.vmem %s11, 512
      %v4350 = vld [vmem:[%s4349] sm:$0xff]
      %v4351 = vld [vmem:[%s4349 + $0x8] sm:$0xff]
      %v4352 = vld [vmem:[%s4349 + $0x10] sm:$0xff]
      %v4353 = vld [vmem:[%s4349 + $0x18] sm:$0xff]
      %v4354 = vld [vmem:[%s4349 + $0x20] sm:$0xff]
      %v4355 = vld [vmem:[%s4349 + $0x28] sm:$0xff]
      %v4356 = vld [vmem:[%s4349 + $0x30] sm:$0xff]
      %v4357 = vld [vmem:[%s4349 + $0x38] sm:$0xff]
      %v4358 = vld [vmem:[%s4349 + $0x40] sm:$0xff]
      %v4359 = vld [vmem:[%s4349 + $0x48] sm:$0xff]
      %v4360 = vld [vmem:[%s4349 + $0x50] sm:$0xff]
      %v4361 = vld [vmem:[%s4349 + $0x58] sm:$0xff]
      %v4362 = vld [vmem:[%s4349 + $0x60] sm:$0xff]
      %v4363 = vld [vmem:[%s4349 + $0x68] sm:$0xff]
      %v4364 = vld [vmem:[%s4349 + $0x70] sm:$0xff]
      %v4365 = vld [vmem:[%s4349 + $0x78] sm:$0xff]
      %v4366 = vld [vmem:[%s4349 + $0x80] sm:$0xff]
      %v4367 = vld [vmem:[%s4349 + $0x88] sm:$0xff]
      %v4368 = vld [vmem:[%s4349 + $0x90] sm:$0xff]
      %v4369 = vld [vmem:[%s4349 + $0x98] sm:$0xff]
      %v4370 = vld [vmem:[%s4349 + $0xa0] sm:$0xff]
      %v4371 = vld [vmem:[%s4349 + $0xa8] sm:$0xff]
      %v4372 = vld [vmem:[%s4349 + $0xb0] sm:$0xff]
      %v4373 = vld [vmem:[%s4349 + $0xb8] sm:$0xff]
      %v4374 = vld [vmem:[%s4349 + $0xc0] sm:$0xff]
      %v4375 = vld [vmem:[%s4349 + $0xc8] sm:$0xff]
      %v4376 = vld [vmem:[%s4349 + $0xd0] sm:$0xff]
      %v4377 = vld [vmem:[%s4349 + $0xd8] sm:$0xff]
      %v4378 = vld [vmem:[%s4349 + $0xe0] sm:$0xff]
      %v4379 = vld [vmem:[%s4349 + $0xe8] sm:$0xff]
      %v4380 = vld [vmem:[%s4349 + $0xf0] sm:$0xff]
      %v4381 = vld [vmem:[%s4349 + $0xf8] sm:$0xff]
      %v4384 = vunpack.c.l.b16 %v4347
      %v4385 = vunpack.c.h.b16 %v4347
      %v4386 = vunpack.c.l.b16 %v4348
      %v4387 = vunpack.c.h.b16 %v4348
      %v4388 = vpack.c.b16 %v4386, %v4384
      %v4389 = vpack.c.b16 %v4387, %v4385
      %v4391 = vshrl.u32 %v4388, 16
      %v4393 = vshll.u32 %v4388, 16
      %v4395 = vrot.slane %v4393, 1
      %v4396 = vor.u32 %v4391, %v4395
      %v4398 = vshrl.u32 %v4389, 16
      %v4400 = vshll.u32 %v4389, 16
      %v4402 = vrot.slane %v4400, 1
      %v4403 = vor.u32 %v4398, %v4402
      %v4438 = vunpack.c.l.b16 %v4350
      %v4439 = vunpack.c.h.b16 %v4350
      %v4440 = vunpack.c.l.b16 %v4351
      %v4441 = vunpack.c.h.b16 %v4351
      %v4442 = vunpack.c.l.b16 %v4352
      %v4443 = vunpack.c.h.b16 %v4352
      %v4444 = vunpack.c.l.b16 %v4353
      %v4445 = vunpack.c.h.b16 %v4353
      %v4446 = vunpack.c.l.b16 %v4354
      %v4447 = vunpack.c.h.b16 %v4354
      %v4448 = vunpack.c.l.b16 %v4355
      %v4449 = vunpack.c.h.b16 %v4355
      %v4450 = vunpack.c.l.b16 %v4356
      %v4451 = vunpack.c.h.b16 %v4356
      %v4452 = vunpack.c.l.b16 %v4357
      %v4453 = vunpack.c.h.b16 %v4357
      %v4454 = vunpack.c.l.b16 %v4358
      %v4455 = vunpack.c.h.b16 %v4358
      %v4456 = vunpack.c.l.b16 %v4359
      %v4457 = vunpack.c.h.b16 %v4359
      %v4458 = vunpack.c.l.b16 %v4360
      %v4459 = vunpack.c.h.b16 %v4360
      %v4460 = vunpack.c.l.b16 %v4361
      %v4461 = vunpack.c.h.b16 %v4361
      %v4462 = vunpack.c.l.b16 %v4362
      %v4463 = vunpack.c.h.b16 %v4362
      %v4464 = vunpack.c.l.b16 %v4363
      %v4465 = vunpack.c.h.b16 %v4363
      %v4466 = vunpack.c.l.b16 %v4364
      %v4467 = vunpack.c.h.b16 %v4364
      %v4468 = vunpack.c.l.b16 %v4365
      %v4469 = vunpack.c.h.b16 %v4365
      %v4470 = vunpack.c.l.b16 %v4366
      %v4471 = vunpack.c.h.b16 %v4366
      %v4472 = vunpack.c.l.b16 %v4367
      %v4473 = vunpack.c.h.b16 %v4367
      %v4474 = vunpack.c.l.b16 %v4368
      %v4475 = vunpack.c.h.b16 %v4368
      %v4476 = vunpack.c.l.b16 %v4369
      %v4477 = vunpack.c.h.b16 %v4369
      %v4478 = vunpack.c.l.b16 %v4370
      %v4479 = vunpack.c.h.b16 %v4370
      %v4480 = vunpack.c.l.b16 %v4371
      %v4481 = vunpack.c.h.b16 %v4371
      %v4482 = vunpack.c.l.b16 %v4372
      %v4483 = vunpack.c.h.b16 %v4372
      %v4484 = vunpack.c.l.b16 %v4373
      %v4485 = vunpack.c.h.b16 %v4373
      %v4486 = vunpack.c.l.b16 %v4374
      %v4487 = vunpack.c.h.b16 %v4374
      %v4488 = vunpack.c.l.b16 %v4375
      %v4489 = vunpack.c.h.b16 %v4375
      %v4490 = vunpack.c.l.b16 %v4376
      %v4491 = vunpack.c.h.b16 %v4376
      %v4492 = vunpack.c.l.b16 %v4377
      %v4493 = vunpack.c.h.b16 %v4377
      %v4494 = vunpack.c.l.b16 %v4378
      %v4495 = vunpack.c.h.b16 %v4378
      %v4496 = vunpack.c.l.b16 %v4379
      %v4497 = vunpack.c.h.b16 %v4379
      %v4498 = vunpack.c.l.b16 %v4380
      %v4499 = vunpack.c.h.b16 %v4380
      %v4500 = vunpack.c.l.b16 %v4381
      %v4501 = vunpack.c.h.b16 %v4381
      %v4502 = vpack.c.b16 %v4440, %v4438
      %v4503 = vpack.c.b16 %v4441, %v4439
      %v4504 = vpack.c.b16 %v4444, %v4442
      %v4505 = vpack.c.b16 %v4445, %v4443
      %v4506 = vpack.c.b16 %v4448, %v4446
      %v4507 = vpack.c.b16 %v4449, %v4447
      %v4508 = vpack.c.b16 %v4452, %v4450
      %v4509 = vpack.c.b16 %v4453, %v4451
      %v4510 = vpack.c.b16 %v4456, %v4454
      %v4511 = vpack.c.b16 %v4457, %v4455
      %v4512 = vpack.c.b16 %v4460, %v4458
      %v4513 = vpack.c.b16 %v4461, %v4459
      %v4514 = vpack.c.b16 %v4464, %v4462
      %v4515 = vpack.c.b16 %v4465, %v4463
      %v4516 = vpack.c.b16 %v4468, %v4466
      %v4517 = vpack.c.b16 %v4469, %v4467
      %v4518 = vpack.c.b16 %v4472, %v4470
      %v4519 = vpack.c.b16 %v4473, %v4471
      %v4520 = vpack.c.b16 %v4476, %v4474
      %v4521 = vpack.c.b16 %v4477, %v4475
      %v4522 = vpack.c.b16 %v4480, %v4478
      %v4523 = vpack.c.b16 %v4481, %v4479
      %v4524 = vpack.c.b16 %v4484, %v4482
      %v4525 = vpack.c.b16 %v4485, %v4483
      %v4526 = vpack.c.b16 %v4488, %v4486
      %v4527 = vpack.c.b16 %v4489, %v4487
      %v4528 = vpack.c.b16 %v4492, %v4490
      %v4529 = vpack.c.b16 %v4493, %v4491
      %v4530 = vpack.c.b16 %v4496, %v4494
      %v4531 = vpack.c.b16 %v4497, %v4495
      %v4532 = vpack.c.b16 %v4500, %v4498
      %v4533 = vpack.c.b16 %v4501, %v4499
      %4566 = vmatpush.bf16.msra.mxu0 %v4516
      %4567 = vmatpush.bf16.msra.mxu0 %v4514
      %4568 = vmatpush.bf16.msra.mxu0 %v4512
      %4569 = vmatpush.bf16.msra.mxu0 %v4510
      %4570 = vmatpush.bf16.msra.mxu0 %v4508
      %4571 = vmatpush.bf16.msra.mxu0 %v4506
      %4572 = vmatpush.bf16.msra.mxu0 %v4504
      %4573 = vmatpush.bf16.msra.mxu0 %v4502
      %4574 = vmatmul.bf16.gmra.mxu0 %v4396
      %v4575 = vpop.f32.mrf.mxu0
      %v4576 = vadd.f32 0.0, %v4575
      %v4577 = vpop.f32.mrf.mxu0
      %4578 = vdwg.mxu0
      %4579 = vmatpush.bf16.msra.mxu0 %v4532
      %4580 = vmatpush.bf16.msra.mxu0 %v4530
      %4581 = vmatpush.bf16.msra.mxu0 %v4528
      %4582 = vmatpush.bf16.msra.mxu0 %v4526
      %4583 = vmatpush.bf16.msra.mxu0 %v4524
      %4584 = vmatpush.bf16.msra.mxu0 %v4522
      %4585 = vmatpush.bf16.msra.mxu0 %v4520
      %4586 = vmatpush.bf16.msra.mxu0 %v4518
      %4587 = vmatmul.bf16.gmra.mxu0 %v4403
      %v4588 = vpop.f32.mrf.mxu0
      %v4589 = vadd.f32 %v4576, %v4588
      %v4590 = vpop.f32.mrf.mxu0
      %4591 = vdwg.mxu0
      %4592 = vmatpush.bf16.msra.mxu0 %v4517
      %4593 = vmatpush.bf16.msra.mxu0 %v4515
      %4594 = vmatpush.bf16.msra.mxu0 %v4513
      %4595 = vmatpush.bf16.msra.mxu0 %v4511
      %4596 = vmatpush.bf16.msra.mxu0 %v4509
      %4597 = vmatpush.bf16.msra.mxu0 %v4507
      %4598 = vmatpush.bf16.msra.mxu0 %v4505
      %4599 = vmatpush.bf16.msra.mxu0 %v4503
      %4600 = vmatmul.bf16.gmra.mxu0 %v4396
      %v4601 = vpop.f32.mrf.mxu0
      %v4602 = vadd.f32 0.0, %v4601
      %v4603 = vpop.f32.mrf.mxu0
      %4604 = vdwg.mxu0
      %4605 = vmatpush.bf16.msra.mxu0 %v4533
      %4606 = vmatpush.bf16.msra.mxu0 %v4531
      %4607 = vmatpush.bf16.msra.mxu0 %v4529
      %4608 = vmatpush.bf16.msra.mxu0 %v4527
      %4609 = vmatpush.bf16.msra.mxu0 %v4525
      %4610 = vmatpush.bf16.msra.mxu0 %v4523
      %4611 = vmatpush.bf16.msra.mxu0 %v4521
      %4612 = vmatpush.bf16.msra.mxu0 %v4519
      %4613 = vmatmul.bf16.gmra.mxu0 %v4403
      %v4614 = vpop.f32.mrf.mxu0
      %v4615 = vadd.f32 %v4602, %v4614
      %v4616 = vpop.f32.mrf.mxu0
      %4617 = vdwg.mxu0
      %v4618 = vadd.f32 %v4318, %v4589
      %v4619 = vadd.f32 %v4344, %v4615
      %v4620 = vld [vmem:[%s3715] sm:$0xff]
      %v4621 = vld [vmem:[%s3715 + $0x8] sm:$0x11]
      %s4622 = scalar_lea.vmem %s11, 768
      %v4623 = vld [vmem:[%s4622] sm:$0xff]
      %v4624 = vld [vmem:[%s4622 + $0x8] sm:$0xff]
      %v4625 = vld [vmem:[%s4622 + $0x10] sm:$0xff]
      %v4626 = vld [vmem:[%s4622 + $0x18] sm:$0xff]
      %v4627 = vld [vmem:[%s4622 + $0x20] sm:$0xff]
      %v4628 = vld [vmem:[%s4622 + $0x28] sm:$0xff]
      %v4629 = vld [vmem:[%s4622 + $0x30] sm:$0xff]
      %v4630 = vld [vmem:[%s4622 + $0x38] sm:$0xff]
      %v4631 = vld [vmem:[%s4622 + $0x40] sm:$0xff]
      %v4632 = vld [vmem:[%s4622 + $0x48] sm:$0xff]
      %v4633 = vld [vmem:[%s4622 + $0x50] sm:$0xff]
      %v4634 = vld [vmem:[%s4622 + $0x58] sm:$0xff]
      %v4635 = vld [vmem:[%s4622 + $0x60] sm:$0xff]
      %v4636 = vld [vmem:[%s4622 + $0x68] sm:$0xff]
      %v4637 = vld [vmem:[%s4622 + $0x70] sm:$0xff]
      %v4638 = vld [vmem:[%s4622 + $0x78] sm:$0xff]
      %v4639 = vld [vmem:[%s4622 + $0x80] sm:$0xff]
      %v4640 = vld [vmem:[%s4622 + $0x88] sm:$0xff]
      %v4641 = vld [vmem:[%s4622 + $0x90] sm:$0xff]
      %v4642 = vld [vmem:[%s4622 + $0x98] sm:$0xff]
      %v4643 = vld [vmem:[%s4622 + $0xa0] sm:$0xff]
      %v4644 = vld [vmem:[%s4622 + $0xa8] sm:$0xff]
      %v4645 = vld [vmem:[%s4622 + $0xb0] sm:$0xff]
      %v4646 = vld [vmem:[%s4622 + $0xb8] sm:$0xff]
      %v4647 = vld [vmem:[%s4622 + $0xc0] sm:$0xff]
      %v4648 = vld [vmem:[%s4622 + $0xc8] sm:$0xff]
      %v4649 = vld [vmem:[%s4622 + $0xd0] sm:$0xff]
      %v4650 = vld [vmem:[%s4622 + $0xd8] sm:$0xff]
      %v4651 = vld [vmem:[%s4622 + $0xe0] sm:$0xff]
      %v4652 = vld [vmem:[%s4622 + $0xe8] sm:$0xff]
      %v4653 = vld [vmem:[%s4622 + $0xf0] sm:$0xff]
      %v4654 = vld [vmem:[%s4622 + $0xf8] sm:$0xff]
      %v4657 = vunpack.c.l.b16 %v4620
      %v4658 = vunpack.c.h.b16 %v4620
      %v4659 = vunpack.c.l.b16 %v4621
      %v4660 = vunpack.c.h.b16 %v4621
      %v4661 = vpack.c.b16 %v4659, %v4657
      %v4662 = vpack.c.b16 %v4660, %v4658
      %v4664 = vshrl.u32 %v4661, 16
      %v4666 = vshll.u32 %v4661, 16
      %v4668 = vrot.slane %v4666, 1
      %v4669 = vor.u32 %v4664, %v4668
      %v4671 = vshrl.u32 %v4662, 16
      %v4673 = vshll.u32 %v4662, 16
      %v4675 = vrot.slane %v4673, 1
      %v4676 = vor.u32 %v4671, %v4675
      %v4711 = vunpack.c.l.b16 %v4623
      %v4712 = vunpack.c.h.b16 %v4623
      %v4713 = vunpack.c.l.b16 %v4624
      %v4714 = vunpack.c.h.b16 %v4624
      %v4715 = vunpack.c.l.b16 %v4625
      %v4716 = vunpack.c.h.b16 %v4625
      %v4717 = vunpack.c.l.b16 %v4626
      %v4718 = vunpack.c.h.b16 %v4626
      %v4719 = vunpack.c.l.b16 %v4627
      %v4720 = vunpack.c.h.b16 %v4627
      %v4721 = vunpack.c.l.b16 %v4628
      %v4722 = vunpack.c.h.b16 %v4628
      %v4723 = vunpack.c.l.b16 %v4629
      %v4724 = vunpack.c.h.b16 %v4629
      %v4725 = vunpack.c.l.b16 %v4630
      %v4726 = vunpack.c.h.b16 %v4630
      %v4727 = vunpack.c.l.b16 %v4631
      %v4728 = vunpack.c.h.b16 %v4631
      %v4729 = vunpack.c.l.b16 %v4632
      %v4730 = vunpack.c.h.b16 %v4632
      %v4731 = vunpack.c.l.b16 %v4633
      %v4732 = vunpack.c.h.b16 %v4633
      %v4733 = vunpack.c.l.b16 %v4634
      %v4734 = vunpack.c.h.b16 %v4634
      %v4735 = vunpack.c.l.b16 %v4635
      %v4736 = vunpack.c.h.b16 %v4635
      %v4737 = vunpack.c.l.b16 %v4636
      %v4738 = vunpack.c.h.b16 %v4636
      %v4739 = vunpack.c.l.b16 %v4637
      %v4740 = vunpack.c.h.b16 %v4637
      %v4741 = vunpack.c.l.b16 %v4638
      %v4742 = vunpack.c.h.b16 %v4638
      %v4743 = vunpack.c.l.b16 %v4639
      %v4744 = vunpack.c.h.b16 %v4639
      %v4745 = vunpack.c.l.b16 %v4640
      %v4746 = vunpack.c.h.b16 %v4640
      %v4747 = vunpack.c.l.b16 %v4641
      %v4748 = vunpack.c.h.b16 %v4641
      %v4749 = vunpack.c.l.b16 %v4642
      %v4750 = vunpack.c.h.b16 %v4642
      %v4751 = vunpack.c.l.b16 %v4643
      %v4752 = vunpack.c.h.b16 %v4643
      %v4753 = vunpack.c.l.b16 %v4644
      %v4754 = vunpack.c.h.b16 %v4644
      %v4755 = vunpack.c.l.b16 %v4645
      %v4756 = vunpack.c.h.b16 %v4645
      %v4757 = vunpack.c.l.b16 %v4646
      %v4758 = vunpack.c.h.b16 %v4646
      %v4759 = vunpack.c.l.b16 %v4647
      %v4760 = vunpack.c.h.b16 %v4647
      %v4761 = vunpack.c.l.b16 %v4648
      %v4762 = vunpack.c.h.b16 %v4648
      %v4763 = vunpack.c.l.b16 %v4649
      %v4764 = vunpack.c.h.b16 %v4649
      %v4765 = vunpack.c.l.b16 %v4650
      %v4766 = vunpack.c.h.b16 %v4650
      %v4767 = vunpack.c.l.b16 %v4651
      %v4768 = vunpack.c.h.b16 %v4651
      %v4769 = vunpack.c.l.b16 %v4652
      %v4770 = vunpack.c.h.b16 %v4652
      %v4771 = vunpack.c.l.b16 %v4653
      %v4772 = vunpack.c.h.b16 %v4653
      %v4773 = vunpack.c.l.b16 %v4654
      %v4774 = vunpack.c.h.b16 %v4654
      %v4775 = vpack.c.b16 %v4713, %v4711
      %v4776 = vpack.c.b16 %v4714, %v4712
      %v4777 = vpack.c.b16 %v4717, %v4715
      %v4778 = vpack.c.b16 %v4718, %v4716
      %v4779 = vpack.c.b16 %v4721, %v4719
      %v4780 = vpack.c.b16 %v4722, %v4720
      %v4781 = vpack.c.b16 %v4725, %v4723
      %v4782 = vpack.c.b16 %v4726, %v4724
      %v4783 = vpack.c.b16 %v4729, %v4727
      %v4784 = vpack.c.b16 %v4730, %v4728
      %v4785 = vpack.c.b16 %v4733, %v4731
      %v4786 = vpack.c.b16 %v4734, %v4732
      %v4787 = vpack.c.b16 %v4737, %v4735
      %v4788 = vpack.c.b16 %v4738, %v4736
      %v4789 = vpack.c.b16 %v4741, %v4739
      %v4790 = vpack.c.b16 %v4742, %v4740
      %v4791 = vpack.c.b16 %v4745, %v4743
      %v4792 = vpack.c.b16 %v4746, %v4744
      %v4793 = vpack.c.b16 %v4749, %v4747
      %v4794 = vpack.c.b16 %v4750, %v4748
      %v4795 = vpack.c.b16 %v4753, %v4751
      %v4796 = vpack.c.b16 %v4754, %v4752
      %v4797 = vpack.c.b16 %v4757, %v4755
      %v4798 = vpack.c.b16 %v4758, %v4756
      %v4799 = vpack.c.b16 %v4761, %v4759
      %v4800 = vpack.c.b16 %v4762, %v4760
      %v4801 = vpack.c.b16 %v4765, %v4763
      %v4802 = vpack.c.b16 %v4766, %v4764
      %v4803 = vpack.c.b16 %v4769, %v4767
      %v4804 = vpack.c.b16 %v4770, %v4768
      %v4805 = vpack.c.b16 %v4773, %v4771
      %v4806 = vpack.c.b16 %v4774, %v4772
      %4839 = vmatpush.bf16.msra.mxu0 %v4789
      %4840 = vmatpush.bf16.msra.mxu0 %v4787
      %4841 = vmatpush.bf16.msra.mxu0 %v4785
      %4842 = vmatpush.bf16.msra.mxu0 %v4783
      %4843 = vmatpush.bf16.msra.mxu0 %v4781
      %4844 = vmatpush.bf16.msra.mxu0 %v4779
      %4845 = vmatpush.bf16.msra.mxu0 %v4777
      %4846 = vmatpush.bf16.msra.mxu0 %v4775
      %4847 = vmatmul.bf16.gmra.mxu0 %v4669
      %v4848 = vpop.f32.mrf.mxu0
      %v4849 = vadd.f32 0.0, %v4848
      %v4850 = vpop.f32.mrf.mxu0
      %4851 = vdwg.mxu0
      %4852 = vmatpush.bf16.msra.mxu0 %v4805
      %4853 = vmatpush.bf16.msra.mxu0 %v4803
      %4854 = vmatpush.bf16.msra.mxu0 %v4801
      %4855 = vmatpush.bf16.msra.mxu0 %v4799
      %4856 = vmatpush.bf16.msra.mxu0 %v4797
      %4857 = vmatpush.bf16.msra.mxu0 %v4795
      %4858 = vmatpush.bf16.msra.mxu0 %v4793
      %4859 = vmatpush.bf16.msra.mxu0 %v4791
      %4860 = vmatmul.bf16.gmra.mxu0 %v4676
      %v4861 = vpop.f32.mrf.mxu0
      %v4862 = vadd.f32 %v4849, %v4861
      %v4863 = vpop.f32.mrf.mxu0
      %4864 = vdwg.mxu0
      %4865 = vmatpush.bf16.msra.mxu0 %v4790
      %4866 = vmatpush.bf16.msra.mxu0 %v4788
      %4867 = vmatpush.bf16.msra.mxu0 %v4786
      %4868 = vmatpush.bf16.msra.mxu0 %v4784
      %4869 = vmatpush.bf16.msra.mxu0 %v4782
      %4870 = vmatpush.bf16.msra.mxu0 %v4780
      %4871 = vmatpush.bf16.msra.mxu0 %v4778
      %4872 = vmatpush.bf16.msra.mxu0 %v4776
      %4873 = vmatmul.bf16.gmra.mxu0 %v4669
      %v4874 = vpop.f32.mrf.mxu0
      %v4875 = vadd.f32 0.0, %v4874
      %v4876 = vpop.f32.mrf.mxu0
      %4877 = vdwg.mxu0
      %4878 = vmatpush.bf16.msra.mxu0 %v4806
      %4879 = vmatpush.bf16.msra.mxu0 %v4804
      %4880 = vmatpush.bf16.msra.mxu0 %v4802
      %4881 = vmatpush.bf16.msra.mxu0 %v4800
      %4882 = vmatpush.bf16.msra.mxu0 %v4798
      %4883 = vmatpush.bf16.msra.mxu0 %v4796
      %4884 = vmatpush.bf16.msra.mxu0 %v4794
      %4885 = vmatpush.bf16.msra.mxu0 %v4792
      %4886 = vmatmul.bf16.gmra.mxu0 %v4676
      %v4887 = vpop.f32.mrf.mxu0
      %v4888 = vadd.f32 %v4875, %v4887
      %v4889 = vpop.f32.mrf.mxu0
      %4890 = vdwg.mxu0
      %v4891 = vadd.f32 %v4618, %v4862
      %v4892 = vadd.f32 %v4619, %v4888
      %v4893 = vld [vmem:[%s13] sm:$0xff]
      %v4894 = vld [vmem:[%s13 + $0x8] sm:$0xff]
      %v4895 = vld [vmem:[%s13 + $0x10] sm:$0xff]
      %v4896 = vld [vmem:[%s13 + $0x18] sm:$0xff]
      %v4897 = vld [vmem:[%s13 + $0x20] sm:$0xff]
      %v4898 = vld [vmem:[%s13 + $0x28] sm:$0xff]
      %v4899 = vld [vmem:[%s13 + $0x30] sm:$0xff]
      %v4900 = vld [vmem:[%s13 + $0x38] sm:$0xff]
      %v4901 = vld [vmem:[%s13 + $0x40] sm:$0xff]
      %v4902 = vld [vmem:[%s13 + $0x48] sm:$0xff]
      %v4903 = vld [vmem:[%s13 + $0x50] sm:$0xff]
      %v4904 = vld [vmem:[%s13 + $0x58] sm:$0xff]
      %v4905 = vld [vmem:[%s13 + $0x60] sm:$0xff]
      %v4906 = vld [vmem:[%s13 + $0x68] sm:$0xff]
      %v4907 = vld [vmem:[%s13 + $0x70] sm:$0xff]
      %v4908 = vld [vmem:[%s13 + $0x78] sm:$0xff]
      %v4909 = vld [vmem:[%s13 + $0x80] sm:$0xff]
      %v4910 = vld [vmem:[%s13 + $0x88] sm:$0xff]
      %v4911 = vld [vmem:[%s13 + $0x90] sm:$0xff]
      %v4912 = vld [vmem:[%s13 + $0x98] sm:$0xff]
      %v4913 = vld [vmem:[%s13 + $0xa0] sm:$0xff]
      %v4914 = vld [vmem:[%s13 + $0xa8] sm:$0xff]
      %v4915 = vld [vmem:[%s13 + $0xb0] sm:$0xff]
      %v4916 = vld [vmem:[%s13 + $0xb8] sm:$0xff]
      %v4917 = vld [vmem:[%s13 + $0xc0] sm:$0xff]
      %v4918 = vld [vmem:[%s13 + $0xc8] sm:$0xff]
      %v4919 = vld [vmem:[%s13 + $0xd0] sm:$0xff]
      %v4920 = vld [vmem:[%s13 + $0xd8] sm:$0xff]
      %v4921 = vld [vmem:[%s13 + $0xe0] sm:$0xff]
      %v4922 = vld [vmem:[%s13 + $0xe8] sm:$0xff]
      %v4923 = vld [vmem:[%s13 + $0xf0] sm:$0xff]
      %v4924 = vld [vmem:[%s13 + $0xf8] sm:$0xff]
      %v4925 = vld [vmem:[%s14] sm:$0xff]
      %v4926 = vld [vmem:[%s14 + $0x8] sm:$0xff]
      %v4927 = vld [vmem:[%s14 + $0x10] sm:$0xff]
      %v4928 = vld [vmem:[%s14 + $0x18] sm:$0xff]
      %v4929 = vld [vmem:[%s14 + $0x20] sm:$0xff]
      %v4930 = vld [vmem:[%s14 + $0x28] sm:$0xff]
      %v4931 = vld [vmem:[%s14 + $0x30] sm:$0xff]
      %v4932 = vld [vmem:[%s14 + $0x38] sm:$0xff]
      %v4933 = vld [vmem:[%s14 + $0x40] sm:$0xff]
      %v4934 = vld [vmem:[%s14 + $0x48] sm:$0xff]
      %v4935 = vld [vmem:[%s14 + $0x50] sm:$0xff]
      %v4936 = vld [vmem:[%s14 + $0x58] sm:$0xff]
      %v4937 = vld [vmem:[%s14 + $0x60] sm:$0xff]
      %v4938 = vld [vmem:[%s14 + $0x68] sm:$0xff]
      %v4939 = vld [vmem:[%s14 + $0x70] sm:$0xff]
      %v4940 = vld [vmem:[%s14 + $0x78] sm:$0xff]
      %v4941 = vld [vmem:[%s14 + $0x80] sm:$0xff]
      %v4942 = vld [vmem:[%s14 + $0x88] sm:$0xff]
      %v4943 = vld [vmem:[%s14 + $0x90] sm:$0xff]
      %v4944 = vld [vmem:[%s14 + $0x98] sm:$0xff]
      %v4945 = vld [vmem:[%s14 + $0xa0] sm:$0xff]
      %v4946 = vld [vmem:[%s14 + $0xa8] sm:$0xff]
      %v4947 = vld [vmem:[%s14 + $0xb0] sm:$0xff]
      %v4948 = vld [vmem:[%s14 + $0xb8] sm:$0xff]
      %v4949 = vld [vmem:[%s14 + $0xc0] sm:$0xff]
      %v4950 = vld [vmem:[%s14 + $0xc8] sm:$0xff]
      %v4951 = vld [vmem:[%s14 + $0xd0] sm:$0xff]
      %v4952 = vld [vmem:[%s14 + $0xd8] sm:$0xff]
      %v4953 = vld [vmem:[%s14 + $0xe0] sm:$0xff]
      %v4954 = vld [vmem:[%s14 + $0xe8] sm:$0xff]
      %v4955 = vld [vmem:[%s14 + $0xf0] sm:$0xff]
      %v4956 = vld [vmem:[%s14 + $0xf8] sm:$0xff]
      %v4957 = vrot.slane %v4891, 4
      %v4958 = vadd.f32 %v4891, %v4957
      %v4959 = vrot.slane %v4958, 2
      %v4960 = vadd.f32 %v4958, %v4959
      %v4961 = vrot.slane %v4960, 1
      %v4962 = vadd.f32 %v4960, %v4961
      %v4963 = vrot.slane %v4892, 4
      %v4964 = vadd.f32 %v4892, %v4963
      %v4965 = vrot.slane %v4964, 2
      %v4966 = vadd.f32 %v4964, %v4965
      %v4967 = vrot.slane %v4966, 1
      %v4968 = vadd.f32 %v4966, %v4967
      %4969 = vmatpush.msra.mxu0 %v4908
      %4970 = vmatpush.msra.mxu0 %v4907
      %4971 = vmatpush.msra.mxu0 %v4906
      %4972 = vmatpush.msra.mxu0 %v4905
      %4973 = vmatpush.msra.mxu0 %v4904
      %4974 = vmatpush.msra.mxu0 %v4903
      %4975 = vmatpush.msra.mxu0 %v4902
      %4976 = vmatpush.msra.mxu0 %v4901
      %4977 = vmatpush.msra.mxu0 %v4900
      %4978 = vmatpush.msra.mxu0 %v4899
      %4979 = vmatpush.msra.mxu0 %v4898
      %4980 = vmatpush.msra.mxu0 %v4897
      %4981 = vmatpush.msra.mxu0 %v4896
      %4982 = vmatpush.msra.mxu0 %v4895
      %4983 = vmatpush.msra.mxu0 %v4894
      %4984 = vmatpush.msra.mxu0 %v4893
      %4985 = vmatmul.f32.gmra.mxu0 %v4962
      %v4986 = vpop.f32.mrf.mxu0
      %v4987 = vadd.f32 0.0, %v4986
      %4988 = vdwg.mxu0
      %4989 = vmatpush.msra.mxu0 %v4924
      %4990 = vmatpush.msra.mxu0 %v4923
      %4991 = vmatpush.msra.mxu0 %v4922
      %4992 = vmatpush.msra.mxu0 %v4921
      %4993 = vmatpush.msra.mxu0 %v4920
      %4994 = vmatpush.msra.mxu0 %v4919
      %4995 = vmatpush.msra.mxu0 %v4918
      %4996 = vmatpush.msra.mxu0 %v4917
      %4997 = vmatpush.msra.mxu0 %v4916
      %4998 = vmatpush.msra.mxu0 %v4915
      %4999 = vmatpush.msra.mxu0 %v4914
      %5000 = vmatpush.msra.mxu0 %v4913
      %5001 = vmatpush.msra.mxu0 %v4912
      %5002 = vmatpush.msra.mxu0 %v4911
      %5003 = vmatpush.msra.mxu0 %v4910
      %5004 = vmatpush.msra.mxu0 %v4909
      %5005 = vmatmul.f32.gmra.mxu0 %v4968
      %v5006 = vpop.f32.mrf.mxu0
      %v5007 = vadd.f32 %v4987, %v5006
      %5008 = vdwg.mxu0
      %v5009 = vmul.f32 %v5007, 0.03125
      %5010 = vmatpush.msra.mxu0 %v4955
      %5011 = vmatpush.msra.mxu0 %v4953
      %5012 = vmatpush.msra.mxu0 %v4951
      %5013 = vmatpush.msra.mxu0 %v4949
      %5014 = vmatpush.msra.mxu0 %v4947
      %5015 = vmatpush.msra.mxu0 %v4945
      %5016 = vmatpush.msra.mxu0 %v4943
      %5017 = vmatpush.msra.mxu0 %v4941
      %5018 = vmatpush.msra.mxu0 %v4939
      %5019 = vmatpush.msra.mxu0 %v4937
      %5020 = vmatpush.msra.mxu0 %v4935
      %5021 = vmatpush.msra.mxu0 %v4933
      %5022 = vmatpush.msra.mxu0 %v4931
      %5023 = vmatpush.msra.mxu0 %v4929
      %5024 = vmatpush.msra.mxu0 %v4927
      %5025 = vmatpush.msra.mxu0 %v4925
      %5026 = vmatmul.f32.gmra.mxu0 %v5009
      %v5027 = vpop.f32.mrf.mxu0
      %v5028 = vadd.f32 0.0, %v5027
      %5029 = vdwg.mxu0
      %5030 = vmatpush.msra.mxu0 %v4956
      %5031 = vmatpush.msra.mxu0 %v4954
      %5032 = vmatpush.msra.mxu0 %v4952
      %5033 = vmatpush.msra.mxu0 %v4950
      %5034 = vmatpush.msra.mxu0 %v4948
      %5035 = vmatpush.msra.mxu0 %v4946
      %5036 = vmatpush.msra.mxu0 %v4944
      %5037 = vmatpush.msra.mxu0 %v4942
      %5038 = vmatpush.msra.mxu0 %v4940
      %5039 = vmatpush.msra.mxu0 %v4938
      %5040 = vmatpush.msra.mxu0 %v4936
      %5041 = vmatpush.msra.mxu0 %v4934
      %5042 = vmatpush.msra.mxu0 %v4932
      %5043 = vmatpush.msra.mxu0 %v4930
      %5044 = vmatpush.msra.mxu0 %v4928
      %5045 = vmatpush.msra.mxu0 %v4926
      %5046 = vmatmul.f32.gmra.mxu0 %v5009
      %v5047 = vpop.f32.mrf.mxu0
      %v5048 = vadd.f32 0.0, %v5047
      %5049 = vdwg.mxu0
      %v5050 = vperm.slane %v5028, 0
      %v5051 = vperm.slane %v5048, 0
      %v5052 = vsub.f32 %v4891, %v5050
      %v5053 = vsub.f32 %v4892, %v5051
      %v5054 = vmul.f32 %v5052, %v5052
      %v5055 = vmul.f32 %v5053, %v5053
      %v5056 = vrot.slane %v5054, 4
      %v5057 = vadd.f32 %v5054, %v5056
      %v5058 = vrot.slane %v5057, 2
      %v5059 = vadd.f32 %v5057, %v5058
      %v5060 = vrot.slane %v5059, 1
      %v5061 = vadd.f32 %v5059, %v5060
      %v5062 = vrot.slane %v5055, 4
      %v5063 = vadd.f32 %v5055, %v5062
      %v5064 = vrot.slane %v5063, 2
      %v5065 = vadd.f32 %v5063, %v5064
      %v5066 = vrot.slane %v5065, 1
      %v5067 = vadd.f32 %v5065, %v5066
      %5068 = vmatpush.msra.mxu0 %v4908
      %5069 = vmatpush.msra.mxu0 %v4907
      %5070 = vmatpush.msra.mxu0 %v4906
      %5071 = vmatpush.msra.mxu0 %v4905
      %5072 = vmatpush.msra.mxu0 %v4904
      %5073 = vmatpush.msra.mxu0 %v4903
      %5074 = vmatpush.msra.mxu0 %v4902
      %5075 = vmatpush.msra.mxu0 %v4901
      %5076 = vmatpush.msra.mxu0 %v4900
      %5077 = vmatpush.msra.mxu0 %v4899
      %5078 = vmatpush.msra.mxu0 %v4898
      %5079 = vmatpush.msra.mxu0 %v4897
      %5080 = vmatpush.msra.mxu0 %v4896
      %5081 = vmatpush.msra.mxu0 %v4895
      %5082 = vmatpush.msra.mxu0 %v4894
      %5083 = vmatpush.msra.mxu0 %v4893
      %5084 = vmatmul.f32.gmra.mxu0 %v5061
      %v5085 = vpop.f32.mrf.mxu0
      %v5086 = vadd.f32 0.0, %v5085
      %5087 = vdwg.mxu0
      %5088 = vmatpush.msra.mxu0 %v4924
      %5089 = vmatpush.msra.mxu0 %v4923
      %5090 = vmatpush.msra.mxu0 %v4922
      %5091 = vmatpush.msra.mxu0 %v4921
      %5092 = vmatpush.msra.mxu0 %v4920
      %5093 = vmatpush.msra.mxu0 %v4919
      %5094 = vmatpush.msra.mxu0 %v4918
      %5095 = vmatpush.msra.mxu0 %v4917
      %5096 = vmatpush.msra.mxu0 %v4916
      %5097 = vmatpush.msra.mxu0 %v4915
      %5098 = vmatpush.msra.mxu0 %v4914
      %5099 = vmatpush.msra.mxu0 %v4913
      %5100 = vmatpush.msra.mxu0 %v4912
      %5101 = vmatpush.msra.mxu0 %v4911
      %5102 = vmatpush.msra.mxu0 %v4910
      %5103 = vmatpush.msra.mxu0 %v4909
      %5104 = vmatmul.f32.gmra.mxu0 %v5067
      %v5105 = vpop.f32.mrf.mxu0
      %v5106 = vadd.f32 %v5086, %v5105
      %5107 = vdwg.mxu0
      %v5108 = vmul.f32 %v5106, 0.03125
      %v5109 = vadd.f32 %v5108, 1e-05
      %v5110 = vrsqrt.pop %v5109
      %v5111 = vmul.f32 %v5110, %v5109
      %v5112 = vmul.f32 %v5111, %v5110
      %v5113 = vmul.f32 0.5, %v5112
      %v5114 = vsub.f32 1.5, %v5113
      %v5115 = vmul.f32 %v5110, %v5114
      %vm5116 = vweird.f32 %v5109
      %vm5117 = vweird.f32 %v5110
      %vm5118 = vmor %vm5116, %vm5117
      %v5119 = vsel %vm5118, %v5110, %v5115
      %5120 = vmatpush.msra.mxu0 %v4955
      %5121 = vmatpush.msra.mxu0 %v4953
      %5122 = vmatpush.msra.mxu0 %v4951
      %5123 = vmatpush.msra.mxu0 %v4949
      %5124 = vmatpush.msra.mxu0 %v4947
      %5125 = vmatpush.msra.mxu0 %v4945
      %5126 = vmatpush.msra.mxu0 %v4943
      %5127 = vmatpush.msra.mxu0 %v4941
      %5128 = vmatpush.msra.mxu0 %v4939
      %5129 = vmatpush.msra.mxu0 %v4937
      %5130 = vmatpush.msra.mxu0 %v4935
      %5131 = vmatpush.msra.mxu0 %v4933
      %5132 = vmatpush.msra.mxu0 %v4931
      %5133 = vmatpush.msra.mxu0 %v4929
      %5134 = vmatpush.msra.mxu0 %v4927
      %5135 = vmatpush.msra.mxu0 %v4925
      %5136 = vmatmul.f32.gmra.mxu0 %v5119
      %v5137 = vpop.f32.mrf.mxu0
      %v5138 = vadd.f32 0.0, %v5137
      %5139 = vdwg.mxu0
      %5140 = vmatpush.msra.mxu0 %v4956
      %5141 = vmatpush.msra.mxu0 %v4954
      %5142 = vmatpush.msra.mxu0 %v4952
      %5143 = vmatpush.msra.mxu0 %v4950
      %5144 = vmatpush.msra.mxu0 %v4948
      %5145 = vmatpush.msra.mxu0 %v4946
      %5146 = vmatpush.msra.mxu0 %v4944
      %5147 = vmatpush.msra.mxu0 %v4942
      %5148 = vmatpush.msra.mxu0 %v4940
      %5149 = vmatpush.msra.mxu0 %v4938
      %5150 = vmatpush.msra.mxu0 %v4936
      %5151 = vmatpush.msra.mxu0 %v4934
      %5152 = vmatpush.msra.mxu0 %v4932
      %5153 = vmatpush.msra.mxu0 %v4930
      %5154 = vmatpush.msra.mxu0 %v4928
      %5155 = vmatpush.msra.mxu0 %v4926
      %5156 = vmatmul.f32.gmra.mxu0 %v5119
      %v5157 = vpop.f32.mrf.mxu0
      %v5158 = vadd.f32 0.0, %v5157
      %5159 = vdwg.mxu0
      %v5160 = vperm.slane %v5138, 0
      %v5161 = vperm.slane %v5158, 0
      %v5162 = vmul.f32 %v5052, %v5160
      %v5163 = vmul.f32 %v5053, %v5161
      %v5164 = vld [vmem:[%s12] ss:$2 sm:$0x3]
      %v5166 = vperm.slane %v5164, 0
      %v5167 = vperm.slane %v5164, 1
      %v5170 = vmul.f32 %v5162, %v5166
      %v5171 = vmul.f32 %v5163, %v5167
      %s5172 = scalar_lea.vmem %s12, 1
      %v5173 = vld [vmem:[%s5172] ss:$2 sm:$0x3]
      %v5175 = vperm.slane %v5173, 0
      %v5176 = vperm.slane %v5173, 1
      %v5179 = vadd.f32 %v5170, %v5175
      %v5180 = vadd.f32 %v5171, %v5176
      %vm5181 = vcmp.gt.f32.partialorder %v5179, 0.0
      %vm5182 = vcmp.gt.f32.partialorder %v5180, 0.0
      %v5183 = vmul.f32 %v5179, 0.2
      %v5184 = vmul.f32 %v5180, 0.2
      %v5185 = vsel %vm5181, %v5179, %v5183
      %v5186 = vsel %vm5182, %v5180, %v5184
      %v5187 = vpack.c.bf16 %v5186, %v5185
      %v5189 = vrot.slane %v5187, 2
      %vm5190 = vcmask 1041408
      %v5193 = vsel %vm5190, %v5187, %v5189
      %vm5195 = vmor %vm3775, %vm557
      %v5196 = vld [vmem:[#allocation5] sm:$0x5]
      %v5197 = vsel %vm5195, %v5193, %v5196
      %5198 = vst [vmem:[#allocation5] sm:$0x5] %v5197
      %v5199 = vshrl.u32 %v5193, 16
      %v5201 = vrot.slane %v5199, 6
      %v5202 = vrot.slane %v5201, 2
      %s5204 = scalar_lea.vmem [#allocation5], 4
      %v5205 = vld [vmem:[%s5204] sm:$0x5]
      %v5206 = vsel %vm5195, %v5202, %v5205
      %5207 = vst [vmem:[%s5204] sm:$0x5] %v5206
      %v5208 = vshll.u32 %v5193, 16
      %v5210 = vrot.slane %v5208, 7
      %v5211 = vrot.slane %v5210, 2
      %vm5213 = vmor %vm3791, %vm3719
      %v5214 = vld [vmem:[#allocation5] sm:$0x5]
      %v5215 = vsel %vm5213, %v5211, %v5214
      %5216 = vst [vmem:[#allocation5] sm:$0x5] %v5215
      %v5218 = vrot.slane %v5193, 7
      %v5219 = vrot.slane %v5218, 2
      %v5221 = vld [vmem:[%s5204] sm:$0x5]
      %v5222 = vsel %vm5213, %v5219, %v5221
      %5223 = vst [vmem:[%s5204] sm:$0x5] %v5222
      %5224 = vst.sshfl [vmem:[#allocation1] sm:$0xff pattern:$0x75643120] %v5187
      %s5225 = scalar_lea.vmem [#allocation1], 1
      %v5226 = vld [vmem:[%s5225] ss:$2 sm:$0xff]
      %v5228 = vrot.slane %v5226, 7
      %vm5230 = vmor %vm3812, %vm3741
      %v5231 = vld [vmem:[#allocation5] sm:$0xa]
      %v5232 = vsel %vm5230, %v5228, %v5231
      %5233 = vst [vmem:[#allocation5] sm:$0xa] %v5232
      %5234 = vst.sshfl [vmem:[#allocation1] sm:$0xff pattern:$0x75643120] %v5187
      %s5235 = scalar_lea.vmem [#allocation1], 1
      %v5236 = vld [vmem:[%s5235] ss:$2 sm:$0xff]
      %v5237 = vshrl.u32 %v5236, 16
      %v5239 = vrot.slane %v5237, 7
      %v5241 = vld [vmem:[%s5204] sm:$0xa]
      %v5242 = vsel %vm5230, %v5239, %v5241
      %5243 = vst [vmem:[%s5204] sm:$0xa] %v5242
      %5244 = vst.sshfl [vmem:[#allocation1] sm:$0xff pattern:$0x75643120] %v5187
      %s5245 = scalar_lea.vmem [#allocation1], 1
      %v5246 = vld [vmem:[%s5245] ss:$2 sm:$0xff]
      %v5247 = vshll.u32 %v5246, 16
      %vm5250 = vmor %vm3825, %vm3757
      %v5251 = vld [vmem:[#allocation5] sm:$0xa]
      %v5252 = vsel %vm5250, %v5247, %v5251
      %5253 = vst [vmem:[#allocation5] sm:$0xa] %v5252
      %5254 = vst.sshfl [vmem:[#allocation1] sm:$0xff pattern:$0x75643120] %v5187
      %s5255 = scalar_lea.vmem [#allocation1], 1
      %v5256 = vld [vmem:[%s5255] ss:$2 sm:$0xff]
      %v5258 = vld [vmem:[%s5204] sm:$0xa]
      %v5259 = vsel %vm5250, %v5256, %v5258
      %5260 = vst [vmem:[%s5204] sm:$0xa] %v5259
      %v5261 = vld [vmem:[#allocation5] sm:$0xf]
      %v5262 = vld [vmem:[%s15] sm:$0xf]
      %v5263 = vld [vmem:[%s15 + $0x4] sm:$0xf]
      %v5264 = vld [vmem:[%s15 + $0x8] sm:$0xf]
      %v5265 = vld [vmem:[%s15 + $0xc] sm:$0xf]
      %v5266 = vld [vmem:[%s15 + $0x10] sm:$0xf]
      %v5267 = vld [vmem:[%s15 + $0x14] sm:$0xf]
      %v5268 = vld [vmem:[%s15 + $0x18] sm:$0xf]
      %v5269 = vld [vmem:[%s15 + $0x1c] sm:$0xf]
      %v5270 = vld [vmem:[%s15 + $0x20] sm:$0xf]
      %v5271 = vld [vmem:[%s15 + $0x24] sm:$0xf]
      %v5272 = vld [vmem:[%s15 + $0x28] sm:$0xf]
      %v5273 = vld [vmem:[%s15 + $0x2c] sm:$0xf]
      %v5274 = vld [vmem:[%s15 + $0x30] sm:$0xf]
      %v5275 = vld [vmem:[%s15 + $0x34] sm:$0xf]
      %v5276 = vld [vmem:[%s15 + $0x38] sm:$0xf]
      %v5277 = vld [vmem:[%s15 + $0x3c] sm:$0xf]
      %v5278 = vld [vmem:[%s15 + $0x40] sm:$0xf]
      %v5279 = vld [vmem:[%s15 + $0x44] sm:$0xf]
      %v5280 = vld [vmem:[%s15 + $0x48] sm:$0xf]
      %v5281 = vld [vmem:[%s15 + $0x4c] sm:$0xf]
      %v5282 = vld [vmem:[%s15 + $0x50] sm:$0xf]
      %v5283 = vld [vmem:[%s15 + $0x54] sm:$0xf]
      %v5284 = vld [vmem:[%s15 + $0x58] sm:$0xf]
      %v5285 = vld [vmem:[%s15 + $0x5c] sm:$0xf]
      %v5286 = vld [vmem:[%s15 + $0x60] sm:$0xf]
      %v5287 = vld [vmem:[%s15 + $0x64] sm:$0xf]
      %v5288 = vld [vmem:[%s15 + $0x68] sm:$0xf]
      %v5289 = vld [vmem:[%s15 + $0x6c] sm:$0xf]
      %v5290 = vld [vmem:[%s15 + $0x70] sm:$0xf]
      %v5291 = vld [vmem:[%s15 + $0x74] sm:$0xf]
      %v5292 = vld [vmem:[%s15 + $0x78] sm:$0xf]
      %v5293 = vld [vmem:[%s15 + $0x7c] sm:$0xf]
      %v5294 = vld [vmem:[%s5204] sm:$0xf]
      %s5295 = scalar_lea.vmem %s15, 128
      %v5296 = vld [vmem:[%s5295] sm:$0xf]
      %v5297 = vld [vmem:[%s5295 + $0x4] sm:$0xf]
      %v5298 = vld [vmem:[%s5295 + $0x8] sm:$0xf]
      %v5299 = vld [vmem:[%s5295 + $0xc] sm:$0xf]
      %v5300 = vld [vmem:[%s5295 + $0x10] sm:$0xf]
      %v5301 = vld [vmem:[%s5295 + $0x14] sm:$0xf]
      %v5302 = vld [vmem:[%s5295 + $0x18] sm:$0xf]
      %v5303 = vld [vmem:[%s5295 + $0x1c] sm:$0xf]
      %v5304 = vld [vmem:[%s5295 + $0x20] sm:$0xf]
      %v5305 = vld [vmem:[%s5295 + $0x24] sm:$0xf]
      %v5306 = vld [vmem:[%s5295 + $0x28] sm:$0xf]
      %v5307 = vld [vmem:[%s5295 + $0x2c] sm:$0xf]
      %v5308 = vld [vmem:[%s5295 + $0x30] sm:$0xf]
      %v5309 = vld [vmem:[%s5295 + $0x34] sm:$0xf]
      %v5310 = vld [vmem:[%s5295 + $0x38] sm:$0xf]
      %v5311 = vld [vmem:[%s5295 + $0x3c] sm:$0xf]
      %v5312 = vld [vmem:[%s5295 + $0x40] sm:$0xf]
      %v5313 = vld [vmem:[%s5295 + $0x44] sm:$0xf]
      %v5314 = vld [vmem:[%s5295 + $0x48] sm:$0xf]
      %v5315 = vld [vmem:[%s5295 + $0x4c] sm:$0xf]
      %v5316 = vld [vmem:[%s5295 + $0x50] sm:$0xf]
      %v5317 = vld [vmem:[%s5295 + $0x54] sm:$0xf]
      %v5318 = vld [vmem:[%s5295 + $0x58] sm:$0xf]
      %v5319 = vld [vmem:[%s5295 + $0x5c] sm:$0xf]
      %v5320 = vld [vmem:[%s5295 + $0x60] sm:$0xf]
      %v5321 = vld [vmem:[%s5295 + $0x64] sm:$0xf]
      %v5322 = vld [vmem:[%s5295 + $0x68] sm:$0xf]
      %v5323 = vld [vmem:[%s5295 + $0x6c] sm:$0xf]
      %v5324 = vld [vmem:[%s5295 + $0x70] sm:$0xf]
      %v5325 = vld [vmem:[%s5295 + $0x74] sm:$0xf]
      %v5326 = vld [vmem:[%s5295 + $0x78] sm:$0xf]
      %v5327 = vld [vmem:[%s5295 + $0x7c] sm:$0xf]
      %5329 = vst [vmem:[#allocation1] ss:$4 sm:$0xff] %v5294
      %v5330 = vld.sshfl [vmem:[#allocation1] sm:$0xff pattern:$0x73625140]
      %v5331 = vld.sshfl [vmem:[#allocation1 + $0x8] sm:$0xff pattern:$0x73625140]
      %v5366 = vunpack.c.l.b16 %v5296
      %v5367 = vunpack.c.l.b16 %v5297
      %v5368 = vunpack.c.l.b16 %v5298
      %v5369 = vunpack.c.l.b16 %v5299
      %v5370 = vunpack.c.l.b16 %v5300
      %v5371 = vunpack.c.l.b16 %v5301
      %v5372 = vunpack.c.l.b16 %v5302
      %v5373 = vunpack.c.l.b16 %v5303
      %v5374 = vunpack.c.l.b16 %v5304
      %v5375 = vunpack.c.l.b16 %v5305
      %v5376 = vunpack.c.l.b16 %v5306
      %v5377 = vunpack.c.l.b16 %v5307
      %v5378 = vunpack.c.l.b16 %v5308
      %v5379 = vunpack.c.l.b16 %v5309
      %v5380 = vunpack.c.l.b16 %v5310
      %v5381 = vunpack.c.l.b16 %v5311
      %v5382 = vunpack.c.l.b16 %v5312
      %v5383 = vunpack.c.l.b16 %v5313
      %v5384 = vunpack.c.l.b16 %v5314
      %v5385 = vunpack.c.l.b16 %v5315
      %v5386 = vunpack.c.l.b16 %v5316
      %v5387 = vunpack.c.l.b16 %v5317
      %v5388 = vunpack.c.l.b16 %v5318
      %v5389 = vunpack.c.l.b16 %v5319
      %v5390 = vunpack.c.l.b16 %v5320
      %v5391 = vunpack.c.l.b16 %v5321
      %v5392 = vunpack.c.l.b16 %v5322
      %v5393 = vunpack.c.l.b16 %v5323
      %v5394 = vunpack.c.l.b16 %v5324
      %v5395 = vunpack.c.l.b16 %v5325
      %v5396 = vunpack.c.l.b16 %v5326
      %v5397 = vunpack.c.l.b16 %v5327
      %v5398 = vpack.c.b16 %v5367, %v5366
      %v5399 = vpack.c.b16 %v5369, %v5368
      %v5400 = vpack.c.b16 %v5371, %v5370
      %v5401 = vpack.c.b16 %v5373, %v5372
      %v5402 = vpack.c.b16 %v5375, %v5374
      %v5403 = vpack.c.b16 %v5377, %v5376
      %v5404 = vpack.c.b16 %v5379, %v5378
      %v5405 = vpack.c.b16 %v5381, %v5380
      %v5406 = vpack.c.b16 %v5383, %v5382
      %v5407 = vpack.c.b16 %v5385, %v5384
      %v5408 = vpack.c.b16 %v5387, %v5386
      %v5409 = vpack.c.b16 %v5389, %v5388
      %v5410 = vpack.c.b16 %v5391, %v5390
      %v5411 = vpack.c.b16 %v5393, %v5392
      %v5412 = vpack.c.b16 %v5395, %v5394
      %v5413 = vpack.c.b16 %v5397, %v5396
      %5430 = vmatpush.bf16.msra.mxu0 %v5405
      %5431 = vmatpush.bf16.msra.mxu0 %v5404
      %5432 = vmatpush.bf16.msra.mxu0 %v5403
      %5433 = vmatpush.bf16.msra.mxu0 %v5402
      %5434 = vmatpush.bf16.msra.mxu0 %v5401
      %5435 = vmatpush.bf16.msra.mxu0 %v5400
      %5436 = vmatpush.bf16.msra.mxu0 %v5399
      %5437 = vmatpush.bf16.msra.mxu0 %v5398
      %5438 = vmatmul.bf16.gmra.mxu0 %v5330
      %v5439 = vpop.f32.mrf.mxu0
      %v5440 = vadd.f32 0.0, %v5439
      %v5441 = vpop.f32.mrf.mxu0
      %5442 = vdwg.mxu0
      %5443 = vmatpush.bf16.msra.mxu0 %v5413
      %5444 = vmatpush.bf16.msra.mxu0 %v5412
      %5445 = vmatpush.bf16.msra.mxu0 %v5411
      %5446 = vmatpush.bf16.msra.mxu0 %v5410
      %5447 = vmatpush.bf16.msra.mxu0 %v5409
      %5448 = vmatpush.bf16.msra.mxu0 %v5408
      %5449 = vmatpush.bf16.msra.mxu0 %v5407
      %5450 = vmatpush.bf16.msra.mxu0 %v5406
      %5451 = vmatmul.bf16.gmra.mxu0 %v5331
      %v5452 = vpop.f32.mrf.mxu0
      %v5453 = vadd.f32 %v5440, %v5452
      %v5454 = vpop.f32.mrf.mxu0
      %5455 = vdwg.mxu0
      %5457 = vst [vmem:[#allocation1] ss:$4 sm:$0xff] %v5261
      %v5458 = vld.sshfl [vmem:[#allocation1] sm:$0xff pattern:$0x73625140]
      %v5459 = vld.sshfl [vmem:[#allocation1 + $0x8] sm:$0xff pattern:$0x73625140]
      %v5494 = vunpack.c.l.b16 %v5262
      %v5495 = vunpack.c.l.b16 %v5263
      %v5496 = vunpack.c.l.b16 %v5264
      %v5497 = vunpack.c.l.b16 %v5265
      %v5498 = vunpack.c.l.b16 %v5266
      %v5499 = vunpack.c.l.b16 %v5267
      %v5500 = vunpack.c.l.b16 %v5268
      %v5501 = vunpack.c.l.b16 %v5269
      %v5502 = vunpack.c.l.b16 %v5270
      %v5503 = vunpack.c.l.b16 %v5271
      %v5504 = vunpack.c.l.b16 %v5272
      %v5505 = vunpack.c.l.b16 %v5273
      %v5506 = vunpack.c.l.b16 %v5274
      %v5507 = vunpack.c.l.b16 %v5275
      %v5508 = vunpack.c.l.b16 %v5276
      %v5509 = vunpack.c.l.b16 %v5277
      %v5510 = vunpack.c.l.b16 %v5278
      %v5511 = vunpack.c.l.b16 %v5279
      %v5512 = vunpack.c.l.b16 %v5280
      %v5513 = vunpack.c.l.b16 %v5281
      %v5514 = vunpack.c.l.b16 %v5282
      %v5515 = vunpack.c.l.b16 %v5283
      %v5516 = vunpack.c.l.b16 %v5284
      %v5517 = vunpack.c.l.b16 %v5285
      %v5518 = vunpack.c.l.b16 %v5286
      %v5519 = vunpack.c.l.b16 %v5287
      %v5520 = vunpack.c.l.b16 %v5288
      %v5521 = vunpack.c.l.b16 %v5289
      %v5522 = vunpack.c.l.b16 %v5290
      %v5523 = vunpack.c.l.b16 %v5291
      %v5524 = vunpack.c.l.b16 %v5292
      %v5525 = vunpack.c.l.b16 %v5293
      %v5526 = vpack.c.b16 %v5495, %v5494
      %v5527 = vpack.c.b16 %v5497, %v5496
      %v5528 = vpack.c.b16 %v5499, %v5498
      %v5529 = vpack.c.b16 %v5501, %v5500
      %v5530 = vpack.c.b16 %v5503, %v5502
      %v5531 = vpack.c.b16 %v5505, %v5504
      %v5532 = vpack.c.b16 %v5507, %v5506
      %v5533 = vpack.c.b16 %v5509, %v5508
      %v5534 = vpack.c.b16 %v5511, %v5510
      %v5535 = vpack.c.b16 %v5513, %v5512
      %v5536 = vpack.c.b16 %v5515, %v5514
      %v5537 = vpack.c.b16 %v5517, %v5516
      %v5538 = vpack.c.b16 %v5519, %v5518
      %v5539 = vpack.c.b16 %v5521, %v5520
      %v5540 = vpack.c.b16 %v5523, %v5522
      %v5541 = vpack.c.b16 %v5525, %v5524
      %5558 = vmatpush.bf16.msra.mxu0 %v5533
      %5559 = vmatpush.bf16.msra.mxu0 %v5532
      %5560 = vmatpush.bf16.msra.mxu0 %v5531
      %5561 = vmatpush.bf16.msra.mxu0 %v5530
      %5562 = vmatpush.bf16.msra.mxu0 %v5529
      %5563 = vmatpush.bf16.msra.mxu0 %v5528
      %5564 = vmatpush.bf16.msra.mxu0 %v5527
      %5565 = vmatpush.bf16.msra.mxu0 %v5526
      %5566 = vmatmul.bf16.gmra.mxu0 %v5458
      %v5567 = vpop.f32.mrf.mxu0
      %v5568 = vadd.f32 %v5453, %v5567
      %v5569 = vpop.f32.mrf.mxu0
      %5570 = vdwg.mxu0
      %5571 = vmatpush.bf16.msra.mxu0 %v5541
      %5572 = vmatpush.bf16.msra.mxu0 %v5540
      %5573 = vmatpush.bf16.msra.mxu0 %v5539
      %5574 = vmatpush.bf16.msra.mxu0 %v5538
      %5575 = vmatpush.bf16.msra.mxu0 %v5537
      %5576 = vmatpush.bf16.msra.mxu0 %v5536
      %5577 = vmatpush.bf16.msra.mxu0 %v5535
      %5578 = vmatpush.bf16.msra.mxu0 %v5534
      %5579 = vmatmul.bf16.gmra.mxu0 %v5459
      %v5580 = vpop.f32.mrf.mxu0
      %v5581 = vadd.f32 %v5568, %v5580
      %v5582 = vpop.f32.mrf.mxu0
      %5583 = vdwg.mxu0
      %v5584 = vld [vmem:[#allocation5] sm:$0xf]
      %s5585 = scalar_lea.vmem %s15, 256
      %v5586 = vld [vmem:[%s5585] sm:$0xf]
      %v5587 = vld [vmem:[%s5585 + $0x4] sm:$0xf]
      %v5588 = vld [vmem:[%s5585 + $0x8] sm:$0xf]
      %v5589 = vld [vmem:[%s5585 + $0xc] sm:$0xf]
      %v5590 = vld [vmem:[%s5585 + $0x10] sm:$0xf]
      %v5591 = vld [vmem:[%s5585 + $0x14] sm:$0xf]
      %v5592 = vld [vmem:[%s5585 + $0x18] sm:$0xf]
      %v5593 = vld [vmem:[%s5585 + $0x1c] sm:$0xf]
      %v5594 = vld [vmem:[%s5585 + $0x20] sm:$0xf]
      %v5595 = vld [vmem:[%s5585 + $0x24] sm:$0xf]
      %v5596 = vld [vmem:[%s5585 + $0x28] sm:$0xf]
      %v5597 = vld [vmem:[%s5585 + $0x2c] sm:$0xf]
      %v5598 = vld [vmem:[%s5585 + $0x30] sm:$0xf]
      %v5599 = vld [vmem:[%s5585 + $0x34] sm:$0xf]
      %v5600 = vld [vmem:[%s5585 + $0x38] sm:$0xf]
      %v5601 = vld [vmem:[%s5585 + $0x3c] sm:$0xf]
      %v5602 = vld [vmem:[%s5585 + $0x40] sm:$0xf]
      %v5603 = vld [vmem:[%s5585 + $0x44] sm:$0xf]
      %v5604 = vld [vmem:[%s5585 + $0x48] sm:$0xf]
      %v5605 = vld [vmem:[%s5585 + $0x4c] sm:$0xf]
      %v5606 = vld [vmem:[%s5585 + $0x50] sm:$0xf]
      %v5607 = vld [vmem:[%s5585 + $0x54] sm:$0xf]
      %v5608 = vld [vmem:[%s5585 + $0x58] sm:$0xf]
      %v5609 = vld [vmem:[%s5585 + $0x5c] sm:$0xf]
      %v5610 = vld [vmem:[%s5585 + $0x60] sm:$0xf]
      %v5611 = vld [vmem:[%s5585 + $0x64] sm:$0xf]
      %v5612 = vld [vmem:[%s5585 + $0x68] sm:$0xf]
      %v5613 = vld [vmem:[%s5585 + $0x6c] sm:$0xf]
      %v5614 = vld [vmem:[%s5585 + $0x70] sm:$0xf]
      %v5615 = vld [vmem:[%s5585 + $0x74] sm:$0xf]
      %v5616 = vld [vmem:[%s5585 + $0x78] sm:$0xf]
      %v5617 = vld [vmem:[%s5585 + $0x7c] sm:$0xf]
      %5619 = vst [vmem:[#allocation1] ss:$4 sm:$0xff] %v5584
      %v5620 = vld.sshfl [vmem:[#allocation1] sm:$0xff pattern:$0x73625140]
      %v5621 = vld.sshfl [vmem:[#allocation1 + $0x8] sm:$0xff pattern:$0x73625140]
      %v5622 = vshrl.u32 %v5620, 16
      %v5624 = vshll.u32 %v5620, 16
      %v5626 = vrot.slane %v5624, 1
      %v5627 = vor.u32 %v5622, %v5626
      %v5628 = vshrl.u32 %v5621, 16
      %v5630 = vshll.u32 %v5621, 16
      %v5632 = vrot.slane %v5630, 1
      %v5633 = vor.u32 %v5628, %v5632
      %v5668 = vunpack.c.l.b16 %v5586
      %v5669 = vunpack.c.l.b16 %v5587
      %v5670 = vunpack.c.l.b16 %v5588
      %v5671 = vunpack.c.l.b16 %v5589
      %v5672 = vunpack.c.l.b16 %v5590
      %v5673 = vunpack.c.l.b16 %v5591
      %v5674 = vunpack.c.l.b16 %v5592
      %v5675 = vunpack.c.l.b16 %v5593
      %v5676 = vunpack.c.l.b16 %v5594
      %v5677 = vunpack.c.l.b16 %v5595
      %v5678 = vunpack.c.l.b16 %v5596
      %v5679 = vunpack.c.l.b16 %v5597
      %v5680 = vunpack.c.l.b16 %v5598
      %v5681 = vunpack.c.l.b16 %v5599
      %v5682 = vunpack.c.l.b16 %v5600
      %v5683 = vunpack.c.l.b16 %v5601
      %v5684 = vunpack.c.l.b16 %v5602
      %v5685 = vunpack.c.l.b16 %v5603
      %v5686 = vunpack.c.l.b16 %v5604
      %v5687 = vunpack.c.l.b16 %v5605
      %v5688 = vunpack.c.l.b16 %v5606
      %v5689 = vunpack.c.l.b16 %v5607
      %v5690 = vunpack.c.l.b16 %v5608
      %v5691 = vunpack.c.l.b16 %v5609
      %v5692 = vunpack.c.l.b16 %v5610
      %v5693 = vunpack.c.l.b16 %v5611
      %v5694 = vunpack.c.l.b16 %v5612
      %v5695 = vunpack.c.l.b16 %v5613
      %v5696 = vunpack.c.l.b16 %v5614
      %v5697 = vunpack.c.l.b16 %v5615
      %v5698 = vunpack.c.l.b16 %v5616
      %v5699 = vunpack.c.l.b16 %v5617
      %v5700 = vpack.c.b16 %v5669, %v5668
      %v5701 = vpack.c.b16 %v5671, %v5670
      %v5702 = vpack.c.b16 %v5673, %v5672
      %v5703 = vpack.c.b16 %v5675, %v5674
      %v5704 = vpack.c.b16 %v5677, %v5676
      %v5705 = vpack.c.b16 %v5679, %v5678
      %v5706 = vpack.c.b16 %v5681, %v5680
      %v5707 = vpack.c.b16 %v5683, %v5682
      %v5708 = vpack.c.b16 %v5685, %v5684
      %v5709 = vpack.c.b16 %v5687, %v5686
      %v5710 = vpack.c.b16 %v5689, %v5688
      %v5711 = vpack.c.b16 %v5691, %v5690
      %v5712 = vpack.c.b16 %v5693, %v5692
      %v5713 = vpack.c.b16 %v5695, %v5694
      %v5714 = vpack.c.b16 %v5697, %v5696
      %v5715 = vpack.c.b16 %v5699, %v5698
      %5732 = vmatpush.bf16.msra.mxu0 %v5707
      %5733 = vmatpush.bf16.msra.mxu0 %v5706
      %5734 = vmatpush.bf16.msra.mxu0 %v5705
      %5735 = vmatpush.bf16.msra.mxu0 %v5704
      %5736 = vmatpush.bf16.msra.mxu0 %v5703
      %5737 = vmatpush.bf16.msra.mxu0 %v5702
      %5738 = vmatpush.bf16.msra.mxu0 %v5701
      %5739 = vmatpush.bf16.msra.mxu0 %v5700
      %5740 = vmatmul.bf16.gmra.mxu0 %v5627
      %v5741 = vpop.f32.mrf.mxu0
      %v5742 = vadd.f32 0.0, %v5741
      %v5743 = vpop.f32.mrf.mxu0
      %5744 = vdwg.mxu0
      %5745 = vmatpush.bf16.msra.mxu0 %v5715
      %5746 = vmatpush.bf16.msra.mxu0 %v5714
      %5747 = vmatpush.bf16.msra.mxu0 %v5713
      %5748 = vmatpush.bf16.msra.mxu0 %v5712
      %5749 = vmatpush.bf16.msra.mxu0 %v5711
      %5750 = vmatpush.bf16.msra.mxu0 %v5710
      %5751 = vmatpush.bf16.msra.mxu0 %v5709
      %5752 = vmatpush.bf16.msra.mxu0 %v5708
      %5753 = vmatmul.bf16.gmra.mxu0 %v5633
      %v5754 = vpop.f32.mrf.mxu0
      %v5755 = vadd.f32 %v5742, %v5754
      %v5756 = vpop.f32.mrf.mxu0
      %5757 = vdwg.mxu0
      %v5758 = vadd.f32 %v5581, %v5755
      %v5759 = vld [vmem:[%s5204] sm:$0xf]
      %s5760 = scalar_lea.vmem %s15, 384
      %v5761 = vld [vmem:[%s5760] sm:$0xf]
      %v5762 = vld [vmem:[%s5760 + $0x4] sm:$0xf]
      %v5763 = vld [vmem:[%s5760 + $0x8] sm:$0xf]
      %v5764 = vld [vmem:[%s5760 + $0xc] sm:$0xf]
      %v5765 = vld [vmem:[%s5760 + $0x10] sm:$0xf]
      %v5766 = vld [vmem:[%s5760 + $0x14] sm:$0xf]
      %v5767 = vld [vmem:[%s5760 + $0x18] sm:$0xf]
      %v5768 = vld [vmem:[%s5760 + $0x1c] sm:$0xf]
      %v5769 = vld [vmem:[%s5760 + $0x20] sm:$0xf]
      %v5770 = vld [vmem:[%s5760 + $0x24] sm:$0xf]
      %v5771 = vld [vmem:[%s5760 + $0x28] sm:$0xf]
      %v5772 = vld [vmem:[%s5760 + $0x2c] sm:$0xf]
      %v5773 = vld [vmem:[%s5760 + $0x30] sm:$0xf]
      %v5774 = vld [vmem:[%s5760 + $0x34] sm:$0xf]
      %v5775 = vld [vmem:[%s5760 + $0x38] sm:$0xf]
      %v5776 = vld [vmem:[%s5760 + $0x3c] sm:$0xf]
      %v5777 = vld [vmem:[%s5760 + $0x40] sm:$0xf]
      %v5778 = vld [vmem:[%s5760 + $0x44] sm:$0xf]
      %v5779 = vld [vmem:[%s5760 + $0x48] sm:$0xf]
      %v5780 = vld [vmem:[%s5760 + $0x4c] sm:$0xf]
      %v5781 = vld [vmem:[%s5760 + $0x50] sm:$0xf]
      %v5782 = vld [vmem:[%s5760 + $0x54] sm:$0xf]
      %v5783 = vld [vmem:[%s5760 + $0x58] sm:$0xf]
      %v5784 = vld [vmem:[%s5760 + $0x5c] sm:$0xf]
      %v5785 = vld [vmem:[%s5760 + $0x60] sm:$0xf]
      %v5786 = vld [vmem:[%s5760 + $0x64] sm:$0xf]
      %v5787 = vld [vmem:[%s5760 + $0x68] sm:$0xf]
      %v5788 = vld [vmem:[%s5760 + $0x6c] sm:$0xf]
      %v5789 = vld [vmem:[%s5760 + $0x70] sm:$0xf]
      %v5790 = vld [vmem:[%s5760 + $0x74] sm:$0xf]
      %v5791 = vld [vmem:[%s5760 + $0x78] sm:$0xf]
      %v5792 = vld [vmem:[%s5760 + $0x7c] sm:$0xf]
      %5794 = vst [vmem:[#allocation1] ss:$4 sm:$0xff] %v5759
      %v5795 = vld.sshfl [vmem:[#allocation1] sm:$0xff pattern:$0x73625140]
      %v5796 = vld.sshfl [vmem:[#allocation1 + $0x8] sm:$0xff pattern:$0x73625140]
      %v5797 = vshrl.u32 %v5795, 16
      %v5799 = vshll.u32 %v5795, 16
      %v5801 = vrot.slane %v5799, 1
      %v5802 = vor.u32 %v5797, %v5801
      %v5803 = vshrl.u32 %v5796, 16
      %v5805 = vshll.u32 %v5796, 16
      %v5807 = vrot.slane %v5805, 1
      %v5808 = vor.u32 %v5803, %v5807
      %v5843 = vunpack.c.l.b16 %v5761
      %v5844 = vunpack.c.l.b16 %v5762
      %v5845 = vunpack.c.l.b16 %v5763
      %v5846 = vunpack.c.l.b16 %v5764
      %v5847 = vunpack.c.l.b16 %v5765
      %v5848 = vunpack.c.l.b16 %v5766
      %v5849 = vunpack.c.l.b16 %v5767
      %v5850 = vunpack.c.l.b16 %v5768
      %v5851 = vunpack.c.l.b16 %v5769
      %v5852 = vunpack.c.l.b16 %v5770
      %v5853 = vunpack.c.l.b16 %v5771
      %v5854 = vunpack.c.l.b16 %v5772
      %v5855 = vunpack.c.l.b16 %v5773
      %v5856 = vunpack.c.l.b16 %v5774
      %v5857 = vunpack.c.l.b16 %v5775
      %v5858 = vunpack.c.l.b16 %v5776
      %v5859 = vunpack.c.l.b16 %v5777
      %v5860 = vunpack.c.l.b16 %v5778
      %v5861 = vunpack.c.l.b16 %v5779
      %v5862 = vunpack.c.l.b16 %v5780
      %v5863 = vunpack.c.l.b16 %v5781
      %v5864 = vunpack.c.l.b16 %v5782
      %v5865 = vunpack.c.l.b16 %v5783
      %v5866 = vunpack.c.l.b16 %v5784
      %v5867 = vunpack.c.l.b16 %v5785
      %v5868 = vunpack.c.l.b16 %v5786
      %v5869 = vunpack.c.l.b16 %v5787
      %v5870 = vunpack.c.l.b16 %v5788
      %v5871 = vunpack.c.l.b16 %v5789
      %v5872 = vunpack.c.l.b16 %v5790
      %v5873 = vunpack.c.l.b16 %v5791
      %v5874 = vunpack.c.l.b16 %v5792
      %v5875 = vpack.c.b16 %v5844, %v5843
      %v5876 = vpack.c.b16 %v5846, %v5845
      %v5877 = vpack.c.b16 %v5848, %v5847
      %v5878 = vpack.c.b16 %v5850, %v5849
      %v5879 = vpack.c.b16 %v5852, %v5851
      %v5880 = vpack.c.b16 %v5854, %v5853
      %v5881 = vpack.c.b16 %v5856, %v5855
      %v5882 = vpack.c.b16 %v5858, %v5857
      %v5883 = vpack.c.b16 %v5860, %v5859
      %v5884 = vpack.c.b16 %v5862, %v5861
      %v5885 = vpack.c.b16 %v5864, %v5863
      %v5886 = vpack.c.b16 %v5866, %v5865
      %v5887 = vpack.c.b16 %v5868, %v5867
      %v5888 = vpack.c.b16 %v5870, %v5869
      %v5889 = vpack.c.b16 %v5872, %v5871
      %v5890 = vpack.c.b16 %v5874, %v5873
      %5907 = vmatpush.bf16.msra.mxu0 %v5882
      %5908 = vmatpush.bf16.msra.mxu0 %v5881
      %5909 = vmatpush.bf16.msra.mxu0 %v5880
      %5910 = vmatpush.bf16.msra.mxu0 %v5879
      %5911 = vmatpush.bf16.msra.mxu0 %v5878
      %5912 = vmatpush.bf16.msra.mxu0 %v5877
      %5913 = vmatpush.bf16.msra.mxu0 %v5876
      %5914 = vmatpush.bf16.msra.mxu0 %v5875
      %5915 = vmatmul.bf16.gmra.mxu0 %v5802
      %v5916 = vpop.f32.mrf.mxu0
      %v5917 = vadd.f32 0.0, %v5916
      %v5918 = vpop.f32.mrf.mxu0
      %5919 = vdwg.mxu0
      %5920 = vmatpush.bf16.msra.mxu0 %v5890
      %5921 = vmatpush.bf16.msra.mxu0 %v5889
      %5922 = vmatpush.bf16.msra.mxu0 %v5888
      %5923 = vmatpush.bf16.msra.mxu0 %v5887
      %5924 = vmatpush.bf16.msra.mxu0 %v5886
      %5925 = vmatpush.bf16.msra.mxu0 %v5885
      %5926 = vmatpush.bf16.msra.mxu0 %v5884
      %5927 = vmatpush.bf16.msra.mxu0 %v5883
      %5928 = vmatmul.bf16.gmra.mxu0 %v5808
      %v5929 = vpop.f32.mrf.mxu0
      %v5930 = vadd.f32 %v5917, %v5929
      %v5931 = vpop.f32.mrf.mxu0
      %5932 = vdwg.mxu0
      %v5933 = vadd.f32 %v5758, %v5930
      %v5934 = vld [vmem:[%s16] sm:$0x1]
      %v5936 = vperm.slane %v5934, 0
      %v5938 = vadd.f32 %v5933, %v5936
      %5939 = vst [vmem:[%s546] sm:$0x7] %v5938
      %p5940 = scmp.lt.s32.totalorder %s28, 1
      %s5941 = scalar_select %p5940, %s28, 1
      %s5942 = smul.addr %s5941, 4
      %s5943 = scalar_lea.vmem %s17, %s5942
      // Predicated region
      $region89: #{discriminator_forward.1} parent=87 // pred_check
        %p5944 = pneg %p408
      $region90: #{discriminator_forward.1} parent=87 // pred_check_branch
        %5946 = sbr.rel (%p5944) target = $region92
      $region91: #{discriminator_forward.1} parent=87 // pred_region
        _
      $region92: #{discriminator_forward.1} parent=87 // pred_fallthru
        _
    $region88: #{discriminator_forward.1} parent=5 // pred_fallthru
      _
    %p5947 = scmp.le.s32.totalorder 2, %s23
    // Predicated region
    $region93: #{discriminator_forward.1} parent=5 // pred_check
      %p5948 = pneg %p5947
    $region94: #{discriminator_forward.1} parent=5 // pred_check_branch
      %5950 = sbr.rel (%p5948) target = $region96
    $region95: #{discriminator_forward.1} parent=5 // pred_region
      %s5951 = ssub.s32 %s23, 2
      // Predicated region
      $region97: #{discriminator_forward.1} parent=95 // pred_check
        %p5952 = pneg %p414
      $region98: #{discriminator_forward.1} parent=95 // pred_check_branch
        %5954 = sbr.rel (%p5952) target = $region100
      $region99: #{discriminator_forward.1} parent=95 // pred_region
        %p5955 = scmp.lt.s32.totalorder %s29, 1
        %s5956 = scalar_select %p5955, %s29, 1
        %s5957 = smul.addr %s5956, 4
        %s5958 = scalar_lea.vmem %s17, %s5957
      $region100: #{discriminator_forward.1} parent=95 // pred_fallthru
        _
    $region96: #{discriminator_forward.1} parent=5 // pred_fallthru
      _
  $region6: #{discriminator_forward.1} parent=0 // loop_footer
    %s27 = sadd.s32 1, %s23
  $region7: #{discriminator_forward.1} parent=0 // loop_footer_branch
    %22 = sbr.rel target = $region3
  $region8: #{discriminator_forward.1} parent=0 // loop_exit
    _

</llo_original>
